<compile_context>
chip_gen: v5e
topology: v5e:2x2
jax: 0.10.0
libtpu: 0.0.40
codegen_flags: <defaults>
</compile_context>

<pallas_src>
import functools

import jax
import jax.numpy as jnp
from jax.experimental import pallas as pl
from jax.experimental.pallas import tpu as pltpu


def _sts_kernel(x_ref, m12_ref, wmask_ref, pool_h_ref, pool_w_ref,
                cas_ref, cab_ref, bdh_ref, hb_ref, bdw_ref, wb_ref,
                sel_h_ref, sel_w_ref, w2_ref, b1_ref, b2_ref,
                out_ref, *, C, R, T, H, W):
    f32 = jnp.float32
    HW = H * W

    x2 = x_ref[0].astype(f32)                              # (C*T, HW), lane-dense

    # ---- ste[0] (1x1x1 conv, C->1) + channel mean, fused into ONE MXU matmul ----
    sxm = jnp.dot(m12_ref[...], x2, preferred_element_type=f32)   # (2T, HW)
    s = sxm[:T, :] + b1_ref[0]                              # (T, HW)
    xm = sxm[T:2 * T, :]                                    # (T, HW) mean over channels

    # ---- ste[1]: 3x3x3 conv (padding=1) + sigmoid in the flat (T, H*W) layout ----
    # dw = +-1 taps use pre-masked copies of s (W-row boundary correction applied once).
    P = W + 1
    wm = wmask_ref[...]                                     # (2, 1, HW)
    s_km = s * wm[0]                                        # for kw=0 (reads w-1): zero w==W-1
    s_kp = s * wm[1]                                        # for kw=2 (reads w+1): zero w==0
    zl = jnp.zeros((T, P), f32)
    zt = jnp.zeros((1, HW + 2 * P), f32)

    def pad2(a):                                            # (T, HW) -> (T+2, HW+2P)
        a = jnp.concatenate([zl, a, zl], axis=1)
        return jnp.concatenate([zt, a, zt], axis=0)

    sp = (pad2(s_km), pad2(s), pad2(s_kp))
    acc = jnp.zeros((T, HW), f32) + b2_ref[0]
    for kw in range(3):
        spk = sp[kw]
        for dt in range(3):
            for dh in range(3):
                start = P + (dh - 1) * W + (kw - 1)
                acc = acc + w2_ref[dt * 9 + dh * 3 + kw] * spk[dt:dt + T, start:start + HW]
    m1 = jax.nn.sigmoid(acc)                                # (T, HW)

    # ---- pooled means on MXU: mean over (C,H) -> (T,W); mean over (C,W) -> (T,H) ----
    hp = jnp.dot(xm, pool_h_ref[...], preferred_element_type=f32)   # (T, W)
    wp = jnp.dot(xm, pool_w_ref[...], preferred_element_type=f32)   # (T, H)

    # ---- ca_conv + folded eval-mode BatchNorm + ReLU on (R*T, X) rows ----
    hp_rt = jnp.concatenate([hp] * R, axis=0)               # (R*T, W)
    wp_rt = jnp.concatenate([wp] * R, axis=0)               # (R*T, H)
    a_h = jnp.maximum(cas_ref[...] * hp_rt + cab_ref[...], 0.0)     # (R*T, W)
    a_w = jnp.maximum(cas_ref[...] * wp_rt + cab_ref[...], 0.0)     # (R*T, H)

    # ---- R->C expansion (h_conv / w_conv) as ONE MXU matmul per branch ----
    # Block-diagonal kron(W, I_T) weight keeps rows (c,t)-ordered -> matches the x layout.
    h_attn = jax.nn.sigmoid(
        jnp.dot(bdh_ref[...], a_h, preferred_element_type=f32) + hb_ref[...])   # (C*T, W)
    w_attn = jax.nn.sigmoid(
        jnp.dot(bdw_ref[...], a_w, preferred_element_type=f32) + wb_ref[...])   # (C*T, H)

    # ---- replicate to the flat (T, H*W) lane layout via selector matmuls (MXU) ----
    h_rep = jnp.dot(h_attn, sel_h_ref[...], preferred_element_type=f32)         # (C*T, HW)
    w_rep = jnp.dot(w_attn, sel_w_ref[...], preferred_element_type=f32)         # (C*T, HW)

    # ---- final fused product: per-channel, full-vreg lane-dense stores; m1 reused ----
    for c in range(C):
        r0 = c * T
        xc = x_ref[0, r0:r0 + T, :].astype(f32)
        out_ref[0, r0:r0 + T, :] = (
            xc * m1 * h_rep[r0:r0 + T, :] * w_rep[r0:r0 + T, :]).astype(out_ref.dtype)


def sts_attention(x, params):
    B, C, T, H, W = x.shape
    assert W >= 2, "W must be >= 2 for the flat-layout conv boundary masks"
    HW = H * W
    CT = C * T
    R = params["ca_w"].shape[0]
    f32 = jnp.float32
    out_dtype = x.dtype

    # Lane-dense view: (B, C*T, H*W). Free, layout-only reshape outside the kernel.
    x2 = x.reshape(B, CT, HW)

    eye_t = jnp.eye(T, dtype=f32)
    # Fused C-contraction + channel-mean matrix: rows [0,T) -> sum_c w1[c] x[c,t,:],
    # rows [T,2T) -> mean over c.
    m12 = jnp.concatenate(
        [jnp.kron(params["ste_w1"].reshape(1, C).astype(f32), eye_t),
         jnp.kron(jnp.full((1, C), 1.0 / C, f32), eye_t)], axis=0)          # (2T, C*T)

    # W-row boundary pre-masks for the dw = -1 / +1 conv taps.
    w_idx = jnp.arange(HW, dtype=jnp.int32) % W
    wmask = jnp.stack([(w_idx != W - 1).astype(f32),
                       (w_idx != 0).astype(f32)], axis=0).reshape(2, 1, HW)

    # Pooled-mean averaging matrices (HW -> W / H) and replication selectors (W / H -> HW).
    pool_h = jnp.kron(jnp.full((H, 1), 1.0 / H, f32), jnp.eye(W, dtype=f32))    # (HW, W)
    pool_w = jnp.kron(jnp.eye(H, dtype=f32), jnp.full((W, 1), 1.0 / W, f32))    # (HW, H)
    sel_h = jnp.kron(jnp.ones((1, H), f32), jnp.eye(W, dtype=f32))              # (W, HW)
    sel_w = jnp.kron(jnp.eye(H, dtype=f32), jnp.ones((1, W), f32))              # (H, HW)

    # ca_conv with eval-mode BatchNorm folded, repeated per (r, t) row.
    cas = (params["ca_w"] * params["bn_scale"]).astype(f32)
    cab = (params["ca_b"] * params["bn_scale"] + params["bn_shift"]).astype(f32)
    cas_rt = jnp.repeat(cas, T).reshape(R * T, 1)
    cab_rt = jnp.repeat(cab, T).reshape(R * T, 1)

    # h_conv / w_conv as block-diagonal (over t) weights -> one MXU matmul (R*T -> C*T).
    hw2 = params["h_w"].reshape(C, R).astype(f32)
    ww2 = params["w_w"].reshape(C, R).astype(f32)
    bdh = jnp.kron(hw2, eye_t)                                                   # (C*T, R*T)
    bdw = jnp.kron(ww2, eye_t)
    hb_ct = jnp.repeat(params["h_b"].astype(f32), T).reshape(CT, 1)
    wb_ct = jnp.repeat(params["w_b"].astype(f32), T).reshape(CT, 1)

    smem = pl.BlockSpec(memory_space=pltpu.MemorySpace.SMEM)
    full = lambda a: pl.BlockSpec(a.shape, lambda b: (0,) * a.ndim)

    kernel = functools.partial(_sts_kernel, C=C, R=R, T=T, H=H, W=W)
    out2 = pl.pallas_call(
        kernel,
        grid=(B,),
        in_specs=[
            pl.BlockSpec((1, CT, HW), lambda b: (b, 0, 0)),
            full(m12), full(wmask), full(pool_h), full(pool_w),
            full(cas_rt), full(cab_rt), full(bdh), full(hb_ct),
            full(bdw), full(wb_ct), full(sel_h), full(sel_w),
            smem, smem, smem,
        ],
        out_specs=pl.BlockSpec((1, CT, HW), lambda b: (b, 0, 0)),
        out_shape=jax.ShapeDtypeStruct((B, CT, HW), out_dtype),
        compiler_params=pltpu.CompilerParams(
            dimension_semantics=("parallel",),
            vmem_limit_bytes=32 * 1024 * 1024),
    )(x2, m12, wmask, pool_h, pool_w, cas_rt, cab_rt, bdh, hb_ct, bdw, wb_ct,
      sel_h, sel_w, params["ste_w2"].astype(f32), params["ste_b1"].astype(f32),
      params["ste_b2"].astype(f32))
    return out2.reshape(B, C, T, H, W)


def sts_attention_ref(x, params):
    """Pure-JAX reference mirroring the PyTorch forward (eval-mode BN)."""
    B, C, T, H, W = x.shape
    R = params["ca_w"].shape[0]
    w1, b1 = params["ste_w1"], params["ste_b1"][0]
    s = jnp.einsum("bcthw,c->bthw", x, w1) + b1
    sp = jnp.pad(s, ((0, 0), (1, 1), (1, 1), (1, 1)))
    w2, b2 = params["ste_w2"].reshape(3, 3, 3), params["ste_b2"][0]
    acc = jnp.zeros_like(s) + b2
    for kt in range(3):
        for kh in range(3):
            for kw in range(3):
                acc = acc + w2[kt, kh, kw] * sp[:, kt:kt + T, kh:kh + H, kw:kw + W]
    m1 = jax.nn.sigmoid(acc)
    xm = x.mean(axis=1)
    hp = xm.mean(axis=2)                            # (B, T, W)
    wp = xm.mean(axis=3)                            # (B, T, H)
    caw, cab = params["ca_w"], params["ca_b"]
    bns, bnb = params["bn_scale"], params["bn_shift"]

    def branch(p):                                  # p: (B, T, X) -> (B, R, T, X)
        y = caw[None, :, None, None] * p[:, None] + cab[None, :, None, None]
        y = y * bns[None, :, None, None] + bnb[None, :, None, None]
        return jnp.maximum(y, 0.0)

    hw, hb = params["h_w"].reshape(C, R), params["h_b"]
    ww, wb = params["w_w"].reshape(C, R), params["w_b"]
    h_attn = jax.nn.sigmoid(jnp.einsum("cr,brtw->bctw", hw, branch(hp)) + hb[None, :, None, None])
    w_attn = jax.nn.sigmoid(jnp.einsum("cr,brth->bcth", ww, branch(wp)) + wb[None, :, None, None])
    return x * m1[:, None] * h_attn[:, :, :, None, :] * w_attn[:, :, :, :, None]


if __name__ == "__main__":
    B, C, T, H, W = 2, 16, 8, 16, 16
    reduction = 8
    R = C // reduction

    key = jax.random.PRNGKey(0)
    keys = jax.random.split(key, 16)
    x = jax.random.normal(keys[0], (B, C, T, H, W), jnp.float32)

    def init(k, shape, scale=0.2):
        return scale * jax.random.normal(k, shape, jnp.float32)

    # Fold eval-mode BatchNorm3d into an affine scale/shift.
    gamma = 1.0 + 0.1 * jax.random.normal(keys[9], (R,), jnp.float32)
    beta = 0.1 * jax.random.normal(keys[10], (R,), jnp.float32)
    rmean = 0.1 * jax.random.normal(keys[11], (R,), jnp.float32)
    rvar = 1.0 + 0.1 * jnp.abs(jax.random.normal(keys[12], (R,), jnp.float32))
    bn_scale = gamma / jnp.sqrt(rvar + 1e-5)
    bn_shift = beta - rmean * bn_scale

    params = dict(
        ste_w1=init(keys[1], (C,)),          # Conv3d(C,1,1) weight, flattened
        ste_b1=init(keys[2], (1,)),
        ste_w2=init(keys[3], (27,)),         # Conv3d(1,1,3x3x3) weight, flattened (kt,kh,kw)
        ste_b2=init(keys[4], (1,)),
        ca_w=init(keys[5], (R,)),            # Conv3d(1,R,1) weight
        ca_b=init(keys[6], (R,)),
        bn_scale=bn_scale,
        bn_shift=bn_shift,
        h_w=init(keys[7], (C * R,)),         # Conv3d(R,C,1) weight, flattened (c,r)
        h_b=init(keys[8], (C,)),
        w_w=init(keys[13], (C * R,)),
        w_b=init(keys[14], (C,)),
    )

    out = jax.jit(sts_attention)(x, params)
    out = jax.block_until_ready(out)
    ref = sts_attention_ref(x, params)

    assert out.shape == (B, C, T, H, W)
    assert out.dtype == x.dtype
    assert jnp.allclose(out, ref, atol=2e-3, rtol=2e-3), float(jnp.max(jnp.abs(out - ref)))
    print("KERNEL_OK")
</pallas_src>

<mosaic_0001>
module attributes {stable_mosaic.version = 11 : i64} {
  func.func @_sts_kernel(%arg0: i32, %arg1: memref<1x128x256xf32, #tpu.memory_space<vmem>>, %arg2: memref<16x128xf32, #tpu.memory_space<vmem>>, %arg3: memref<2x1x256xf32, #tpu.memory_space<vmem>>, %arg4: memref<256x16xf32, #tpu.memory_space<vmem>>, %arg5: memref<256x16xf32, #tpu.memory_space<vmem>>, %arg6: memref<16x1xf32, #tpu.memory_space<vmem>>, %arg7: memref<16x1xf32, #tpu.memory_space<vmem>>, %arg8: memref<128x16xf32, #tpu.memory_space<vmem>>, %arg9: memref<128x1xf32, #tpu.memory_space<vmem>>, %arg10: memref<128x16xf32, #tpu.memory_space<vmem>>, %arg11: memref<128x1xf32, #tpu.memory_space<vmem>>, %arg12: memref<16x256xf32, #tpu.memory_space<vmem>>, %arg13: memref<16x256xf32, #tpu.memory_space<vmem>>, %arg14: memref<27xf32, #tpu.memory_space<smem>>, %arg15: memref<1xf32, #tpu.memory_space<smem>>, %arg16: memref<1xf32, #tpu.memory_space<smem>>, %arg17: memref<1x128x256xf32, #tpu.memory_space<vmem>>) attributes {dimension_semantics = [#tpu.dimension_semantics<parallel>], iteration_bounds = array<i64: 2>, scalar_prefetch = 0 : i64, scratch_operands = 0 : i64, tpu.core_type = #tpu.core_type<tc>, window_params = [{transform_indices = @transform_0, window_bounds = array<i64: 1, 128, 256>}, {pipeline_mode = #tpu.pipeline_mode<synchronous>, transform_indices = @transform_1, window_bounds = array<i64: 16, 128>}, {pipeline_mode = #tpu.pipeline_mode<synchronous>, transform_indices = @transform_2, window_bounds = array<i64: 2, 1, 256>}, {pipeline_mode = #tpu.pipeline_mode<synchronous>, transform_indices = @transform_3, window_bounds = array<i64: 256, 16>}, {pipeline_mode = #tpu.pipeline_mode<synchronous>, transform_indices = @transform_4, window_bounds = array<i64: 256, 16>}, {pipeline_mode = #tpu.pipeline_mode<synchronous>, transform_indices = @transform_5, window_bounds = array<i64: 16, 1>}, {pipeline_mode = #tpu.pipeline_mode<synchronous>, transform_indices = @transform_6, window_bounds = array<i64: 16, 1>}, {pipeline_mode = #tpu.pipeline_mode<synchronous>, transform_indices = @transform_7, window_bounds = array<i64: 128, 16>}, {pipeline_mode = #tpu.pipeline_mode<synchronous>, transform_indices = @transform_8, window_bounds = array<i64: 128, 1>}, {pipeline_mode = #tpu.pipeline_mode<synchronous>, transform_indices = @transform_9, window_bounds = array<i64: 128, 16>}, {pipeline_mode = #tpu.pipeline_mode<synchronous>, transform_indices = @transform_10, window_bounds = array<i64: 128, 1>}, {pipeline_mode = #tpu.pipeline_mode<synchronous>, transform_indices = @transform_11, window_bounds = array<i64: 16, 256>}, {pipeline_mode = #tpu.pipeline_mode<synchronous>, transform_indices = @transform_12, window_bounds = array<i64: 16, 256>}, {transform_indices = @transform_13, window_bounds = array<i64: 27>}, {transform_indices = @transform_14, window_bounds = array<i64: 1>}, {transform_indices = @transform_15, window_bounds = array<i64: 1>}, {transform_indices = @transform_16, window_bounds = array<i64: 1, 128, 256>}]} {
    %c0 = arith.constant 0 : index
    %c0_0 = arith.constant 0 : index
    %c0_1 = arith.constant 0 : index
    %0 = vector.load %arg1[%c0, %c0_0, %c0_1] : memref<1x128x256xf32, #tpu.memory_space<vmem>>, vector<1x128x256xf32>
    %1 = vector.shape_cast %0 : vector<1x128x256xf32> to vector<128x256xf32>
    %c0_2 = arith.constant 0 : index
    %c0_3 = arith.constant 0 : index
    %2 = vector.load %arg2[%c0_2, %c0_3] : memref<16x128xf32, #tpu.memory_space<vmem>>, vector<16x128xf32>
    %cst = arith.constant dense<0.000000e+00> : vector<16x256xf32>
    %3 = tpu.matmul %2, %1, %cst {dimension_numbers = #tpu.dot_dimension_numbers<[1], [0], [0], [1], [0, 0, 1, 1], [], []>} : vector<16x128xf32>, vector<128x256xf32>, vector<16x256xf32> -> vector<16x256xf32>
    %4 = vector.extract_strided_slice %3 {offsets = [0, 0], sizes = [8, 256], strides = [1, 1]} : vector<16x256xf32> to vector<8x256xf32>
    %c0_4 = arith.constant 0 : index
    %5 = memref.load %arg15[%c0_4] : memref<1xf32, #tpu.memory_space<smem>>
    %6 = vector.broadcast %5 : f32 to vector<8x256xf32>
    %7 = arith.addf %4, %6 : vector<8x256xf32>
    %8 = vector.extract_strided_slice %3 {offsets = [8, 0], sizes = [8, 256], strides = [1, 1]} : vector<16x256xf32> to vector<8x256xf32>
    %c0_5 = arith.constant 0 : index
    %c0_6 = arith.constant 0 : index
    %c0_7 = arith.constant 0 : index
    %9 = vector.load %arg3[%c0_5, %c0_6, %c0_7] : memref<2x1x256xf32, #tpu.memory_space<vmem>>, vector<2x1x256xf32>
    %10 = vector.extract_strided_slice %9 {offsets = [0, 0, 0], sizes = [1, 1, 256], strides = [1, 1, 1]} : vector<2x1x256xf32> to vector<1x1x256xf32>
    %11 = vector.shape_cast %10 : vector<1x1x256xf32> to vector<1x256xf32>
    %12 = vector.broadcast %11 : vector<1x256xf32> to vector<8x256xf32>
    %13 = arith.mulf %7, %12 : vector<8x256xf32>
    %14 = vector.extract_strided_slice %9 {offsets = [1, 0, 0], sizes = [1, 1, 256], strides = [1, 1, 1]} : vector<2x1x256xf32> to vector<1x1x256xf32>
    %15 = vector.shape_cast %14 : vector<1x1x256xf32> to vector<1x256xf32>
    %16 = vector.broadcast %15 : vector<1x256xf32> to vector<8x256xf32>
    %17 = arith.mulf %7, %16 : vector<8x256xf32>
    %cst_8 = arith.constant 0.000000e+00 : f32
    %18 = vector.broadcast %cst_8 : f32 to vector<8x17xf32>
    %cst_9 = arith.constant 0.000000e+00 : f32
    %19 = vector.broadcast %cst_9 : f32 to vector<1x290xf32>
    %20 = tpu.concatenate %18, %13, %18 in 1 : vector<8x17xf32>, vector<8x256xf32>, vector<8x17xf32> -> vector<8x290xf32>
    %21 = tpu.concatenate %19, %20, %19 in 0 : vector<1x290xf32>, vector<8x290xf32>, vector<1x290xf32> -> vector<10x290xf32>
    %22 = tpu.concatenate %18, %7, %18 in 1 : vector<8x17xf32>, vector<8x256xf32>, vector<8x17xf32> -> vector<8x290xf32>
    %23 = tpu.concatenate %19, %22, %19 in 0 : vector<1x290xf32>, vector<8x290xf32>, vector<1x290xf32> -> vector<10x290xf32>
    %24 = tpu.concatenate %18, %17, %18 in 1 : vector<8x17xf32>, vector<8x256xf32>, vector<8x17xf32> -> vector<8x290xf32>
    %25 = tpu.concatenate %19, %24, %19 in 0 : vector<1x290xf32>, vector<8x290xf32>, vector<1x290xf32> -> vector<10x290xf32>
    %cst_10 = arith.constant 0.000000e+00 : f32
    %26 = vector.broadcast %cst_10 : f32 to vector<8x256xf32>
    %c0_11 = arith.constant 0 : index
    %27 = memref.load %arg16[%c0_11] : memref<1xf32, #tpu.memory_space<smem>>
    %28 = vector.broadcast %27 : f32 to vector<8x256xf32>
    %29 = arith.addf %26, %28 : vector<8x256xf32>
    %c0_12 = arith.constant 0 : index
    %30 = memref.load %arg14[%c0_12] : memref<27xf32, #tpu.memory_space<smem>>
    %31 = vector.extract_strided_slice %21 {offsets = [0, 0], sizes = [8, 256], strides = [1, 1]} : vector<10x290xf32> to vector<8x256xf32>
    %32 = vector.broadcast %30 : f32 to vector<8x256xf32>
    %33 = arith.mulf %32, %31 : vector<8x256xf32>
    %34 = arith.addf %29, %33 : vector<8x256xf32>
    %c3 = arith.constant 3 : index
    %35 = memref.load %arg14[%c3] : memref<27xf32, #tpu.memory_space<smem>>
    %36 = vector.extract_strided_slice %21 {offsets = [0, 16], sizes = [8, 256], strides = [1, 1]} : vector<10x290xf32> to vector<8x256xf32>
    %37 = vector.broadcast %35 : f32 to vector<8x256xf32>
    %38 = arith.mulf %37, %36 : vector<8x256xf32>
    %39 = arith.addf %34, %38 : vector<8x256xf32>
    %c6 = arith.constant 6 : index
    %40 = memref.load %arg14[%c6] : memref<27xf32, #tpu.memory_space<smem>>
    %41 = vector.extract_strided_slice %21 {offsets = [0, 32], sizes = [8, 256], strides = [1, 1]} : vector<10x290xf32> to vector<8x256xf32>
    %42 = vector.broadcast %40 : f32 to vector<8x256xf32>
    %43 = arith.mulf %42, %41 : vector<8x256xf32>
    %44 = arith.addf %39, %43 : vector<8x256xf32>
    %c9 = arith.constant 9 : index
    %45 = memref.load %arg14[%c9] : memref<27xf32, #tpu.memory_space<smem>>
    %46 = vector.extract_strided_slice %21 {offsets = [1, 0], sizes = [8, 256], strides = [1, 1]} : vector<10x290xf32> to vector<8x256xf32>
    %47 = vector.broadcast %45 : f32 to vector<8x256xf32>
    %48 = arith.mulf %47, %46 : vector<8x256xf32>
    %49 = arith.addf %44, %48 : vector<8x256xf32>
    %c12 = arith.constant 12 : index
    %50 = memref.load %arg14[%c12] : memref<27xf32, #tpu.memory_space<smem>>
    %51 = vector.extract_strided_slice %21 {offsets = [1, 16], sizes = [8, 256], strides = [1, 1]} : vector<10x290xf32> to vector<8x256xf32>
    %52 = vector.broadcast %50 : f32 to vector<8x256xf32>
    %53 = arith.mulf %52, %51 : vector<8x256xf32>
    %54 = arith.addf %49, %53 : vector<8x256xf32>
    %c15 = arith.constant 15 : index
    %55 = memref.load %arg14[%c15] : memref<27xf32, #tpu.memory_space<smem>>
    %56 = vector.extract_strided_slice %21 {offsets = [1, 32], sizes = [8, 256], strides = [1, 1]} : vector<10x290xf32> to vector<8x256xf32>
    %57 = vector.broadcast %55 : f32 to vector<8x256xf32>
    %58 = arith.mulf %57, %56 : vector<8x256xf32>
    %59 = arith.addf %54, %58 : vector<8x256xf32>
    %c18 = arith.constant 18 : index
    %60 = memref.load %arg14[%c18] : memref<27xf32, #tpu.memory_space<smem>>
    %61 = vector.extract_strided_slice %21 {offsets = [2, 0], sizes = [8, 256], strides = [1, 1]} : vector<10x290xf32> to vector<8x256xf32>
    %62 = vector.broadcast %60 : f32 to vector<8x256xf32>
    %63 = arith.mulf %62, %61 : vector<8x256xf32>
    %64 = arith.addf %59, %63 : vector<8x256xf32>
    %c21 = arith.constant 21 : index
    %65 = memref.load %arg14[%c21] : memref<27xf32, #tpu.memory_space<smem>>
    %66 = vector.extract_strided_slice %21 {offsets = [2, 16], sizes = [8, 256], strides = [1, 1]} : vector<10x290xf32> to vector<8x256xf32>
    %67 = vector.broadcast %65 : f32 to vector<8x256xf32>
    %68 = arith.mulf %67, %66 : vector<8x256xf32>
    %69 = arith.addf %64, %68 : vector<8x256xf32>
    %c24 = arith.constant 24 : index
    %70 = memref.load %arg14[%c24] : memref<27xf32, #tpu.memory_space<smem>>
    %71 = vector.extract_strided_slice %21 {offsets = [2, 32], sizes = [8, 256], strides = [1, 1]} : vector<10x290xf32> to vector<8x256xf32>
    %72 = vector.broadcast %70 : f32 to vector<8x256xf32>
    %73 = arith.mulf %72, %71 : vector<8x256xf32>
    %74 = arith.addf %69, %73 : vector<8x256xf32>
    %c1 = arith.constant 1 : index
    %75 = memref.load %arg14[%c1] : memref<27xf32, #tpu.memory_space<smem>>
    %76 = vector.extract_strided_slice %23 {offsets = [0, 1], sizes = [8, 256], strides = [1, 1]} : vector<10x290xf32> to vector<8x256xf32>
    %77 = vector.broadcast %75 : f32 to vector<8x256xf32>
    %78 = arith.mulf %77, %76 : vector<8x256xf32>
    %79 = arith.addf %74, %78 : vector<8x256xf32>
    %c4 = arith.constant 4 : index
    %80 = memref.load %arg14[%c4] : memref<27xf32, #tpu.memory_space<smem>>
    %81 = vector.extract_strided_slice %23 {offsets = [0, 17], sizes = [8, 256], strides = [1, 1]} : vector<10x290xf32> to vector<8x256xf32>
    %82 = vector.broadcast %80 : f32 to vector<8x256xf32>
    %83 = arith.mulf %82, %81 : vector<8x256xf32>
    %84 = arith.addf %79, %83 : vector<8x256xf32>
    %c7 = arith.constant 7 : index
    %85 = memref.load %arg14[%c7] : memref<27xf32, #tpu.memory_space<smem>>
    %86 = vector.extract_strided_slice %23 {offsets = [0, 33], sizes = [8, 256], strides = [1, 1]} : vector<10x290xf32> to vector<8x256xf32>
    %87 = vector.broadcast %85 : f32 to vector<8x256xf32>
    %88 = arith.mulf %87, %86 : vector<8x256xf32>
    %89 = arith.addf %84, %88 : vector<8x256xf32>
    %c10 = arith.constant 10 : index
    %90 = memref.load %arg14[%c10] : memref<27xf32, #tpu.memory_space<smem>>
    %91 = vector.extract_strided_slice %23 {offsets = [1, 1], sizes = [8, 256], strides = [1, 1]} : vector<10x290xf32> to vector<8x256xf32>
    %92 = vector.broadcast %90 : f32 to vector<8x256xf32>
    %93 = arith.mulf %92, %91 : vector<8x256xf32>
    %94 = arith.addf %89, %93 : vector<8x256xf32>
    %c13 = arith.constant 13 : index
    %95 = memref.load %arg14[%c13] : memref<27xf32, #tpu.memory_space<smem>>
    %96 = vector.extract_strided_slice %23 {offsets = [1, 17], sizes = [8, 256], strides = [1, 1]} : vector<10x290xf32> to vector<8x256xf32>
    %97 = vector.broadcast %95 : f32 to vector<8x256xf32>
    %98 = arith.mulf %97, %96 : vector<8x256xf32>
    %99 = arith.addf %94, %98 : vector<8x256xf32>
    %c16 = arith.constant 16 : index
    %100 = memref.load %arg14[%c16] : memref<27xf32, #tpu.memory_space<smem>>
    %101 = vector.extract_strided_slice %23 {offsets = [1, 33], sizes = [8, 256], strides = [1, 1]} : vector<10x290xf32> to vector<8x256xf32>
    %102 = vector.broadcast %100 : f32 to vector<8x256xf32>
    %103 = arith.mulf %102, %101 : vector<8x256xf32>
    %104 = arith.addf %99, %103 : vector<8x256xf32>
    %c19 = arith.constant 19 : index
    %105 = memref.load %arg14[%c19] : memref<27xf32, #tpu.memory_space<smem>>
    %106 = vector.extract_strided_slice %23 {offsets = [2, 1], sizes = [8, 256], strides = [1, 1]} : vector<10x290xf32> to vector<8x256xf32>
    %107 = vector.broadcast %105 : f32 to vector<8x256xf32>
    %108 = arith.mulf %107, %106 : vector<8x256xf32>
    %109 = arith.addf %104, %108 : vector<8x256xf32>
    %c22 = arith.constant 22 : index
    %110 = memref.load %arg14[%c22] : memref<27xf32, #tpu.memory_space<smem>>
    %111 = vector.extract_strided_slice %23 {offsets = [2, 17], sizes = [8, 256], strides = [1, 1]} : vector<10x290xf32> to vector<8x256xf32>
    %112 = vector.broadcast %110 : f32 to vector<8x256xf32>
    %113 = arith.mulf %112, %111 : vector<8x256xf32>
    %114 = arith.addf %109, %113 : vector<8x256xf32>
    %c25 = arith.constant 25 : index
    %115 = memref.load %arg14[%c25] : memref<27xf32, #tpu.memory_space<smem>>
    %116 = vector.extract_strided_slice %23 {offsets = [2, 33], sizes = [8, 256], strides = [1, 1]} : vector<10x290xf32> to vector<8x256xf32>
    %117 = vector.broadcast %115 : f32 to vector<8x256xf32>
    %118 = arith.mulf %117, %116 : vector<8x256xf32>
    %119 = arith.addf %114, %118 : vector<8x256xf32>
    %c2 = arith.constant 2 : index
    %120 = memref.load %arg14[%c2] : memref<27xf32, #tpu.memory_space<smem>>
    %121 = vector.extract_strided_slice %25 {offsets = [0, 2], sizes = [8, 256], strides = [1, 1]} : vector<10x290xf32> to vector<8x256xf32>
    %122 = vector.broadcast %120 : f32 to vector<8x256xf32>
    %123 = arith.mulf %122, %121 : vector<8x256xf32>
    %124 = arith.addf %119, %123 : vector<8x256xf32>
    %c5 = arith.constant 5 : index
    %125 = memref.load %arg14[%c5] : memref<27xf32, #tpu.memory_space<smem>>
    %126 = vector.extract_strided_slice %25 {offsets = [0, 18], sizes = [8, 256], strides = [1, 1]} : vector<10x290xf32> to vector<8x256xf32>
    %127 = vector.broadcast %125 : f32 to vector<8x256xf32>
    %128 = arith.mulf %127, %126 : vector<8x256xf32>
    %129 = arith.addf %124, %128 : vector<8x256xf32>
    %c8 = arith.constant 8 : index
    %130 = memref.load %arg14[%c8] : memref<27xf32, #tpu.memory_space<smem>>
    %131 = vector.extract_strided_slice %25 {offsets = [0, 34], sizes = [8, 256], strides = [1, 1]} : vector<10x290xf32> to vector<8x256xf32>
    %132 = vector.broadcast %130 : f32 to vector<8x256xf32>
    %133 = arith.mulf %132, %131 : vector<8x256xf32>
    %134 = arith.addf %129, %133 : vector<8x256xf32>
    %c11 = arith.constant 11 : index
    %135 = memref.load %arg14[%c11] : memref<27xf32, #tpu.memory_space<smem>>
    %136 = vector.extract_strided_slice %25 {offsets = [1, 2], sizes = [8, 256], strides = [1, 1]} : vector<10x290xf32> to vector<8x256xf32>
    %137 = vector.broadcast %135 : f32 to vector<8x256xf32>
    %138 = arith.mulf %137, %136 : vector<8x256xf32>
    %139 = arith.addf %134, %138 : vector<8x256xf32>
    %c14 = arith.constant 14 : index
    %140 = memref.load %arg14[%c14] : memref<27xf32, #tpu.memory_space<smem>>
    %141 = vector.extract_strided_slice %25 {offsets = [1, 18], sizes = [8, 256], strides = [1, 1]} : vector<10x290xf32> to vector<8x256xf32>
    %142 = vector.broadcast %140 : f32 to vector<8x256xf32>
    %143 = arith.mulf %142, %141 : vector<8x256xf32>
    %144 = arith.addf %139, %143 : vector<8x256xf32>
    %c17 = arith.constant 17 : index
    %145 = memref.load %arg14[%c17] : memref<27xf32, #tpu.memory_space<smem>>
    %146 = vector.extract_strided_slice %25 {offsets = [1, 34], sizes = [8, 256], strides = [1, 1]} : vector<10x290xf32> to vector<8x256xf32>
    %147 = vector.broadcast %145 : f32 to vector<8x256xf32>
    %148 = arith.mulf %147, %146 : vector<8x256xf32>
    %149 = arith.addf %144, %148 : vector<8x256xf32>
    %c20 = arith.constant 20 : index
    %150 = memref.load %arg14[%c20] : memref<27xf32, #tpu.memory_space<smem>>
    %151 = vector.extract_strided_slice %25 {offsets = [2, 2], sizes = [8, 256], strides = [1, 1]} : vector<10x290xf32> to vector<8x256xf32>
    %152 = vector.broadcast %150 : f32 to vector<8x256xf32>
    %153 = arith.mulf %152, %151 : vector<8x256xf32>
    %154 = arith.addf %149, %153 : vector<8x256xf32>
    %c23 = arith.constant 23 : index
    %155 = memref.load %arg14[%c23] : memref<27xf32, #tpu.memory_space<smem>>
    %156 = vector.extract_strided_slice %25 {offsets = [2, 18], sizes = [8, 256], strides = [1, 1]} : vector<10x290xf32> to vector<8x256xf32>
    %157 = vector.broadcast %155 : f32 to vector<8x256xf32>
    %158 = arith.mulf %157, %156 : vector<8x256xf32>
    %159 = arith.addf %154, %158 : vector<8x256xf32>
    %c26 = arith.constant 26 : index
    %160 = memref.load %arg14[%c26] : memref<27xf32, #tpu.memory_space<smem>>
    %161 = vector.extract_strided_slice %25 {offsets = [2, 34], sizes = [8, 256], strides = [1, 1]} : vector<10x290xf32> to vector<8x256xf32>
    %162 = vector.broadcast %160 : f32 to vector<8x256xf32>
    %163 = arith.mulf %162, %161 : vector<8x256xf32>
    %164 = arith.addf %159, %163 : vector<8x256xf32>
    %165 = arith.negf %164 : vector<8x256xf32>
    %166 = math.exp %165 : vector<8x256xf32>
    %cst_13 = arith.constant 1.000000e+00 : f32
    %167 = vector.broadcast %cst_13 : f32 to vector<8x256xf32>
    %168 = arith.addf %167, %166 : vector<8x256xf32>
    %169 = arith.divf %167, %168 : vector<8x256xf32>
    %c0_14 = arith.constant 0 : index
    %c0_15 = arith.constant 0 : index
    %170 = vector.load %arg4[%c0_14, %c0_15] : memref<256x16xf32, #tpu.memory_space<vmem>>, vector<256x16xf32>
    %cst_16 = arith.constant dense<0.000000e+00> : vector<8x16xf32>
    %171 = tpu.matmul %8, %170, %cst_16 {dimension_numbers = #tpu.dot_dimension_numbers<[1], [0], [0], [1], [0, 0, 1, 1], [], []>} : vector<8x256xf32>, vector<256x16xf32>, vector<8x16xf32> -> vector<8x16xf32>
    %c0_17 = arith.constant 0 : index
    %c0_18 = arith.constant 0 : index
    %172 = vector.load %arg5[%c0_17, %c0_18] : memref<256x16xf32, #tpu.memory_space<vmem>>, vector<256x16xf32>
    %cst_19 = arith.constant dense<0.000000e+00> : vector<8x16xf32>
    %173 = tpu.matmul %8, %172, %cst_19 {dimension_numbers = #tpu.dot_dimension_numbers<[1], [0], [0], [1], [0, 0, 1, 1], [], []>} : vector<8x256xf32>, vector<256x16xf32>, vector<8x16xf32> -> vector<8x16xf32>
    %174 = tpu.concatenate %171, %171 in 0 : vector<8x16xf32>, vector<8x16xf32> -> vector<16x16xf32>
    %175 = tpu.concatenate %173, %173 in 0 : vector<8x16xf32>, vector<8x16xf32> -> vector<16x16xf32>
    %c0_20 = arith.constant 0 : index
    %c0_21 = arith.constant 0 : index
    %176 = vector.load %arg6[%c0_20, %c0_21] : memref<16x1xf32, #tpu.memory_space<vmem>>, vector<16x1xf32>
    %177 = vector.broadcast %176 : vector<16x1xf32> to vector<16x16xf32>
    %178 = arith.mulf %177, %174 : vector<16x16xf32>
    %c0_22 = arith.constant 0 : index
    %c0_23 = arith.constant 0 : index
    %179 = vector.load %arg7[%c0_22, %c0_23] : memref<16x1xf32, #tpu.memory_space<vmem>>, vector<16x1xf32>
    %180 = vector.broadcast %179 : vector<16x1xf32> to vector<16x16xf32>
    %181 = arith.addf %178, %180 : vector<16x16xf32>
    %cst_24 = arith.constant 0.000000e+00 : f32
    %182 = vector.broadcast %cst_24 : f32 to vector<16x16xf32>
    %183 = arith.maximumf %181, %182 : vector<16x16xf32>
    %c0_25 = arith.constant 0 : index
    %c0_26 = arith.constant 0 : index
    %184 = vector.load %arg6[%c0_25, %c0_26] : memref<16x1xf32, #tpu.memory_space<vmem>>, vector<16x1xf32>
    %185 = vector.broadcast %184 : vector<16x1xf32> to vector<16x16xf32>
    %186 = arith.mulf %185, %175 : vector<16x16xf32>
    %c0_27 = arith.constant 0 : index
    %c0_28 = arith.constant 0 : index
    %187 = vector.load %arg7[%c0_27, %c0_28] : memref<16x1xf32, #tpu.memory_space<vmem>>, vector<16x1xf32>
    %188 = vector.broadcast %187 : vector<16x1xf32> to vector<16x16xf32>
    %189 = arith.addf %186, %188 : vector<16x16xf32>
    %cst_29 = arith.constant 0.000000e+00 : f32
    %190 = vector.broadcast %cst_29 : f32 to vector<16x16xf32>
    %191 = arith.maximumf %189, %190 : vector<16x16xf32>
    %c0_30 = arith.constant 0 : index
    %c0_31 = arith.constant 0 : index
    %192 = vector.load %arg8[%c0_30, %c0_31] : memref<128x16xf32, #tpu.memory_space<vmem>>, vector<128x16xf32>
    %cst_32 = arith.constant dense<0.000000e+00> : vector<128x16xf32>
    %193 = tpu.matmul %192, %183, %cst_32 {dimension_numbers = #tpu.dot_dimension_numbers<[1], [0], [0], [1], [0, 0, 1, 1], [], []>} : vector<128x16xf32>, vector<16x16xf32>, vector<128x16xf32> -> vector<128x16xf32>
    %c0_33 = arith.constant 0 : index
    %c0_34 = arith.constant 0 : index
    %194 = vector.load %arg9[%c0_33, %c0_34] : memref<128x1xf32, #tpu.memory_space<vmem>>, vector<128x1xf32>
    %195 = vector.broadcast %194 : vector<128x1xf32> to vector<128x16xf32>
    %196 = arith.addf %193, %195 : vector<128x16xf32>
    %197 = arith.negf %196 : vector<128x16xf32>
    %198 = math.exp %197 : vector<128x16xf32>
    %cst_35 = arith.constant 1.000000e+00 : f32
    %199 = vector.broadcast %cst_35 : f32 to vector<128x16xf32>
    %200 = arith.addf %199, %198 : vector<128x16xf32>
    %201 = arith.divf %199, %200 : vector<128x16xf32>
    %c0_36 = arith.constant 0 : index
    %c0_37 = arith.constant 0 : index
    %202 = vector.load %arg10[%c0_36, %c0_37] : memref<128x16xf32, #tpu.memory_space<vmem>>, vector<128x16xf32>
    %cst_38 = arith.constant dense<0.000000e+00> : vector<128x16xf32>
    %203 = tpu.matmul %202, %191, %cst_38 {dimension_numbers = #tpu.dot_dimension_numbers<[1], [0], [0], [1], [0, 0, 1, 1], [], []>} : vector<128x16xf32>, vector<16x16xf32>, vector<128x16xf32> -> vector<128x16xf32>
    %c0_39 = arith.constant 0 : index
    %c0_40 = arith.constant 0 : index
    %204 = vector.load %arg11[%c0_39, %c0_40] : memref<128x1xf32, #tpu.memory_space<vmem>>, vector<128x1xf32>
    %205 = vector.broadcast %204 : vector<128x1xf32> to vector<128x16xf32>
    %206 = arith.addf %203, %205 : vector<128x16xf32>
    %207 = arith.negf %206 : vector<128x16xf32>
    %208 = math.exp %207 : vector<128x16xf32>
    %cst_41 = arith.constant 1.000000e+00 : f32
    %209 = vector.broadcast %cst_41 : f32 to vector<128x16xf32>
    %210 = arith.addf %209, %208 : vector<128x16xf32>
    %211 = arith.divf %209, %210 : vector<128x16xf32>
    %c0_42 = arith.constant 0 : index
    %c0_43 = arith.constant 0 : index
    %212 = vector.load %arg12[%c0_42, %c0_43] : memref<16x256xf32, #tpu.memory_space<vmem>>, vector<16x256xf32>
    %cst_44 = arith.constant dense<0.000000e+00> : vector<128x256xf32>
    %213 = tpu.matmul %201, %212, %cst_44 {dimension_numbers = #tpu.dot_dimension_numbers<[1], [0], [0], [1], [0, 0, 1, 1], [], []>} : vector<128x16xf32>, vector<16x256xf32>, vector<128x256xf32> -> vector<128x256xf32>
    %c0_45 = arith.constant 0 : index
    %c0_46 = arith.constant 0 : index
    %214 = vector.load %arg13[%c0_45, %c0_46] : memref<16x256xf32, #tpu.memory_space<vmem>>, vector<16x256xf32>
    %cst_47 = arith.constant dense<0.000000e+00> : vector<128x256xf32>
    %215 = tpu.matmul %211, %214, %cst_47 {dimension_numbers = #tpu.dot_dimension_numbers<[1], [0], [0], [1], [0, 0, 1, 1], [], []>} : vector<128x16xf32>, vector<16x256xf32>, vector<128x256xf32> -> vector<128x256xf32>
    %c0_48 = arith.constant 0 : index
    %c0_49 = arith.constant 0 : index
    %c0_50 = arith.constant 0 : index
    %216 = vector.load %arg1[%c0_48, %c0_49, %c0_50] : memref<1x128x256xf32, #tpu.memory_space<vmem>>, vector<1x8x256xf32>
    %217 = vector.shape_cast %216 : vector<1x8x256xf32> to vector<8x256xf32>
    %218 = arith.mulf %217, %169 : vector<8x256xf32>
    %219 = vector.extract_strided_slice %213 {offsets = [0, 0], sizes = [8, 256], strides = [1, 1]} : vector<128x256xf32> to vector<8x256xf32>
    %220 = arith.mulf %218, %219 : vector<8x256xf32>
    %221 = vector.extract_strided_slice %215 {offsets = [0, 0], sizes = [8, 256], strides = [1, 1]} : vector<128x256xf32> to vector<8x256xf32>
    %222 = arith.mulf %220, %221 : vector<8x256xf32>
    %c0_51 = arith.constant 0 : index
    %c0_52 = arith.constant 0 : index
    %c0_53 = arith.constant 0 : index
    %223 = vector.load %arg17[%c0_51, %c0_52, %c0_53] : memref<1x128x256xf32, #tpu.memory_space<vmem>>, vector<1x8x256xf32>
    %224 = vector.shape_cast %223 : vector<1x8x256xf32> to vector<8x256xf32>
    %225 = vector.shape_cast %222 : vector<8x256xf32> to vector<1x8x256xf32>
    tpu.vector_store %arg17[%c0_51, %c0_52, %c0_53], %225 {strides = array<i32>} : memref<1x128x256xf32, #tpu.memory_space<vmem>>, vector<1x8x256xf32>,
    %c0_54 = arith.constant 0 : index
    %c8_55 = arith.constant 8 : index
    %c0_56 = arith.constant 0 : index
    %226 = vector.load %arg1[%c0_54, %c8_55, %c0_56] : memref<1x128x256xf32, #tpu.memory_space<vmem>>, vector<1x8x256xf32>
    %227 = vector.shape_cast %226 : vector<1x8x256xf32> to vector<8x256xf32>
    %228 = arith.mulf %227, %169 : vector<8x256xf32>
    %229 = vector.extract_strided_slice %213 {offsets = [8, 0], sizes = [8, 256], strides = [1, 1]} : vector<128x256xf32> to vector<8x256xf32>
    %230 = arith.mulf %228, %229 : vector<8x256xf32>
    %231 = vector.extract_strided_slice %215 {offsets = [8, 0], sizes = [8, 256], strides = [1, 1]} : vector<128x256xf32> to vector<8x256xf32>
    %232 = arith.mulf %230, %231 : vector<8x256xf32>
    %c0_57 = arith.constant 0 : index
    %c8_58 = arith.constant 8 : index
    %c0_59 = arith.constant 0 : index
    %233 = vector.load %arg17[%c0_57, %c8_58, %c0_59] : memref<1x128x256xf32, #tpu.memory_space<vmem>>, vector<1x8x256xf32>
    %234 = vector.shape_cast %233 : vector<1x8x256xf32> to vector<8x256xf32>
    %235 = vector.shape_cast %232 : vector<8x256xf32> to vector<1x8x256xf32>
    tpu.vector_store %arg17[%c0_57, %c8_58, %c0_59], %235 {strides = array<i32>} : memref<1x128x256xf32, #tpu.memory_space<vmem>>, vector<1x8x256xf32>,
    %c0_60 = arith.constant 0 : index
    %c16_61 = arith.constant 16 : index
    %c0_62 = arith.constant 0 : index
    %236 = vector.load %arg1[%c0_60, %c16_61, %c0_62] : memref<1x128x256xf32, #tpu.memory_space<vmem>>, vector<1x8x256xf32>
    %237 = vector.shape_cast %236 : vector<1x8x256xf32> to vector<8x256xf32>
    %238 = arith.mulf %237, %169 : vector<8x256xf32>
    %239 = vector.extract_strided_slice %213 {offsets = [16, 0], sizes = [8, 256], strides = [1, 1]} : vector<128x256xf32> to vector<8x256xf32>
    %240 = arith.mulf %238, %239 : vector<8x256xf32>
    %241 = vector.extract_strided_slice %215 {offsets = [16, 0], sizes = [8, 256], strides = [1, 1]} : vector<128x256xf32> to vector<8x256xf32>
    %242 = arith.mulf %240, %241 : vector<8x256xf32>
    %c0_63 = arith.constant 0 : index
    %c16_64 = arith.constant 16 : index
    %c0_65 = arith.constant 0 : index
    %243 = vector.load %arg17[%c0_63, %c16_64, %c0_65] : memref<1x128x256xf32, #tpu.memory_space<vmem>>, vector<1x8x256xf32>
    %244 = vector.shape_cast %243 : vector<1x8x256xf32> to vector<8x256xf32>
    %245 = vector.shape_cast %242 : vector<8x256xf32> to vector<1x8x256xf32>
    tpu.vector_store %arg17[%c0_63, %c16_64, %c0_65], %245 {strides = array<i32>} : memref<1x128x256xf32, #tpu.memory_space<vmem>>, vector<1x8x256xf32>,
    %c0_66 = arith.constant 0 : index
    %c24_67 = arith.constant 24 : index
    %c0_68 = arith.constant 0 : index
    %246 = vector.load %arg1[%c0_66, %c24_67, %c0_68] : memref<1x128x256xf32, #tpu.memory_space<vmem>>, vector<1x8x256xf32>
    %247 = vector.shape_cast %246 : vector<1x8x256xf32> to vector<8x256xf32>
    %248 = arith.mulf %247, %169 : vector<8x256xf32>
    %249 = vector.extract_strided_slice %213 {offsets = [24, 0], sizes = [8, 256], strides = [1, 1]} : vector<128x256xf32> to vector<8x256xf32>
    %250 = arith.mulf %248, %249 : vector<8x256xf32>
    %251 = vector.extract_strided_slice %215 {offsets = [24, 0], sizes = [8, 256], strides = [1, 1]} : vector<128x256xf32> to vector<8x256xf32>
    %252 = arith.mulf %250, %251 : vector<8x256xf32>
    %c0_69 = arith.constant 0 : index
    %c24_70 = arith.constant 24 : index
    %c0_71 = arith.constant 0 : index
    %253 = vector.load %arg17[%c0_69, %c24_70, %c0_71] : memref<1x128x256xf32, #tpu.memory_space<vmem>>, vector<1x8x256xf32>
    %254 = vector.shape_cast %253 : vector<1x8x256xf32> to vector<8x256xf32>
    %255 = vector.shape_cast %252 : vector<8x256xf32> to vector<1x8x256xf32>
    tpu.vector_store %arg17[%c0_69, %c24_70, %c0_71], %255 {strides = array<i32>} : memref<1x128x256xf32, #tpu.memory_space<vmem>>, vector<1x8x256xf32>,
    %c0_72 = arith.constant 0 : index
    %c32 = arith.constant 32 : index
    %c0_73 = arith.constant 0 : index
    %256 = vector.load %arg1[%c0_72, %c32, %c0_73] : memref<1x128x256xf32, #tpu.memory_space<vmem>>, vector<1x8x256xf32>
    %257 = vector.shape_cast %256 : vector<1x8x256xf32> to vector<8x256xf32>
    %258 = arith.mulf %257, %169 : vector<8x256xf32>
    %259 = vector.extract_strided_slice %213 {offsets = [32, 0], sizes = [8, 256], strides = [1, 1]} : vector<128x256xf32> to vector<8x256xf32>
    %260 = arith.mulf %258, %259 : vector<8x256xf32>
    %261 = vector.extract_strided_slice %215 {offsets = [32, 0], sizes = [8, 256], strides = [1, 1]} : vector<128x256xf32> to vector<8x256xf32>
    %262 = arith.mulf %260, %261 : vector<8x256xf32>
    %c0_74 = arith.constant 0 : index
    %c32_75 = arith.constant 32 : index
    %c0_76 = arith.constant 0 : index
    %263 = vector.load %arg17[%c0_74, %c32_75, %c0_76] : memref<1x128x256xf32, #tpu.memory_space<vmem>>, vector<1x8x256xf32>
    %264 = vector.shape_cast %263 : vector<1x8x256xf32> to vector<8x256xf32>
    %265 = vector.shape_cast %262 : vector<8x256xf32> to vector<1x8x256xf32>
    tpu.vector_store %arg17[%c0_74, %c32_75, %c0_76], %265 {strides = array<i32>} : memref<1x128x256xf32, #tpu.memory_space<vmem>>, vector<1x8x256xf32>,
    %c0_77 = arith.constant 0 : index
    %c40 = arith.constant 40 : index
    %c0_78 = arith.constant 0 : index
    %266 = vector.load %arg1[%c0_77, %c40, %c0_78] : memref<1x128x256xf32, #tpu.memory_space<vmem>>, vector<1x8x256xf32>
    %267 = vector.shape_cast %266 : vector<1x8x256xf32> to vector<8x256xf32>
    %268 = arith.mulf %267, %169 : vector<8x256xf32>
    %269 = vector.extract_strided_slice %213 {offsets = [40, 0], sizes = [8, 256], strides = [1, 1]} : vector<128x256xf32> to vector<8x256xf32>
    %270 = arith.mulf %268, %269 : vector<8x256xf32>
    %271 = vector.extract_strided_slice %215 {offsets = [40, 0], sizes = [8, 256], strides = [1, 1]} : vector<128x256xf32> to vector<8x256xf32>
    %272 = arith.mulf %270, %271 : vector<8x256xf32>
    %c0_79 = arith.constant 0 : index
    %c40_80 = arith.constant 40 : index
    %c0_81 = arith.constant 0 : index
    %273 = vector.load %arg17[%c0_79, %c40_80, %c0_81] : memref<1x128x256xf32, #tpu.memory_space<vmem>>, vector<1x8x256xf32>
    %274 = vector.shape_cast %273 : vector<1x8x256xf32> to vector<8x256xf32>
    %275 = vector.shape_cast %272 : vector<8x256xf32> to vector<1x8x256xf32>
    tpu.vector_store %arg17[%c0_79, %c40_80, %c0_81], %275 {strides = array<i32>} : memref<1x128x256xf32, #tpu.memory_space<vmem>>, vector<1x8x256xf32>,
    %c0_82 = arith.constant 0 : index
    %c48 = arith.constant 48 : index
    %c0_83 = arith.constant 0 : index
    %276 = vector.load %arg1[%c0_82, %c48, %c0_83] : memref<1x128x256xf32, #tpu.memory_space<vmem>>, vector<1x8x256xf32>
    %277 = vector.shape_cast %276 : vector<1x8x256xf32> to vector<8x256xf32>
    %278 = arith.mulf %277, %169 : vector<8x256xf32>
    %279 = vector.extract_strided_slice %213 {offsets = [48, 0], sizes = [8, 256], strides = [1, 1]} : vector<128x256xf32> to vector<8x256xf32>
    %280 = arith.mulf %278, %279 : vector<8x256xf32>
    %281 = vector.extract_strided_slice %215 {offsets = [48, 0], sizes = [8, 256], strides = [1, 1]} : vector<128x256xf32> to vector<8x256xf32>
    %282 = arith.mulf %280, %281 : vector<8x256xf32>
    %c0_84 = arith.constant 0 : index
    %c48_85 = arith.constant 48 : index
    %c0_86 = arith.constant 0 : index
    %283 = vector.load %arg17[%c0_84, %c48_85, %c0_86] : memref<1x128x256xf32, #tpu.memory_space<vmem>>, vector<1x8x256xf32>
    %284 = vector.shape_cast %283 : vector<1x8x256xf32> to vector<8x256xf32>
    %285 = vector.shape_cast %282 : vector<8x256xf32> to vector<1x8x256xf32>
    tpu.vector_store %arg17[%c0_84, %c48_85, %c0_86], %285 {strides = array<i32>} : memref<1x128x256xf32, #tpu.memory_space<vmem>>, vector<1x8x256xf32>,
    %c0_87 = arith.constant 0 : index
    %c56 = arith.constant 56 : index
    %c0_88 = arith.constant 0 : index
    %286 = vector.load %arg1[%c0_87, %c56, %c0_88] : memref<1x128x256xf32, #tpu.memory_space<vmem>>, vector<1x8x256xf32>
    %287 = vector.shape_cast %286 : vector<1x8x256xf32> to vector<8x256xf32>
    %288 = arith.mulf %287, %169 : vector<8x256xf32>
    %289 = vector.extract_strided_slice %213 {offsets = [56, 0], sizes = [8, 256], strides = [1, 1]} : vector<128x256xf32> to vector<8x256xf32>
    %290 = arith.mulf %288, %289 : vector<8x256xf32>
    %291 = vector.extract_strided_slice %215 {offsets = [56, 0], sizes = [8, 256], strides = [1, 1]} : vector<128x256xf32> to vector<8x256xf32>
    %292 = arith.mulf %290, %291 : vector<8x256xf32>
    %c0_89 = arith.constant 0 : index
    %c56_90 = arith.constant 56 : index
    %c0_91 = arith.constant 0 : index
    %293 = vector.load %arg17[%c0_89, %c56_90, %c0_91] : memref<1x128x256xf32, #tpu.memory_space<vmem>>, vector<1x8x256xf32>
    %294 = vector.shape_cast %293 : vector<1x8x256xf32> to vector<8x256xf32>
    %295 = vector.shape_cast %292 : vector<8x256xf32> to vector<1x8x256xf32>
    tpu.vector_store %arg17[%c0_89, %c56_90, %c0_91], %295 {strides = array<i32>} : memref<1x128x256xf32, #tpu.memory_space<vmem>>, vector<1x8x256xf32>,
    %c0_92 = arith.constant 0 : index
    %c64 = arith.constant 64 : index
    %c0_93 = arith.constant 0 : index
    %296 = vector.load %arg1[%c0_92, %c64, %c0_93] : memref<1x128x256xf32, #tpu.memory_space<vmem>>, vector<1x8x256xf32>
    %297 = vector.shape_cast %296 : vector<1x8x256xf32> to vector<8x256xf32>
    %298 = arith.mulf %297, %169 : vector<8x256xf32>
    %299 = vector.extract_strided_slice %213 {offsets = [64, 0], sizes = [8, 256], strides = [1, 1]} : vector<128x256xf32> to vector<8x256xf32>
    %300 = arith.mulf %298, %299 : vector<8x256xf32>
    %301 = vector.extract_strided_slice %215 {offsets = [64, 0], sizes = [8, 256], strides = [1, 1]} : vector<128x256xf32> to vector<8x256xf32>
    %302 = arith.mulf %300, %301 : vector<8x256xf32>
    %c0_94 = arith.constant 0 : index
    %c64_95 = arith.constant 64 : index
    %c0_96 = arith.constant 0 : index
    %303 = vector.load %arg17[%c0_94, %c64_95, %c0_96] : memref<1x128x256xf32, #tpu.memory_space<vmem>>, vector<1x8x256xf32>
    %304 = vector.shape_cast %303 : vector<1x8x256xf32> to vector<8x256xf32>
    %305 = vector.shape_cast %302 : vector<8x256xf32> to vector<1x8x256xf32>
    tpu.vector_store %arg17[%c0_94, %c64_95, %c0_96], %305 {strides = array<i32>} : memref<1x128x256xf32, #tpu.memory_space<vmem>>, vector<1x8x256xf32>,
    %c0_97 = arith.constant 0 : index
    %c72 = arith.constant 72 : index
    %c0_98 = arith.constant 0 : index
    %306 = vector.load %arg1[%c0_97, %c72, %c0_98] : memref<1x128x256xf32, #tpu.memory_space<vmem>>, vector<1x8x256xf32>
    %307 = vector.shape_cast %306 : vector<1x8x256xf32> to vector<8x256xf32>
    %308 = arith.mulf %307, %169 : vector<8x256xf32>
    %309 = vector.extract_strided_slice %213 {offsets = [72, 0], sizes = [8, 256], strides = [1, 1]} : vector<128x256xf32> to vector<8x256xf32>
    %310 = arith.mulf %308, %309 : vector<8x256xf32>
    %311 = vector.extract_strided_slice %215 {offsets = [72, 0], sizes = [8, 256], strides = [1, 1]} : vector<128x256xf32> to vector<8x256xf32>
    %312 = arith.mulf %310, %311 : vector<8x256xf32>
    %c0_99 = arith.constant 0 : index
    %c72_100 = arith.constant 72 : index
    %c0_101 = arith.constant 0 : index
    %313 = vector.load %arg17[%c0_99, %c72_100, %c0_101] : memref<1x128x256xf32, #tpu.memory_space<vmem>>, vector<1x8x256xf32>
    %314 = vector.shape_cast %313 : vector<1x8x256xf32> to vector<8x256xf32>
    %315 = vector.shape_cast %312 : vector<8x256xf32> to vector<1x8x256xf32>
    tpu.vector_store %arg17[%c0_99, %c72_100, %c0_101], %315 {strides = array<i32>} : memref<1x128x256xf32, #tpu.memory_space<vmem>>, vector<1x8x256xf32>,
    %c0_102 = arith.constant 0 : index
    %c80 = arith.constant 80 : index
    %c0_103 = arith.constant 0 : index
    %316 = vector.load %arg1[%c0_102, %c80, %c0_103] : memref<1x128x256xf32, #tpu.memory_space<vmem>>, vector<1x8x256xf32>
    %317 = vector.shape_cast %316 : vector<1x8x256xf32> to vector<8x256xf32>
    %318 = arith.mulf %317, %169 : vector<8x256xf32>
    %319 = vector.extract_strided_slice %213 {offsets = [80, 0], sizes = [8, 256], strides = [1, 1]} : vector<128x256xf32> to vector<8x256xf32>
    %320 = arith.mulf %318, %319 : vector<8x256xf32>
    %321 = vector.extract_strided_slice %215 {offsets = [80, 0], sizes = [8, 256], strides = [1, 1]} : vector<128x256xf32> to vector<8x256xf32>
    %322 = arith.mulf %320, %321 : vector<8x256xf32>
    %c0_104 = arith.constant 0 : index
    %c80_105 = arith.constant 80 : index
    %c0_106 = arith.constant 0 : index
    %323 = vector.load %arg17[%c0_104, %c80_105, %c0_106] : memref<1x128x256xf32, #tpu.memory_space<vmem>>, vector<1x8x256xf32>
    %324 = vector.shape_cast %323 : vector<1x8x256xf32> to vector<8x256xf32>
    %325 = vector.shape_cast %322 : vector<8x256xf32> to vector<1x8x256xf32>
    tpu.vector_store %arg17[%c0_104, %c80_105, %c0_106], %325 {strides = array<i32>} : memref<1x128x256xf32, #tpu.memory_space<vmem>>, vector<1x8x256xf32>,
    %c0_107 = arith.constant 0 : index
    %c88 = arith.constant 88 : index
    %c0_108 = arith.constant 0 : index
    %326 = vector.load %arg1[%c0_107, %c88, %c0_108] : memref<1x128x256xf32, #tpu.memory_space<vmem>>, vector<1x8x256xf32>
    %327 = vector.shape_cast %326 : vector<1x8x256xf32> to vector<8x256xf32>
    %328 = arith.mulf %327, %169 : vector<8x256xf32>
    %329 = vector.extract_strided_slice %213 {offsets = [88, 0], sizes = [8, 256], strides = [1, 1]} : vector<128x256xf32> to vector<8x256xf32>
    %330 = arith.mulf %328, %329 : vector<8x256xf32>
    %331 = vector.extract_strided_slice %215 {offsets = [88, 0], sizes = [8, 256], strides = [1, 1]} : vector<128x256xf32> to vector<8x256xf32>
    %332 = arith.mulf %330, %331 : vector<8x256xf32>
    %c0_109 = arith.constant 0 : index
    %c88_110 = arith.constant 88 : index
    %c0_111 = arith.constant 0 : index
    %333 = vector.load %arg17[%c0_109, %c88_110, %c0_111] : memref<1x128x256xf32, #tpu.memory_space<vmem>>, vector<1x8x256xf32>
    %334 = vector.shape_cast %333 : vector<1x8x256xf32> to vector<8x256xf32>
    %335 = vector.shape_cast %332 : vector<8x256xf32> to vector<1x8x256xf32>
    tpu.vector_store %arg17[%c0_109, %c88_110, %c0_111], %335 {strides = array<i32>} : memref<1x128x256xf32, #tpu.memory_space<vmem>>, vector<1x8x256xf32>,
    %c0_112 = arith.constant 0 : index
    %c96 = arith.constant 96 : index
    %c0_113 = arith.constant 0 : index
    %336 = vector.load %arg1[%c0_112, %c96, %c0_113] : memref<1x128x256xf32, #tpu.memory_space<vmem>>, vector<1x8x256xf32>
    %337 = vector.shape_cast %336 : vector<1x8x256xf32> to vector<8x256xf32>
    %338 = arith.mulf %337, %169 : vector<8x256xf32>
    %339 = vector.extract_strided_slice %213 {offsets = [96, 0], sizes = [8, 256], strides = [1, 1]} : vector<128x256xf32> to vector<8x256xf32>
    %340 = arith.mulf %338, %339 : vector<8x256xf32>
    %341 = vector.extract_strided_slice %215 {offsets = [96, 0], sizes = [8, 256], strides = [1, 1]} : vector<128x256xf32> to vector<8x256xf32>
    %342 = arith.mulf %340, %341 : vector<8x256xf32>
    %c0_114 = arith.constant 0 : index
    %c96_115 = arith.constant 96 : index
    %c0_116 = arith.constant 0 : index
    %343 = vector.load %arg17[%c0_114, %c96_115, %c0_116] : memref<1x128x256xf32, #tpu.memory_space<vmem>>, vector<1x8x256xf32>
    %344 = vector.shape_cast %343 : vector<1x8x256xf32> to vector<8x256xf32>
    %345 = vector.shape_cast %342 : vector<8x256xf32> to vector<1x8x256xf32>
    tpu.vector_store %arg17[%c0_114, %c96_115, %c0_116], %345 {strides = array<i32>} : memref<1x128x256xf32, #tpu.memory_space<vmem>>, vector<1x8x256xf32>,
    %c0_117 = arith.constant 0 : index
    %c104 = arith.constant 104 : index
    %c0_118 = arith.constant 0 : index
    %346 = vector.load %arg1[%c0_117, %c104, %c0_118] : memref<1x128x256xf32, #tpu.memory_space<vmem>>, vector<1x8x256xf32>
    %347 = vector.shape_cast %346 : vector<1x8x256xf32> to vector<8x256xf32>
    %348 = arith.mulf %347, %169 : vector<8x256xf32>
    %349 = vector.extract_strided_slice %213 {offsets = [104, 0], sizes = [8, 256], strides = [1, 1]} : vector<128x256xf32> to vector<8x256xf32>
    %350 = arith.mulf %348, %349 : vector<8x256xf32>
    %351 = vector.extract_strided_slice %215 {offsets = [104, 0], sizes = [8, 256], strides = [1, 1]} : vector<128x256xf32> to vector<8x256xf32>
    %352 = arith.mulf %350, %351 : vector<8x256xf32>
    %c0_119 = arith.constant 0 : index
    %c104_120 = arith.constant 104 : index
    %c0_121 = arith.constant 0 : index
    %353 = vector.load %arg17[%c0_119, %c104_120, %c0_121] : memref<1x128x256xf32, #tpu.memory_space<vmem>>, vector<1x8x256xf32>
    %354 = vector.shape_cast %353 : vector<1x8x256xf32> to vector<8x256xf32>
    %355 = vector.shape_cast %352 : vector<8x256xf32> to vector<1x8x256xf32>
    tpu.vector_store %arg17[%c0_119, %c104_120, %c0_121], %355 {strides = array<i32>} : memref<1x128x256xf32, #tpu.memory_space<vmem>>, vector<1x8x256xf32>,
    %c0_122 = arith.constant 0 : index
    %c112 = arith.constant 112 : index
    %c0_123 = arith.constant 0 : index
    %356 = vector.load %arg1[%c0_122, %c112, %c0_123] : memref<1x128x256xf32, #tpu.memory_space<vmem>>, vector<1x8x256xf32>
    %357 = vector.shape_cast %356 : vector<1x8x256xf32> to vector<8x256xf32>
    %358 = arith.mulf %357, %169 : vector<8x256xf32>
    %359 = vector.extract_strided_slice %213 {offsets = [112, 0], sizes = [8, 256], strides = [1, 1]} : vector<128x256xf32> to vector<8x256xf32>
    %360 = arith.mulf %358, %359 : vector<8x256xf32>
    %361 = vector.extract_strided_slice %215 {offsets = [112, 0], sizes = [8, 256], strides = [1, 1]} : vector<128x256xf32> to vector<8x256xf32>
    %362 = arith.mulf %360, %361 : vector<8x256xf32>
    %c0_124 = arith.constant 0 : index
    %c112_125 = arith.constant 112 : index
    %c0_126 = arith.constant 0 : index
    %363 = vector.load %arg17[%c0_124, %c112_125, %c0_126] : memref<1x128x256xf32, #tpu.memory_space<vmem>>, vector<1x8x256xf32>
    %364 = vector.shape_cast %363 : vector<1x8x256xf32> to vector<8x256xf32>
    %365 = vector.shape_cast %362 : vector<8x256xf32> to vector<1x8x256xf32>
    tpu.vector_store %arg17[%c0_124, %c112_125, %c0_126], %365 {strides = array<i32>} : memref<1x128x256xf32, #tpu.memory_space<vmem>>, vector<1x8x256xf32>,
    %c0_127 = arith.constant 0 : index
    %c120 = arith.constant 120 : index
    %c0_128 = arith.constant 0 : index
    %366 = vector.load %arg1[%c0_127, %c120, %c0_128] : memref<1x128x256xf32, #tpu.memory_space<vmem>>, vector<1x8x256xf32>
    %367 = vector.shape_cast %366 : vector<1x8x256xf32> to vector<8x256xf32>
    %368 = arith.mulf %367, %169 : vector<8x256xf32>
    %369 = vector.extract_strided_slice %213 {offsets = [120, 0], sizes = [8, 256], strides = [1, 1]} : vector<128x256xf32> to vector<8x256xf32>
    %370 = arith.mulf %368, %369 : vector<8x256xf32>
    %371 = vector.extract_strided_slice %215 {offsets = [120, 0], sizes = [8, 256], strides = [1, 1]} : vector<128x256xf32> to vector<8x256xf32>
    %372 = arith.mulf %370, %371 : vector<8x256xf32>
    %c0_129 = arith.constant 0 : index
    %c120_130 = arith.constant 120 : index
    %c0_131 = arith.constant 0 : index
    %373 = vector.load %arg17[%c0_129, %c120_130, %c0_131] : memref<1x128x256xf32, #tpu.memory_space<vmem>>, vector<1x8x256xf32>
    %374 = vector.shape_cast %373 : vector<1x8x256xf32> to vector<8x256xf32>
    %375 = vector.shape_cast %372 : vector<8x256xf32> to vector<1x8x256xf32>
    tpu.vector_store %arg17[%c0_129, %c120_130, %c0_131], %375 {strides = array<i32>} : memref<1x128x256xf32, #tpu.memory_space<vmem>>, vector<1x8x256xf32>,
    return
  }
  func.func @transform_0(%arg0: i32) -> (i32, i32, i32) {
    %c0_i32 = arith.constant 0 : i32
    %c0_i32_0 = arith.constant 0 : i32
    %c0_i32_1 = arith.constant 0 : i32
    return %arg0, %c0_i32, %c0_i32_0 : i32, i32, i32
  }
  func.func @transform_1(%arg0: i32) -> (i32, i32) {
    %c0_i32 = arith.constant 0 : i32
    %c0_i32_0 = arith.constant 0 : i32
    %c0_i32_1 = arith.constant 0 : i32
    return %c0_i32, %c0_i32_0 : i32, i32
  }
  func.func @transform_2(%arg0: i32) -> (i32, i32, i32) {
    %c0_i32 = arith.constant 0 : i32
    %c0_i32_0 = arith.constant 0 : i32
    %c0_i32_1 = arith.constant 0 : i32
    %c0_i32_2 = arith.constant 0 : i32
    return %c0_i32, %c0_i32_0, %c0_i32_1 : i32, i32, i32
  }
  func.func @transform_3(%arg0: i32) -> (i32, i32) {
    %c0_i32 = arith.constant 0 : i32
    %c0_i32_0 = arith.constant 0 : i32
    %c0_i32_1 = arith.constant 0 : i32
    return %c0_i32, %c0_i32_0 : i32, i32
  }
  func.func @transform_4(%arg0: i32) -> (i32, i32) {
    %c0_i32 = arith.constant 0 : i32
    %c0_i32_0 = arith.constant 0 : i32
    %c0_i32_1 = arith.constant 0 : i32
    return %c0_i32, %c0_i32_0 : i32, i32
  }
  func.func @transform_5(%arg0: i32) -> (i32, i32) {
    %c0_i32 = arith.constant 0 : i32
    %c0_i32_0 = arith.constant 0 : i32
    %c0_i32_1 = arith.constant 0 : i32
    return %c0_i32, %c0_i32_0 : i32, i32
  }
  func.func @transform_6(%arg0: i32) -> (i32, i32) {
    %c0_i32 = arith.constant 0 : i32
    %c0_i32_0 = arith.constant 0 : i32
    %c0_i32_1 = arith.constant 0 : i32
    return %c0_i32, %c0_i32_0 : i32, i32
  }
  func.func @transform_7(%arg0: i32) -> (i32, i32) {
    %c0_i32 = arith.constant 0 : i32
    %c0_i32_0 = arith.constant 0 : i32
    %c0_i32_1 = arith.constant 0 : i32
    return %c0_i32, %c0_i32_0 : i32, i32
  }
  func.func @transform_8(%arg0: i32) -> (i32, i32) {
    %c0_i32 = arith.constant 0 : i32
    %c0_i32_0 = arith.constant 0 : i32
    %c0_i32_1 = arith.constant 0 : i32
    return %c0_i32, %c0_i32_0 : i32, i32
  }
  func.func @transform_9(%arg0: i32) -> (i32, i32) {
    %c0_i32 = arith.constant 0 : i32
    %c0_i32_0 = arith.constant 0 : i32
    %c0_i32_1 = arith.constant 0 : i32
    return %c0_i32, %c0_i32_0 : i32, i32
  }
  func.func @transform_10(%arg0: i32) -> (i32, i32) {
    %c0_i32 = arith.constant 0 : i32
    %c0_i32_0 = arith.constant 0 : i32
    %c0_i32_1 = arith.constant 0 : i32
    return %c0_i32, %c0_i32_0 : i32, i32
  }
  func.func @transform_11(%arg0: i32) -> (i32, i32) {
    %c0_i32 = arith.constant 0 : i32
    %c0_i32_0 = arith.constant 0 : i32
    %c0_i32_1 = arith.constant 0 : i32
    return %c0_i32, %c0_i32_0 : i32, i32
  }
  func.func @transform_12(%arg0: i32) -> (i32, i32) {
    %c0_i32 = arith.constant 0 : i32
    %c0_i32_0 = arith.constant 0 : i32
    %c0_i32_1 = arith.constant 0 : i32
    return %c0_i32, %c0_i32_0 : i32, i32
  }
  func.func @transform_13(%arg0: i32) -> i32 {
    %c0_i32 = arith.constant 0 : i32
    %c0_i32_0 = arith.constant 0 : i32
    return %c0_i32 : i32
  }
  func.func @transform_14(%arg0: i32) -> i32 {
    %c0_i32 = arith.constant 0 : i32
    %c0_i32_0 = arith.constant 0 : i32
    return %c0_i32 : i32
  }
  func.func @transform_15(%arg0: i32) -> i32 {
    %c0_i32 = arith.constant 0 : i32
    %c0_i32_0 = arith.constant 0 : i32
    return %c0_i32 : i32
  }
  func.func @transform_16(%arg0: i32) -> (i32, i32, i32) {
    %c0_i32 = arith.constant 0 : i32
    %c0_i32_0 = arith.constant 0 : i32
    %c0_i32_1 = arith.constant 0 : i32
    return %arg0, %c0_i32, %c0_i32_0 : i32, i32, i32
  }
}

</mosaic_0001>

<llo_original>
// kernel: mul.57
$region0: #{mul.57}
  %s0 = inlined_call_operand.hbm [shape: f32[32], index: 0, kind: input, shape index: {}]
  %s1 = inlined_call_operand.vmem [shape: f32[16,2], index: 1, kind: output, shape index: {}]
  $region1: #{mul.57} parent=0
    #allocation0 [shape = 'u8[512]{0}', space=vmem, size = 0x400, scoped, tag = 'operand span for operand 0']
    #allocation1 [shape = 's32[1]{0}', space=sflag, size = 0x4, scoped, tag = 'scoped memory for mul.57']
    #allocation2 [shape = 'u8[4096]{0}', space=vmem, size = 0x1000, scoped, tag = 'scoped mem for input reshape']
    %2 = vsyncpa [#allocation1], 0
    %4 = vsyncadd [#allocation1], 0
    %s6 = sshll.u32 %s0, 4
    %s7 = int_to_ptr.hbm [resolvable:$true] %s6
    %s8 = sshll.u32 [#allocation0], 4
    %s9 = int_to_ptr.vmem [resolvable:$true] %s8
    %11 = dma.hbm_to_vmem [thread:$0]  %s7, 16, %s9, [#allocation1]
    %13 = dma.done [#allocation1], 16
    %s15 = ssub.s32 2, 1
    %v16 = vld [vmem:[#allocation0] sm:%s15]
    %17 = vst [vmem:[#allocation2] sm:%s15] %v16
    %v18 = vld [vmem:[#allocation2] sm:$0x1]
    %vm19 = vcmask 15360
    %20 = vst.msk [vmem:[%s1] sm:$0x1] %vm19, %v18
    %v21 = vld [vmem:[#allocation2] sm:$0x1]
    %22 = vrot.lane.b32.xlu0 %v21, 126
    %v23 = vpop.permute.xlu0 %22
    %vm24 = vcmask 15360
    %s25 = scalar_lea.vmem %s1, 1
    %26 = vst.msk [vmem:[%s25] sm:$0x1] %vm24, %v23
    %v27 = vld [vmem:[#allocation2] sm:$0x1]
    %28 = vrot.lane.b32.xlu0 %v27, 124
    %v29 = vpop.permute.xlu0 %28
    %vm30 = vcmask 15360
    %s31 = scalar_lea.vmem %s1, 2
    %32 = vst.msk [vmem:[%s31] sm:$0x1] %vm30, %v29
    %v33 = vld [vmem:[#allocation2] sm:$0x1]
    %34 = vrot.lane.b32.xlu0 %v33, 122
    %v35 = vpop.permute.xlu0 %34
    %vm36 = vcmask 15360
    %s37 = scalar_lea.vmem %s1, 3
    %38 = vst.msk [vmem:[%s37] sm:$0x1] %vm36, %v35
    %v39 = vld [vmem:[#allocation2] sm:$0x1]
    %40 = vrot.lane.b32.xlu0 %v39, 120
    %v41 = vpop.permute.xlu0 %40
    %vm42 = vcmask 15360
    %s43 = scalar_lea.vmem %s1, 4
    %44 = vst.msk [vmem:[%s43] sm:$0x1] %vm42, %v41
    %v45 = vld [vmem:[#allocation2] sm:$0x1]
    %46 = vrot.lane.b32.xlu0 %v45, 118
    %v47 = vpop.permute.xlu0 %46
    %vm48 = vcmask 15360
    %s49 = scalar_lea.vmem %s1, 5
    %50 = vst.msk [vmem:[%s49] sm:$0x1] %vm48, %v47
    %v51 = vld [vmem:[#allocation2] sm:$0x1]
    %52 = vrot.lane.b32.xlu0 %v51, 116
    %v53 = vpop.permute.xlu0 %52
    %vm54 = vcmask 15360
    %s55 = scalar_lea.vmem %s1, 6
    %56 = vst.msk [vmem:[%s55] sm:$0x1] %vm54, %v53
    %v57 = vld [vmem:[#allocation2] sm:$0x1]
    %58 = vrot.lane.b32.xlu0 %v57, 114
    %v59 = vpop.permute.xlu0 %58
    %vm60 = vcmask 15360
    %s61 = scalar_lea.vmem %s1, 7
    %62 = vst.msk [vmem:[%s61] sm:$0x1] %vm60, %v59
    %v63 = vld [vmem:[#allocation2] sm:$0x1]
    %64 = vrot.lane.b32.xlu0 %v63, 112
    %v65 = vpop.permute.xlu0 %64
    %vm66 = vcmask 15360
    %s67 = scalar_lea.vmem %s1, 8
    %68 = vst.msk [vmem:[%s67] sm:$0x1] %vm66, %v65
    %v69 = vld [vmem:[#allocation2] sm:$0x1]
    %70 = vrot.lane.b32.xlu0 %v69, 110
    %v71 = vpop.permute.xlu0 %70
    %vm72 = vcmask 15360
    %s73 = scalar_lea.vmem %s1, 9
    %74 = vst.msk [vmem:[%s73] sm:$0x1] %vm72, %v71
    %v75 = vld [vmem:[#allocation2] sm:$0x1]
    %76 = vrot.lane.b32.xlu0 %v75, 108
    %v77 = vpop.permute.xlu0 %76
    %vm78 = vcmask 15360
    %s79 = scalar_lea.vmem %s1, 10
    %80 = vst.msk [vmem:[%s79] sm:$0x1] %vm78, %v77
    %v81 = vld [vmem:[#allocation2] sm:$0x1]
    %82 = vrot.lane.b32.xlu0 %v81, 106
    %v83 = vpop.permute.xlu0 %82
    %vm84 = vcmask 15360
    %s85 = scalar_lea.vmem %s1, 11
    %86 = vst.msk [vmem:[%s85] sm:$0x1] %vm84, %v83
    %v87 = vld [vmem:[#allocation2] sm:$0x1]
    %88 = vrot.lane.b32.xlu0 %v87, 104
    %v89 = vpop.permute.xlu0 %88
    %vm90 = vcmask 15360
    %s91 = scalar_lea.vmem %s1, 12
    %92 = vst.msk [vmem:[%s91] sm:$0x1] %vm90, %v89
    %v93 = vld [vmem:[#allocation2] sm:$0x1]
    %94 = vrot.lane.b32.xlu0 %v93, 102
    %v95 = vpop.permute.xlu0 %94
    %vm96 = vcmask 15360
    %s97 = scalar_lea.vmem %s1, 13
    %98 = vst.msk [vmem:[%s97] sm:$0x1] %vm96, %v95
    %v99 = vld [vmem:[#allocation2] sm:$0x1]
    %100 = vrot.lane.b32.xlu0 %v99, 100
    %v101 = vpop.permute.xlu0 %100
    %vm102 = vcmask 15360
    %s103 = scalar_lea.vmem %s1, 14
    %104 = vst.msk [vmem:[%s103] sm:$0x1] %vm102, %v101
    %v105 = vld [vmem:[#allocation2] sm:$0x1]
    %106 = vrot.lane.b32.xlu0 %v105, 98
    %v107 = vpop.permute.xlu0 %106
    %vm108 = vcmask 15360
    %s109 = scalar_lea.vmem %s1, 15
    %110 = vst.msk [vmem:[%s109] sm:$0x1] %vm108, %v107
    %111 = vsyncpa [#allocation1], 1

// kernel: sts_attention.1
$region0: #{sts_attention.1}
  #allocation0 [shape = 'u32[]', space=smem, size = 0x4, offset = 0x4, fixed_abs, tag = 'smem constant byte address 0x4 - core index']
  #allocation1 [shape = 'u32[72,128]{1,0:T(1,128)}', space=vmem, size = 0x9000, scoped, tag = 'internal scratch']
  #allocation2 [shape = 'f32[1]{0:T(128)S(6)}', space=smem, size = 0x200, scoped, tag = 'scoped memory for sts_attention.1']
  #allocation3 [shape = 'f32[1]{0:T(128)S(6)}', space=smem, size = 0x200, scoped, tag = 'scoped memory for sts_attention.1']
  %s0 = inlined_call_operand.vmem [shape: f32[2,128,256], index: 0, kind: input, shape index: {}]
  %s1 = inlined_call_operand.vmem [shape: f32[16,128], index: 1, kind: input, shape index: {}]
  %s2 = inlined_call_operand.vmem [shape: f32[2,1,256], index: 2, kind: input, shape index: {}]
  %s3 = inlined_call_operand.vmem [shape: f32[256,16], index: 3, kind: input, shape index: {}]
  %s4 = inlined_call_operand.vmem [shape: f32[256,16], index: 4, kind: input, shape index: {}]
  %s5 = inlined_call_operand.vmem [shape: f32[16,1], index: 5, kind: input, shape index: {}]
  %s6 = inlined_call_operand.vmem [shape: f32[16,1], index: 6, kind: input, shape index: {}]
  %s7 = inlined_call_operand.vmem [shape: f32[128,16], index: 7, kind: input, shape index: {}]
  %s8 = inlined_call_operand.vmem [shape: f32[128,1], index: 8, kind: input, shape index: {}]
  %s9 = inlined_call_operand.vmem [shape: f32[128,16], index: 9, kind: input, shape index: {}]
  %s10 = inlined_call_operand.vmem [shape: f32[128,1], index: 10, kind: input, shape index: {}]
  %s11 = inlined_call_operand.vmem [shape: f32[16,256], index: 11, kind: input, shape index: {}]
  %s12 = inlined_call_operand.vmem [shape: f32[16,256], index: 12, kind: input, shape index: {}]
  %s13 = inlined_call_operand.vmem [shape: f32[27], index: 13, kind: input, shape index: {}]
  %s14 = inlined_call_operand.<no memory space> [shape: f32[1], index: 14, kind: input, shape index: {}]
  %s15 = inlined_call_operand.<no memory space> [shape: f32[1], index: 15, kind: input, shape index: {}]
  %s16 = inlined_call_operand.vmem [shape: f32[2,128,256], index: 16, kind: output, shape index: {}]
  %s17 = sld [smem:[#allocation0]]
  $region101: #{sts_attention.1} parent=0
    _
  %s19 = ssub.s32 1, %s17
  %s20 = scalar_select 0, %s19, %s17
  %21 = sst [smem:[#allocation2]] %s14
  %22 = sst [smem:[#allocation3]] %s15
  $region1: #{sts_attention.1} parent=0
    #allocation4 [shape = 'u8[512]{0}', space=smem, size = 0x200, scoped, tag = 'input window, operand 13, single buffered']
    #allocation5 [shape = 's32[2]{0}', space=sflag, size = 0x8, scoped, tag = 'scoped memory for sts_attention.1']
    %23 = vsyncpa [#allocation5], 0
    loop: start=0, step=1, limit=4
    $region2: #{sts_attention.1} parent=1 // loop_pre_header
      _
    $region3: #{sts_attention.1} parent=1 // loop_header
      %s25 = sphi 0, %s29
      %p26 = scmp.ge.s32.totalorder %s25, 4
      %s35 = sphi 0, %s37
      %s38 = sphi 0, %s35
      %s39 = sphi 0, %s38
      %s55 = sphi 0, %s39
      %s59 = sphi 0, %s59
      %s61 = sphi 0, %s59
      %s62 = sphi 0, %s61
      %s76 = sphi 0, %s62
      %s80 = sphi 0, %s80
      %s82 = sphi 0, %s80
      %s83 = sphi 0, %s82
      %s97 = sphi 0, %s83
      %s101 = sphi 0, %s101
      %s103 = sphi 0, %s101
      %s104 = sphi 0, %s103
      %s118 = sphi 0, %s104
      %s122 = sphi 0, %s122
      %s124 = sphi 0, %s122
      %s125 = sphi 0, %s124
      %s139 = sphi 0, %s125
      %s143 = sphi 0, %s143
      %s145 = sphi 0, %s143
      %s146 = sphi 0, %s145
      %s160 = sphi 0, %s146
      %s164 = sphi 0, %s164
      %s166 = sphi 0, %s164
      %s167 = sphi 0, %s166
      %s181 = sphi 0, %s167
      %s185 = sphi 0, %s185
      %s187 = sphi 0, %s185
      %s188 = sphi 0, %s187
      %s202 = sphi 0, %s188
      %s206 = sphi 0, %s206
      %s208 = sphi 0, %s206
      %s209 = sphi 0, %s208
      %s223 = sphi 0, %s209
      %s227 = sphi 0, %s227
      %s229 = sphi 0, %s227
      %s230 = sphi 0, %s229
      %s244 = sphi 0, %s230
      %s248 = sphi 0, %s248
      %s250 = sphi 0, %s248
      %s251 = sphi 0, %s250
      %s265 = sphi 0, %s251
      %s269 = sphi 0, %s269
      %s271 = sphi 0, %s269
      %s272 = sphi 0, %s271
      %s286 = sphi 0, %s272
      %s290 = sphi 0, %s290
      %s292 = sphi 0, %s290
      %s293 = sphi 0, %s292
      %s307 = sphi 0, %s293
      %s311 = sphi 0, %s311
      %s313 = sphi 0, %s311
      %s314 = sphi 0, %s313
      %s328 = sphi 0, %s314
      %s332 = sphi 0, %s332
      %s334 = sphi 0, %s332
      %s335 = sphi 0, %s334
      %s349 = sphi 0, %s335
      %s353 = sphi 0, %s353
      %s355 = sphi 0, %s353
      %s356 = sphi 0, %s355
      %s370 = sphi 0, %s356
      %s376 = sphi 0, %s378
      %s379 = sphi 0, %s376
      %s380 = sphi 0, %s379
      %s396 = sphi 0, %s380
    $region4: #{sts_attention.1} parent=1 // loop_header_branch
      %28 = sbr.rel (%p26) target = $region8
    $region5: #{sts_attention.1} parent=1 // loop_body
      %s30 = ssub.s32 %s25, 1
      %s31 = ssub.s32 %s25, 2
      %s32 = sadd.s32 %s25, 1
      %s33 = ssub.s32 %s25, %s32
      %p34 = scmp.eq.s32.totalorder %s33, 0
      %s36 = sadd.s32 %s35, 1
      %s37 = scalar_select %p34, %s35, %s36
      %p40 = pneg %p34
      %p41 = scmp.eq.s32.totalorder %s25, 1
      %p42 = por %p40, %p41
      %p43 = scmp.ne.s32.totalorder %s35, %s38
      %p44 = scmp.eq.s32.totalorder %s25, 0
      %p45 = por %p43, %p44
      %p46 = scmp.ne.s32.totalorder %s35, %s38
      %p47 = scmp.eq.s32.totalorder %s30, 1
      %p48 = por %p46, %p47
      %p49 = scmp.ne.s32.totalorder %s38, %s39
      %p50 = scmp.eq.s32.totalorder %s30, 0
      %p51 = por %p49, %p50
      %p52 = scmp.ne.s32.totalorder %s38, %s39
      %p53 = scmp.eq.s32.totalorder %s31, 1
      %p54 = por %p52, %p53
      %p56 = scmp.ne.s32.totalorder %s39, %s55
      %p57 = scmp.eq.s32.totalorder %s31, 0
      %p58 = por %p56, %p57
      %s60 = sadd.s32 %s59, 1
      %p63 = scmp.eq.s32.totalorder %s25, 1
      %p64 = scmp.ne.s32.totalorder %s59, %s61
      %p65 = scmp.eq.s32.totalorder %s25, 0
      %p66 = por %p64, %p65
      %p67 = scmp.ne.s32.totalorder %s59, %s61
      %p68 = scmp.eq.s32.totalorder %s30, 1
      %p69 = por %p67, %p68
      %p70 = scmp.ne.s32.totalorder %s61, %s62
      %p71 = scmp.eq.s32.totalorder %s30, 0
      %p72 = por %p70, %p71
      %p73 = scmp.ne.s32.totalorder %s61, %s62
      %p74 = scmp.eq.s32.totalorder %s31, 1
      %p75 = por %p73, %p74
      %p77 = scmp.ne.s32.totalorder %s62, %s76
      %p78 = scmp.eq.s32.totalorder %s31, 0
      %p79 = por %p77, %p78
      %s81 = sadd.s32 %s80, 1
      %p84 = scmp.eq.s32.totalorder %s25, 1
      %p85 = scmp.ne.s32.totalorder %s80, %s82
      %p86 = scmp.eq.s32.totalorder %s25, 0
      %p87 = por %p85, %p86
      %p88 = scmp.ne.s32.totalorder %s80, %s82
      %p89 = scmp.eq.s32.totalorder %s30, 1
      %p90 = por %p88, %p89
      %p91 = scmp.ne.s32.totalorder %s82, %s83
      %p92 = scmp.eq.s32.totalorder %s30, 0
      %p93 = por %p91, %p92
      %p94 = scmp.ne.s32.totalorder %s82, %s83
      %p95 = scmp.eq.s32.totalorder %s31, 1
      %p96 = por %p94, %p95
      %p98 = scmp.ne.s32.totalorder %s83, %s97
      %p99 = scmp.eq.s32.totalorder %s31, 0
      %p100 = por %p98, %p99
      %s102 = sadd.s32 %s101, 1
      %p105 = scmp.eq.s32.totalorder %s25, 1
      %p106 = scmp.ne.s32.totalorder %s101, %s103
      %p107 = scmp.eq.s32.totalorder %s25, 0
      %p108 = por %p106, %p107
      %p109 = scmp.ne.s32.totalorder %s101, %s103
      %p110 = scmp.eq.s32.totalorder %s30, 1
      %p111 = por %p109, %p110
      %p112 = scmp.ne.s32.totalorder %s103, %s104
      %p113 = scmp.eq.s32.totalorder %s30, 0
      %p114 = por %p112, %p113
      %p115 = scmp.ne.s32.totalorder %s103, %s104
      %p116 = scmp.eq.s32.totalorder %s31, 1
      %p117 = por %p115, %p116
      %p119 = scmp.ne.s32.totalorder %s104, %s118
      %p120 = scmp.eq.s32.totalorder %s31, 0
      %p121 = por %p119, %p120
      %s123 = sadd.s32 %s122, 1
      %p126 = scmp.eq.s32.totalorder %s25, 1
      %p127 = scmp.ne.s32.totalorder %s122, %s124
      %p128 = scmp.eq.s32.totalorder %s25, 0
      %p129 = por %p127, %p128
      %p130 = scmp.ne.s32.totalorder %s122, %s124
      %p131 = scmp.eq.s32.totalorder %s30, 1
      %p132 = por %p130, %p131
      %p133 = scmp.ne.s32.totalorder %s124, %s125
      %p134 = scmp.eq.s32.totalorder %s30, 0
      %p135 = por %p133, %p134
      %p136 = scmp.ne.s32.totalorder %s124, %s125
      %p137 = scmp.eq.s32.totalorder %s31, 1
      %p138 = por %p136, %p137
      %p140 = scmp.ne.s32.totalorder %s125, %s139
      %p141 = scmp.eq.s32.totalorder %s31, 0
      %p142 = por %p140, %p141
      %s144 = sadd.s32 %s143, 1
      %p147 = scmp.eq.s32.totalorder %s25, 1
      %p148 = scmp.ne.s32.totalorder %s143, %s145
      %p149 = scmp.eq.s32.totalorder %s25, 0
      %p150 = por %p148, %p149
      %p151 = scmp.ne.s32.totalorder %s143, %s145
      %p152 = scmp.eq.s32.totalorder %s30, 1
      %p153 = por %p151, %p152
      %p154 = scmp.ne.s32.totalorder %s145, %s146
      %p155 = scmp.eq.s32.totalorder %s30, 0
      %p156 = por %p154, %p155
      %p157 = scmp.ne.s32.totalorder %s145, %s146
      %p158 = scmp.eq.s32.totalorder %s31, 1
      %p159 = por %p157, %p158
      %p161 = scmp.ne.s32.totalorder %s146, %s160
      %p162 = scmp.eq.s32.totalorder %s31, 0
      %p163 = por %p161, %p162
      %s165 = sadd.s32 %s164, 1
      %p168 = scmp.eq.s32.totalorder %s25, 1
      %p169 = scmp.ne.s32.totalorder %s164, %s166
      %p170 = scmp.eq.s32.totalorder %s25, 0
      %p171 = por %p169, %p170
      %p172 = scmp.ne.s32.totalorder %s164, %s166
      %p173 = scmp.eq.s32.totalorder %s30, 1
      %p174 = por %p172, %p173
      %p175 = scmp.ne.s32.totalorder %s166, %s167
      %p176 = scmp.eq.s32.totalorder %s30, 0
      %p177 = por %p175, %p176
      %p178 = scmp.ne.s32.totalorder %s166, %s167
      %p179 = scmp.eq.s32.totalorder %s31, 1
      %p180 = por %p178, %p179
      %p182 = scmp.ne.s32.totalorder %s167, %s181
      %p183 = scmp.eq.s32.totalorder %s31, 0
      %p184 = por %p182, %p183
      %s186 = sadd.s32 %s185, 1
      %p189 = scmp.eq.s32.totalorder %s25, 1
      %p190 = scmp.ne.s32.totalorder %s185, %s187
      %p191 = scmp.eq.s32.totalorder %s25, 0
      %p192 = por %p190, %p191
      %p193 = scmp.ne.s32.totalorder %s185, %s187
      %p194 = scmp.eq.s32.totalorder %s30, 1
      %p195 = por %p193, %p194
      %p196 = scmp.ne.s32.totalorder %s187, %s188
      %p197 = scmp.eq.s32.totalorder %s30, 0
      %p198 = por %p196, %p197
      %p199 = scmp.ne.s32.totalorder %s187, %s188
      %p200 = scmp.eq.s32.totalorder %s31, 1
      %p201 = por %p199, %p200
      %p203 = scmp.ne.s32.totalorder %s188, %s202
      %p204 = scmp.eq.s32.totalorder %s31, 0
      %p205 = por %p203, %p204
      %s207 = sadd.s32 %s206, 1
      %p210 = scmp.eq.s32.totalorder %s25, 1
      %p211 = scmp.ne.s32.totalorder %s206, %s208
      %p212 = scmp.eq.s32.totalorder %s25, 0
      %p213 = por %p211, %p212
      %p214 = scmp.ne.s32.totalorder %s206, %s208
      %p215 = scmp.eq.s32.totalorder %s30, 1
      %p216 = por %p214, %p215
      %p217 = scmp.ne.s32.totalorder %s208, %s209
      %p218 = scmp.eq.s32.totalorder %s30, 0
      %p219 = por %p217, %p218
      %p220 = scmp.ne.s32.totalorder %s208, %s209
      %p221 = scmp.eq.s32.totalorder %s31, 1
      %p222 = por %p220, %p221
      %p224 = scmp.ne.s32.totalorder %s209, %s223
      %p225 = scmp.eq.s32.totalorder %s31, 0
      %p226 = por %p224, %p225
      %s228 = sadd.s32 %s227, 1
      %p231 = scmp.eq.s32.totalorder %s25, 1
      %p232 = scmp.ne.s32.totalorder %s227, %s229
      %p233 = scmp.eq.s32.totalorder %s25, 0
      %p234 = por %p232, %p233
      %p235 = scmp.ne.s32.totalorder %s227, %s229
      %p236 = scmp.eq.s32.totalorder %s30, 1
      %p237 = por %p235, %p236
      %p238 = scmp.ne.s32.totalorder %s229, %s230
      %p239 = scmp.eq.s32.totalorder %s30, 0
      %p240 = por %p238, %p239
      %p241 = scmp.ne.s32.totalorder %s229, %s230
      %p242 = scmp.eq.s32.totalorder %s31, 1
      %p243 = por %p241, %p242
      %p245 = scmp.ne.s32.totalorder %s230, %s244
      %p246 = scmp.eq.s32.totalorder %s31, 0
      %p247 = por %p245, %p246
      %s249 = sadd.s32 %s248, 1
      %p252 = scmp.eq.s32.totalorder %s25, 1
      %p253 = scmp.ne.s32.totalorder %s248, %s250
      %p254 = scmp.eq.s32.totalorder %s25, 0
      %p255 = por %p253, %p254
      %p256 = scmp.ne.s32.totalorder %s248, %s250
      %p257 = scmp.eq.s32.totalorder %s30, 1
      %p258 = por %p256, %p257
      %p259 = scmp.ne.s32.totalorder %s250, %s251
      %p260 = scmp.eq.s32.totalorder %s30, 0
      %p261 = por %p259, %p260
      %p262 = scmp.ne.s32.totalorder %s250, %s251
      %p263 = scmp.eq.s32.totalorder %s31, 1
      %p264 = por %p262, %p263
      %p266 = scmp.ne.s32.totalorder %s251, %s265
      %p267 = scmp.eq.s32.totalorder %s31, 0
      %p268 = por %p266, %p267
      %s270 = sadd.s32 %s269, 1
      %p273 = scmp.eq.s32.totalorder %s25, 1
      %p274 = scmp.ne.s32.totalorder %s269, %s271
      %p275 = scmp.eq.s32.totalorder %s25, 0
      %p276 = por %p274, %p275
      %p277 = scmp.ne.s32.totalorder %s269, %s271
      %p278 = scmp.eq.s32.totalorder %s30, 1
      %p279 = por %p277, %p278
      %p280 = scmp.ne.s32.totalorder %s271, %s272
      %p281 = scmp.eq.s32.totalorder %s30, 0
      %p282 = por %p280, %p281
      %p283 = scmp.ne.s32.totalorder %s271, %s272
      %p284 = scmp.eq.s32.totalorder %s31, 1
      %p285 = por %p283, %p284
      %p287 = scmp.ne.s32.totalorder %s272, %s286
      %p288 = scmp.eq.s32.totalorder %s31, 0
      %p289 = por %p287, %p288
      %s291 = sadd.s32 %s290, 1
      %p294 = scmp.eq.s32.totalorder %s25, 1
      %p295 = scmp.ne.s32.totalorder %s290, %s292
      %p296 = scmp.eq.s32.totalorder %s25, 0
      %p297 = por %p295, %p296
      %p298 = scmp.ne.s32.totalorder %s290, %s292
      %p299 = scmp.eq.s32.totalorder %s30, 1
      %p300 = por %p298, %p299
      %p301 = scmp.ne.s32.totalorder %s292, %s293
      %p302 = scmp.eq.s32.totalorder %s30, 0
      %p303 = por %p301, %p302
      %p304 = scmp.ne.s32.totalorder %s292, %s293
      %p305 = scmp.eq.s32.totalorder %s31, 1
      %p306 = por %p304, %p305
      %p308 = scmp.ne.s32.totalorder %s293, %s307
      %p309 = scmp.eq.s32.totalorder %s31, 0
      %p310 = por %p308, %p309
      %s312 = sadd.s32 %s311, 1
      %p315 = scmp.eq.s32.totalorder %s25, 1
      %p316 = scmp.ne.s32.totalorder %s311, %s313
      %p317 = scmp.eq.s32.totalorder %s25, 0
      %p318 = por %p316, %p317
      %p319 = scmp.ne.s32.totalorder %s311, %s313
      %p320 = scmp.eq.s32.totalorder %s30, 1
      %p321 = por %p319, %p320
      %p322 = scmp.ne.s32.totalorder %s313, %s314
      %p323 = scmp.eq.s32.totalorder %s30, 0
      %p324 = por %p322, %p323
      %p325 = scmp.ne.s32.totalorder %s313, %s314
      %p326 = scmp.eq.s32.totalorder %s31, 1
      %p327 = por %p325, %p326
      %p329 = scmp.ne.s32.totalorder %s314, %s328
      %p330 = scmp.eq.s32.totalorder %s31, 0
      %p331 = por %p329, %p330
      %s333 = sadd.s32 %s332, 1
      %p336 = scmp.eq.s32.totalorder %s25, 1
      %p337 = scmp.ne.s32.totalorder %s332, %s334
      %p338 = scmp.eq.s32.totalorder %s25, 0
      %p339 = por %p337, %p338
      %p340 = scmp.ne.s32.totalorder %s332, %s334
      %p341 = scmp.eq.s32.totalorder %s30, 1
      %p342 = por %p340, %p341
      %p343 = scmp.ne.s32.totalorder %s334, %s335
      %p344 = scmp.eq.s32.totalorder %s30, 0
      %p345 = por %p343, %p344
      %p346 = scmp.ne.s32.totalorder %s334, %s335
      %p347 = scmp.eq.s32.totalorder %s31, 1
      %p348 = por %p346, %p347
      %p350 = scmp.ne.s32.totalorder %s335, %s349
      %p351 = scmp.eq.s32.totalorder %s31, 0
      %p352 = por %p350, %p351
      %s354 = sadd.s32 %s353, 1
      %p357 = scmp.eq.s32.totalorder %s25, 1
      %p358 = scmp.ne.s32.totalorder %s353, %s355
      %p359 = scmp.eq.s32.totalorder %s25, 0
      %p360 = por %p358, %p359
      %p361 = scmp.ne.s32.totalorder %s353, %s355
      %p362 = scmp.eq.s32.totalorder %s30, 1
      %p363 = por %p361, %p362
      %p364 = scmp.ne.s32.totalorder %s355, %s356
      %p365 = scmp.eq.s32.totalorder %s30, 0
      %p366 = por %p364, %p365
      %p367 = scmp.ne.s32.totalorder %s355, %s356
      %p368 = scmp.eq.s32.totalorder %s31, 1
      %p369 = por %p367, %p368
      %p371 = scmp.ne.s32.totalorder %s356, %s370
      %p372 = scmp.eq.s32.totalorder %s31, 0
      %p373 = por %p371, %p372
      %s374 = ssub.s32 %s25, %s32
      %p375 = scmp.eq.s32.totalorder %s374, 0
      %s377 = sadd.s32 %s376, 1
      %s378 = scalar_select %p375, %s376, %s377
      %p381 = pneg %p375
      %p382 = scmp.eq.s32.totalorder %s25, 1
      %p383 = por %p381, %p382
      %p384 = scmp.ne.s32.totalorder %s376, %s379
      %p385 = scmp.eq.s32.totalorder %s25, 0
      %p386 = por %p384, %p385
      %p387 = scmp.ne.s32.totalorder %s376, %s379
      %p388 = scmp.eq.s32.totalorder %s30, 1
      %p389 = por %p387, %p388
      %p390 = scmp.ne.s32.totalorder %s379, %s380
      %p391 = scmp.eq.s32.totalorder %s30, 0
      %p392 = por %p390, %p391
      %p393 = scmp.ne.s32.totalorder %s379, %s380
      %p394 = scmp.eq.s32.totalorder %s31, 1
      %p395 = por %p393, %p394
      %p397 = scmp.ne.s32.totalorder %s380, %s396
      %p398 = scmp.eq.s32.totalorder %s31, 0
      %p399 = por %p397, %p398
      %p400 = scmp.le.s32.totalorder 1, %s25
      %p401 = scmp.lt.s32.totalorder %s25, 3
      %p402 = pnand %p400, %p401
      %p403 = pneg %p402
      // Predicated region
      $region9: #{sts_attention.1} parent=5 // pred_check
        _
      $region10: #{sts_attention.1} parent=5 // pred_check_branch
        %405 = sbr.rel (%p402) target = $region12
      $region11: #{sts_attention.1} parent=5 // pred_region
        %s406 = ssub.s32 %s25, 1
        // Predicated region
        $region13: #{sts_attention.1} parent=11 // pred_check
          %p407 = pneg %p72
        $region14: #{sts_attention.1} parent=11 // pred_check_branch
          %409 = sbr.rel (%p407) target = $region16
        $region15: #{sts_attention.1} parent=11 // pred_region
          _
        $region16: #{sts_attention.1} parent=11 // pred_fallthru
          _
        // Predicated region
        $region17: #{sts_attention.1} parent=11 // pred_check
          %p410 = pneg %p93
        $region18: #{sts_attention.1} parent=11 // pred_check_branch
          %412 = sbr.rel (%p410) target = $region20
        $region19: #{sts_attention.1} parent=11 // pred_region
          _
        $region20: #{sts_attention.1} parent=11 // pred_fallthru
          _
        // Predicated region
        $region21: #{sts_attention.1} parent=11 // pred_check
          %p413 = pneg %p114
        $region22: #{sts_attention.1} parent=11 // pred_check_branch
          %415 = sbr.rel (%p413) target = $region24
        $region23: #{sts_attention.1} parent=11 // pred_region
          _
        $region24: #{sts_attention.1} parent=11 // pred_fallthru
          _
        // Predicated region
        $region25: #{sts_attention.1} parent=11 // pred_check
          %p416 = pneg %p135
        $region26: #{sts_attention.1} parent=11 // pred_check_branch
          %418 = sbr.rel (%p416) target = $region28
        $region27: #{sts_attention.1} parent=11 // pred_region
          _
        $region28: #{sts_attention.1} parent=11 // pred_fallthru
          _
        // Predicated region
        $region29: #{sts_attention.1} parent=11 // pred_check
          %p419 = pneg %p156
        $region30: #{sts_attention.1} parent=11 // pred_check_branch
          %421 = sbr.rel (%p419) target = $region32
        $region31: #{sts_attention.1} parent=11 // pred_region
          _
        $region32: #{sts_attention.1} parent=11 // pred_fallthru
          _
        // Predicated region
        $region33: #{sts_attention.1} parent=11 // pred_check
          %p422 = pneg %p177
        $region34: #{sts_attention.1} parent=11 // pred_check_branch
          %424 = sbr.rel (%p422) target = $region36
        $region35: #{sts_attention.1} parent=11 // pred_region
          _
        $region36: #{sts_attention.1} parent=11 // pred_fallthru
          _
        // Predicated region
        $region37: #{sts_attention.1} parent=11 // pred_check
          %p425 = pneg %p198
        $region38: #{sts_attention.1} parent=11 // pred_check_branch
          %427 = sbr.rel (%p425) target = $region40
        $region39: #{sts_attention.1} parent=11 // pred_region
          _
        $region40: #{sts_attention.1} parent=11 // pred_fallthru
          _
        // Predicated region
        $region41: #{sts_attention.1} parent=11 // pred_check
          %p428 = pneg %p219
        $region42: #{sts_attention.1} parent=11 // pred_check_branch
          %430 = sbr.rel (%p428) target = $region44
        $region43: #{sts_attention.1} parent=11 // pred_region
          _
        $region44: #{sts_attention.1} parent=11 // pred_fallthru
          _
        // Predicated region
        $region45: #{sts_attention.1} parent=11 // pred_check
          %p431 = pneg %p240
        $region46: #{sts_attention.1} parent=11 // pred_check_branch
          %433 = sbr.rel (%p431) target = $region48
        $region47: #{sts_attention.1} parent=11 // pred_region
          _
        $region48: #{sts_attention.1} parent=11 // pred_fallthru
          _
        // Predicated region
        $region49: #{sts_attention.1} parent=11 // pred_check
          %p434 = pneg %p261
        $region50: #{sts_attention.1} parent=11 // pred_check_branch
          %436 = sbr.rel (%p434) target = $region52
        $region51: #{sts_attention.1} parent=11 // pred_region
          _
        $region52: #{sts_attention.1} parent=11 // pred_fallthru
          _
        // Predicated region
        $region53: #{sts_attention.1} parent=11 // pred_check
          %p437 = pneg %p282
        $region54: #{sts_attention.1} parent=11 // pred_check_branch
          %439 = sbr.rel (%p437) target = $region56
        $region55: #{sts_attention.1} parent=11 // pred_region
          _
        $region56: #{sts_attention.1} parent=11 // pred_fallthru
          _
        // Predicated region
        $region57: #{sts_attention.1} parent=11 // pred_check
          %p440 = pneg %p303
        $region58: #{sts_attention.1} parent=11 // pred_check_branch
          %442 = sbr.rel (%p440) target = $region60
        $region59: #{sts_attention.1} parent=11 // pred_region
          _
        $region60: #{sts_attention.1} parent=11 // pred_fallthru
          _
        // Predicated region
        $region61: #{sts_attention.1} parent=11 // pred_check
          %p443 = pneg %p324
        $region62: #{sts_attention.1} parent=11 // pred_check_branch
          %445 = sbr.rel (%p443) target = $region64
        $region63: #{sts_attention.1} parent=11 // pred_region
          %447 = vsyncadd [#allocation5], 0
          %s449 = sshll.u32 %s13, 4
          %s450 = int_to_ptr.vmem [resolvable:$true] %s449
          %452 = dma.vmem_to_smem %s450, 16, [#allocation4], [#allocation5]
        $region64: #{sts_attention.1} parent=11 // pred_fallthru
          _
        // Predicated region
        $region65: #{sts_attention.1} parent=11 // pred_check
          %p453 = pneg %p345
        $region66: #{sts_attention.1} parent=11 // pred_check_branch
          %455 = sbr.rel (%p453) target = $region68
        $region67: #{sts_attention.1} parent=11 // pred_region
          _
        $region68: #{sts_attention.1} parent=11 // pred_fallthru
          _
        // Predicated region
        $region69: #{sts_attention.1} parent=11 // pred_check
          %p456 = pneg %p366
        $region70: #{sts_attention.1} parent=11 // pred_check_branch
          %458 = sbr.rel (%p456) target = $region72
        $region71: #{sts_attention.1} parent=11 // pred_region
          _
        $region72: #{sts_attention.1} parent=11 // pred_fallthru
          _
      $region12: #{sts_attention.1} parent=5 // pred_fallthru
        _
      %p459 = scmp.lt.s32.totalorder %s25, 2
      // Predicated region
      $region73: #{sts_attention.1} parent=5 // pred_check
        %p460 = pneg %p459
      $region74: #{sts_attention.1} parent=5 // pred_check_branch
        %462 = sbr.rel (%p460) target = $region76
      $region75: #{sts_attention.1} parent=5 // pred_region
        // Predicated region
        $region77: #{sts_attention.1} parent=75 // pred_check
          %p463 = pneg %p45
        $region78: #{sts_attention.1} parent=75 // pred_check_branch
          %465 = sbr.rel (%p463) target = $region80
        $region79: #{sts_attention.1} parent=75 // pred_region
          %p466 = scmp.lt.s32.totalorder %s25, 1
          %s467 = scalar_select %p466, %s25, 1
          %s468 = smul.addr %s467, 32
          %s469 = smul.addr %s468, 8
          %s470 = scalar_lea.vmem %s0, %s469
        $region80: #{sts_attention.1} parent=75 // pred_fallthru
          _
      $region76: #{sts_attention.1} parent=5 // pred_fallthru
        _
      %p471 = scmp.le.s32.totalorder 1, %s25
      %p472 = scmp.lt.s32.totalorder %s25, 3
      %p473 = pnand %p471, %p472
      %p474 = pneg %p473
      // Predicated region
      $region81: #{sts_attention.1} parent=5 // pred_check
        _
      $region82: #{sts_attention.1} parent=5 // pred_check_branch
        %476 = sbr.rel (%p473) target = $region84
      $region83: #{sts_attention.1} parent=5 // pred_region
        %s477 = ssub.s32 %s25, 1
        // Predicated region
        $region85: #{sts_attention.1} parent=83 // pred_check
          %p478 = pneg %p324
        $region86: #{sts_attention.1} parent=83 // pred_check_branch
          %480 = sbr.rel (%p478) target = $region88
        $region87: #{sts_attention.1} parent=83 // pred_region
          %482 = dma.done [#allocation5], 16
        $region88: #{sts_attention.1} parent=83 // pred_fallthru
          _
        %483 = sfence
        %p484 = scmp.lt.s32.totalorder %s30, 1
        %s485 = scalar_select %p484, %s30, 1
        %s486 = smul.addr %s485, 32
        %s487 = smul.addr %s486, 8
        %s488 = scalar_lea.vmem %s0, %s487
        %p489 = pneg %p51
        %p490 = pneg %p48
        %p491 = pneg %p72
        %p492 = pneg %p69
        %p493 = pneg %p93
        %p494 = pneg %p90
        %p495 = pneg %p114
        %p496 = pneg %p111
        %p497 = pneg %p135
        %p498 = pneg %p132
        %p499 = pneg %p156
        %p500 = pneg %p153
        %p501 = pneg %p177
        %p502 = pneg %p174
        %p503 = pneg %p198
        %p504 = pneg %p195
        %p505 = pneg %p219
        %p506 = pneg %p216
        %p507 = pneg %p240
        %p508 = pneg %p237
        %p509 = pneg %p261
        %p510 = pneg %p258
        %p511 = pneg %p282
        %p512 = pneg %p279
        %p513 = pneg %p303
        %p514 = pneg %p300
        %p515 = pneg %p324
        %p516 = pneg %p321
        %p517 = pneg %p345
        %p518 = pneg %p342
        %p519 = pneg %p366
        %p520 = pneg %p363
        %p521 = pneg %p392
        %p522 = pneg %p389
        %p523 = scmp.lt.s32.totalorder %s30, 1
        %s524 = scalar_select %p523, %s30, 1
        %s525 = smul.addr %s524, 32
        %s526 = smul.addr %s525, 8
        %s527 = scalar_lea.vmem %s16, %s526
        %p528 = scmp.lt.s32.totalorder %s30, 1
        %s529 = scalar_select %p528, %s30, 1
        %s530 = smul.addr %s529, 32
        %s531 = smul.addr %s530, 8
        %s532 = scalar_lea.vmem %s0, %s531
        %p533 = scmp.lt.s32.totalorder %s30, 1
        %s534 = scalar_select %p533, %s30, 1
        %s535 = smul.addr %s534, 32
        %s536 = smul.addr %s535, 8
        %s537 = scalar_lea.vmem %s16, %s536
        %v538 = vld [vmem:[%s532] sm:$0xff]
        %v539 = vld [vmem:[%s532 + $0x8] sm:$0xff]
        %v540 = vld [vmem:[%s532 + $0x10] sm:$0xff]
        %v541 = vld [vmem:[%s532 + $0x18] sm:$0xff]
        %v542 = vld [vmem:[%s532 + $0x20] sm:$0xff]
        %v543 = vld [vmem:[%s532 + $0x28] sm:$0xff]
        %v544 = vld [vmem:[%s532 + $0x30] sm:$0xff]
        %v545 = vld [vmem:[%s532 + $0x38] sm:$0xff]
        %v546 = vld [vmem:[%s532 + $0x40] sm:$0xff]
        %v547 = vld [vmem:[%s532 + $0x48] sm:$0xff]
        %v548 = vld [vmem:[%s532 + $0x50] sm:$0xff]
        %v549 = vld [vmem:[%s532 + $0x58] sm:$0xff]
        %v550 = vld [vmem:[%s532 + $0x60] sm:$0xff]
        %v551 = vld [vmem:[%s532 + $0x68] sm:$0xff]
        %v552 = vld [vmem:[%s532 + $0x70] sm:$0xff]
        %v553 = vld [vmem:[%s532 + $0x78] sm:$0xff]
        %v554 = vld [vmem:[%s532 + $0x80] sm:$0xff]
        %v555 = vld [vmem:[%s532 + $0x88] sm:$0xff]
        %v556 = vld [vmem:[%s532 + $0x90] sm:$0xff]
        %v557 = vld [vmem:[%s532 + $0x98] sm:$0xff]
        %v558 = vld [vmem:[%s532 + $0xa0] sm:$0xff]
        %v559 = vld [vmem:[%s532 + $0xa8] sm:$0xff]
        %v560 = vld [vmem:[%s532 + $0xb0] sm:$0xff]
        %v561 = vld [vmem:[%s532 + $0xb8] sm:$0xff]
        %v562 = vld [vmem:[%s532 + $0xc0] sm:$0xff]
        %v563 = vld [vmem:[%s532 + $0xc8] sm:$0xff]
        %v564 = vld [vmem:[%s532 + $0xd0] sm:$0xff]
        %v565 = vld [vmem:[%s532 + $0xd8] sm:$0xff]
        %v566 = vld [vmem:[%s532 + $0xe0] sm:$0xff]
        %v567 = vld [vmem:[%s532 + $0xe8] sm:$0xff]
        %v568 = vld [vmem:[%s532 + $0xf0] sm:$0xff]
        %v569 = vld [vmem:[%s532 + $0xf8] sm:$0xff]
        %v570 = vld [vmem:[%s1] sm:$0xff]
        %v571 = vld [vmem:[%s1 + $0x8] sm:$0xff]
        %572 = vmatpush.msra.mxu0 %v568
        %573 = vmatpush.msra.mxu0 %v566
        %574 = vmatpush.msra.mxu0 %v564
        %575 = vmatpush.msra.mxu0 %v562
        %576 = vmatpush.msra.mxu0 %v560
        %577 = vmatpush.msra.mxu0 %v558
        %578 = vmatpush.msra.mxu0 %v556
        %579 = vmatpush.msra.mxu0 %v554
        %580 = vmatpush.msra.mxu0 %v552
        %581 = vmatpush.msra.mxu0 %v550
        %582 = vmatpush.msra.mxu0 %v548
        %583 = vmatpush.msra.mxu0 %v546
        %584 = vmatpush.msra.mxu0 %v544
        %585 = vmatpush.msra.mxu0 %v542
        %586 = vmatpush.msra.mxu0 %v540
        %587 = vmatpush.msra.mxu0 %v538
        %588 = vmatmul.f32.gmra.mxu0 %v570
        %v589 = vpop.f32.mrf.mxu0
        %v590 = vadd.f32 0.0, %v589
        %591 = vmatmul.f32.gmra.mxu0 %v571
        %v592 = vpop.f32.mrf.mxu0
        %v593 = vadd.f32 0.0, %v592
        %594 = vdwg.mxu0
        %595 = vmatpush.msra.mxu0 %v569
        %596 = vmatpush.msra.mxu0 %v567
        %597 = vmatpush.msra.mxu0 %v565
        %598 = vmatpush.msra.mxu0 %v563
        %599 = vmatpush.msra.mxu0 %v561
        %600 = vmatpush.msra.mxu0 %v559
        %601 = vmatpush.msra.mxu0 %v557
        %602 = vmatpush.msra.mxu0 %v555
        %603 = vmatpush.msra.mxu0 %v553
        %604 = vmatpush.msra.mxu0 %v551
        %605 = vmatpush.msra.mxu0 %v549
        %606 = vmatpush.msra.mxu0 %v547
        %607 = vmatpush.msra.mxu0 %v545
        %608 = vmatpush.msra.mxu0 %v543
        %609 = vmatpush.msra.mxu0 %v541
        %610 = vmatpush.msra.mxu0 %v539
        %611 = vmatmul.f32.gmra.mxu0 %v570
        %v612 = vpop.f32.mrf.mxu0
        %v613 = vadd.f32 0.0, %v612
        %614 = vmatmul.f32.gmra.mxu0 %v571
        %v615 = vpop.f32.mrf.mxu0
        %v616 = vadd.f32 0.0, %v615
        %617 = vdwg.mxu0
        %s618 = sld [smem:[#allocation2]]
        %v619 = vstv %s618
        %v620 = vadd.f32 %v590, %v619
        %v621 = vadd.f32 %v613, %v619
        %v622 = vld [vmem:[%s2] sm:$0x3]
        %v623 = vld [vmem:[%s2 + $0x2] sm:$0x3]
        %v625 = vperm.slane %v622, 0
        %v626 = vperm.slane %v622, 1
        %v629 = vmul.f32 %v620, %v625
        %v630 = vmul.f32 %v621, %v626
        %v632 = vperm.slane %v623, 0
        %v633 = vperm.slane %v623, 1
        %v636 = vmul.f32 %v620, %v632
        %v637 = vmul.f32 %v621, %v633
        %640 = vrot.lane.b32.xlu0 %v629, 17
        %v641 = vpop.permute.xlu0 %640
        %642 = vrot.lane.b32.xlu0 %v630, 17
        %v643 = vpop.permute.xlu0 %642
        %vm644 = vcmask 138240
        %v645 = vsel %vm644, %v641, %v643
        %v648 = vsel %vm644, 0.0, %v641
        %v649 = vsel %vm644, %v643, 0.0
        %v652 = vrot.slane %v648, 7
        %v653 = vrot.slane %v645, 7
        %v654 = vrot.slane %v649, 7
        %vm658 = vcmask 1040384
        %v659 = vsel %vm658, 0.0, %v652
        %v660 = vsel %vm658, 0.0, %v653
        %v661 = vsel %vm658, 0.0, %v654
        %v662 = vsel %vm658, %v652, 0.0
        %v663 = vsel %vm658, %v653, 0.0
        %v664 = vsel %vm658, %v654, 0.0
        %667 = vrot.lane.b32.xlu0 %v620, 17
        %v668 = vpop.permute.xlu0 %667
        %669 = vrot.lane.b32.xlu0 %v621, 17
        %v670 = vpop.permute.xlu0 %669
        %v671 = vsel %vm644, %v668, %v670
        %v674 = vsel %vm644, 0.0, %v668
        %v675 = vsel %vm644, %v670, 0.0
        %v678 = vrot.slane %v674, 7
        %v679 = vrot.slane %v671, 7
        %v680 = vrot.slane %v675, 7
        %v684 = vsel %vm658, 0.0, %v678
        %v685 = vsel %vm658, 0.0, %v679
        %v686 = vsel %vm658, 0.0, %v680
        %v687 = vsel %vm658, %v678, 0.0
        %v688 = vsel %vm658, %v679, 0.0
        %v689 = vsel %vm658, %v680, 0.0
        %692 = vrot.lane.b32.xlu0 %v636, 17
        %v693 = vpop.permute.xlu0 %692
        %694 = vrot.lane.b32.xlu0 %v637, 17
        %v695 = vpop.permute.xlu0 %694
        %v696 = vsel %vm644, %v693, %v695
        %v699 = vsel %vm644, 0.0, %v693
        %v700 = vsel %vm644, %v695, 0.0
        %v703 = vrot.slane %v699, 7
        %v704 = vrot.slane %v696, 7
        %v705 = vrot.slane %v700, 7
        %v709 = vsel %vm658, 0.0, %v703
        %v710 = vsel %vm658, 0.0, %v704
        %v711 = vsel %vm658, 0.0, %v705
        %v712 = vsel %vm658, %v703, 0.0
        %v713 = vsel %vm658, %v704, 0.0
        %v714 = vsel %vm658, %v705, 0.0
        %s715 = sld [smem:[#allocation3]]
        %v716 = vstv %s715
        %v717 = vadd.f32 %v716, 0.0
        %s718 = sld [smem:[#allocation4]]
        %v719 = vstv %s718
        %v720 = vmul.f32 %v719, %v659
        %v721 = vmul.f32 %v719, %v660
        %v722 = vadd.f32 %v717, %v720
        %v723 = vadd.f32 %v717, %v721
        %s724 = sld [smem:[#allocation4 + $0x3]]
        %v725 = vstv %s724
        %v726 = vmul.f32 %v725, %v659
        %v727 = vmul.f32 %v725, %v660
        %v728 = vmul.f32 %v725, %v661
        %732 = vrot.lane.b32.xlu0 %v726, 112
        %v733 = vpop.permute.xlu0 %732
        %734 = vrot.lane.b32.xlu0 %v727, 112
        %v735 = vpop.permute.xlu0 %734
        %736 = vrot.lane.b32.xlu0 %v728, 112
        %v737 = vpop.permute.xlu0 %736
        %vm738 = vcmask 916480
        %v739 = vsel %vm738, %v733, %v735
        %v740 = vsel %vm738, %v735, %v737
        %v743 = vadd.f32 %v722, %v739
        %v744 = vadd.f32 %v723, %v740
        %s745 = sld [smem:[#allocation4 + $0x6]]
        %v746 = vstv %s745
        %v747 = vmul.f32 %v746, %v659
        %v748 = vmul.f32 %v746, %v660
        %v749 = vmul.f32 %v746, %v661
        %753 = vrot.lane.b32.xlu0 %v747, 96
        %v754 = vpop.permute.xlu0 %753
        %755 = vrot.lane.b32.xlu0 %v748, 96
        %v756 = vpop.permute.xlu0 %755
        %757 = vrot.lane.b32.xlu0 %v749, 96
        %v758 = vpop.permute.xlu0 %757
        %vm759 = vcmask 785408
        %v760 = vsel %vm759, %v754, %v756
        %v761 = vsel %vm759, %v756, %v758
        %v764 = vadd.f32 %v743, %v760
        %v765 = vadd.f32 %v744, %v761
        %s766 = sld [smem:[#allocation4 + $0x9]]
        %v767 = vstv %s766
        %v768 = vmul.f32 %v767, %v659
        %v769 = vmul.f32 %v767, %v660
        %v770 = vmul.f32 %v767, %v662
        %v771 = vmul.f32 %v767, %v663
        %vm776 = vcmask 1046528
        %v777 = vrot.slane %v768, 1
        %v778 = vrot.slane %v770, 1
        %v779 = vsel %vm776, %v777, %v778
        %v780 = vrot.slane %v769, 1
        %v781 = vrot.slane %v771, 1
        %v782 = vsel %vm776, %v780, %v781
        %v785 = vadd.f32 %v764, %v779
        %v786 = vadd.f32 %v765, %v782
        %s787 = sld [smem:[#allocation4 + $0xc]]
        %v788 = vstv %s787
        %v789 = vmul.f32 %v788, %v659
        %v790 = vmul.f32 %v788, %v660
        %v791 = vmul.f32 %v788, %v661
        %v792 = vmul.f32 %v788, %v662
        %v793 = vmul.f32 %v788, %v663
        %v794 = vmul.f32 %v788, %v664
        %v801 = vrot.slane %v789, 1
        %v802 = vrot.slane %v792, 1
        %v803 = vsel %vm776, %v801, %v802
        %v804 = vrot.slane %v790, 1
        %v805 = vrot.slane %v793, 1
        %v806 = vsel %vm776, %v804, %v805
        %v807 = vrot.slane %v791, 1
        %v808 = vrot.slane %v794, 1
        %v809 = vsel %vm776, %v807, %v808
        %810 = vrot.lane.b32.xlu0 %v803, 112
        %v811 = vpop.permute.xlu0 %810
        %812 = vrot.lane.b32.xlu0 %v806, 112
        %v813 = vpop.permute.xlu0 %812
        %814 = vrot.lane.b32.xlu0 %v809, 112
        %v815 = vpop.permute.xlu0 %814
        %v816 = vsel %vm738, %v811, %v813
        %v817 = vsel %vm738, %v813, %v815
        %v820 = vadd.f32 %v785, %v816
        %v821 = vadd.f32 %v786, %v817
        %s822 = sld [smem:[#allocation4 + $0xf]]
        %v823 = vstv %s822
        %v824 = vmul.f32 %v823, %v659
        %v825 = vmul.f32 %v823, %v660
        %v826 = vmul.f32 %v823, %v661
        %v827 = vmul.f32 %v823, %v662
        %v828 = vmul.f32 %v823, %v663
        %v829 = vmul.f32 %v823, %v664
        %v836 = vrot.slane %v824, 1
        %v837 = vrot.slane %v827, 1
        %v838 = vsel %vm776, %v836, %v837
        %v839 = vrot.slane %v825, 1
        %v840 = vrot.slane %v828, 1
        %v841 = vsel %vm776, %v839, %v840
        %v842 = vrot.slane %v826, 1
        %v843 = vrot.slane %v829, 1
        %v844 = vsel %vm776, %v842, %v843
        %845 = vrot.lane.b32.xlu0 %v838, 96
        %v846 = vpop.permute.xlu0 %845
        %847 = vrot.lane.b32.xlu0 %v841, 96
        %v848 = vpop.permute.xlu0 %847
        %849 = vrot.lane.b32.xlu0 %v844, 96
        %v850 = vpop.permute.xlu0 %849
        %v851 = vsel %vm759, %v846, %v848
        %v852 = vsel %vm759, %v848, %v850
        %v855 = vadd.f32 %v820, %v851
        %v856 = vadd.f32 %v821, %v852
        %s857 = sld [smem:[#allocation4 + $0x12]]
        %v858 = vstv %s857
        %v859 = vmul.f32 %v858, %v659
        %v860 = vmul.f32 %v858, %v660
        %v861 = vmul.f32 %v858, %v662
        %v862 = vmul.f32 %v858, %v663
        %vm867 = vcmask 1045504
        %v868 = vrot.slane %v859, 2
        %v869 = vrot.slane %v861, 2
        %v870 = vsel %vm867, %v868, %v869
        %v871 = vrot.slane %v860, 2
        %v872 = vrot.slane %v862, 2
        %v873 = vsel %vm867, %v871, %v872
        %v876 = vadd.f32 %v855, %v870
        %v877 = vadd.f32 %v856, %v873
        %s878 = sld [smem:[#allocation4 + $0x15]]
        %v879 = vstv %s878
        %v880 = vmul.f32 %v879, %v659
        %v881 = vmul.f32 %v879, %v660
        %v882 = vmul.f32 %v879, %v661
        %v883 = vmul.f32 %v879, %v662
        %v884 = vmul.f32 %v879, %v663
        %v885 = vmul.f32 %v879, %v664
        %v892 = vrot.slane %v880, 2
        %v893 = vrot.slane %v883, 2
        %v894 = vsel %vm867, %v892, %v893
        %v895 = vrot.slane %v881, 2
        %v896 = vrot.slane %v884, 2
        %v897 = vsel %vm867, %v895, %v896
        %v898 = vrot.slane %v882, 2
        %v899 = vrot.slane %v885, 2
        %v900 = vsel %vm867, %v898, %v899
        %901 = vrot.lane.b32.xlu0 %v894, 112
        %v902 = vpop.permute.xlu0 %901
        %903 = vrot.lane.b32.xlu0 %v897, 112
        %v904 = vpop.permute.xlu0 %903
        %905 = vrot.lane.b32.xlu0 %v900, 112
        %v906 = vpop.permute.xlu0 %905
        %v907 = vsel %vm738, %v902, %v904
        %v908 = vsel %vm738, %v904, %v906
        %v911 = vadd.f32 %v876, %v907
        %v912 = vadd.f32 %v877, %v908
        %s913 = sld [smem:[#allocation4 + $0x18]]
        %v914 = vstv %s913
        %v915 = vmul.f32 %v914, %v659
        %v916 = vmul.f32 %v914, %v660
        %v917 = vmul.f32 %v914, %v661
        %v918 = vmul.f32 %v914, %v662
        %v919 = vmul.f32 %v914, %v663
        %v920 = vmul.f32 %v914, %v664
        %v927 = vrot.slane %v915, 2
        %v928 = vrot.slane %v918, 2
        %v929 = vsel %vm867, %v927, %v928
        %v930 = vrot.slane %v916, 2
        %v931 = vrot.slane %v919, 2
        %v932 = vsel %vm867, %v930, %v931
        %v933 = vrot.slane %v917, 2
        %v934 = vrot.slane %v920, 2
        %v935 = vsel %vm867, %v933, %v934
        %936 = vrot.lane.b32.xlu0 %v929, 96
        %v937 = vpop.permute.xlu0 %936
        %938 = vrot.lane.b32.xlu0 %v932, 96
        %v939 = vpop.permute.xlu0 %938
        %940 = vrot.lane.b32.xlu0 %v935, 96
        %v941 = vpop.permute.xlu0 %940
        %v942 = vsel %vm759, %v937, %v939
        %v943 = vsel %vm759, %v939, %v941
        %v946 = vadd.f32 %v911, %v942
        %v947 = vadd.f32 %v912, %v943
        %s948 = sld [smem:[#allocation4 + $0x1]]
        %v949 = vstv %s948
        %v950 = vmul.f32 %v949, %v684
        %v951 = vmul.f32 %v949, %v685
        %v952 = vmul.f32 %v949, %v686
        %956 = vrot.lane.b32.xlu0 %v950, 127
        %v957 = vpop.permute.xlu0 %956
        %958 = vrot.lane.b32.xlu0 %v951, 127
        %v959 = vpop.permute.xlu0 %958
        %960 = vrot.lane.b32.xlu0 %v952, 127
        %v961 = vpop.permute.xlu0 %960
        %vm962 = vcmask 1039360
        %v963 = vsel %vm962, %v957, %v959
        %v964 = vsel %vm962, %v959, %v961
        %v967 = vadd.f32 %v946, %v963
        %v968 = vadd.f32 %v947, %v964
        %s969 = sld [smem:[#allocation4 + $0x4]]
        %v970 = vstv %s969
        %v971 = vmul.f32 %v970, %v684
        %v972 = vmul.f32 %v970, %v685
        %v973 = vmul.f32 %v970, %v686
        %977 = vrot.lane.b32.xlu0 %v971, 111
        %v978 = vpop.permute.xlu0 %977
        %979 = vrot.lane.b32.xlu0 %v972, 111
        %v980 = vpop.permute.xlu0 %979
        %981 = vrot.lane.b32.xlu0 %v973, 111
        %v982 = vpop.permute.xlu0 %981
        %vm983 = vcmask 908288
        %v984 = vsel %vm983, %v978, %v980
        %v985 = vsel %vm983, %v980, %v982
        %v988 = vadd.f32 %v967, %v984
        %v989 = vadd.f32 %v968, %v985
        %s990 = sld [smem:[#allocation4 + $0x7]]
        %v991 = vstv %s990
        %v992 = vmul.f32 %v991, %v684
        %v993 = vmul.f32 %v991, %v685
        %v994 = vmul.f32 %v991, %v686
        %998 = vrot.lane.b32.xlu0 %v992, 95
        %v999 = vpop.permute.xlu0 %998
        %1000 = vrot.lane.b32.xlu0 %v993, 95
        %v1001 = vpop.permute.xlu0 %1000
        %1002 = vrot.lane.b32.xlu0 %v994, 95
        %v1003 = vpop.permute.xlu0 %1002
        %vm1004 = vcmask 777216
        %v1005 = vsel %vm1004, %v999, %v1001
        %v1006 = vsel %vm1004, %v1001, %v1003
        %v1009 = vadd.f32 %v988, %v1005
        %v1010 = vadd.f32 %v989, %v1006
        %s1011 = sld [smem:[#allocation4 + $0xa]]
        %v1012 = vstv %s1011
        %v1013 = vmul.f32 %v1012, %v684
        %v1014 = vmul.f32 %v1012, %v685
        %v1015 = vmul.f32 %v1012, %v686
        %v1016 = vmul.f32 %v1012, %v687
        %v1017 = vmul.f32 %v1012, %v688
        %v1018 = vmul.f32 %v1012, %v689
        %v1025 = vrot.slane %v1013, 1
        %v1026 = vrot.slane %v1016, 1
        %v1027 = vsel %vm776, %v1025, %v1026
        %v1028 = vrot.slane %v1014, 1
        %v1029 = vrot.slane %v1017, 1
        %v1030 = vsel %vm776, %v1028, %v1029
        %v1031 = vrot.slane %v1015, 1
        %v1032 = vrot.slane %v1018, 1
        %v1033 = vsel %vm776, %v1031, %v1032
        %1034 = vrot.lane.b32.xlu0 %v1027, 127
        %v1035 = vpop.permute.xlu0 %1034
        %1036 = vrot.lane.b32.xlu0 %v1030, 127
        %v1037 = vpop.permute.xlu0 %1036
        %1038 = vrot.lane.b32.xlu0 %v1033, 127
        %v1039 = vpop.permute.xlu0 %1038
        %v1040 = vsel %vm962, %v1035, %v1037
        %v1041 = vsel %vm962, %v1037, %v1039
        %v1044 = vadd.f32 %v1009, %v1040
        %v1045 = vadd.f32 %v1010, %v1041
        %s1046 = sld [smem:[#allocation4 + $0xd]]
        %v1047 = vstv %s1046
        %v1048 = vmul.f32 %v1047, %v684
        %v1049 = vmul.f32 %v1047, %v685
        %v1050 = vmul.f32 %v1047, %v686
        %v1051 = vmul.f32 %v1047, %v687
        %v1052 = vmul.f32 %v1047, %v688
        %v1053 = vmul.f32 %v1047, %v689
        %v1060 = vrot.slane %v1048, 1
        %v1061 = vrot.slane %v1051, 1
        %v1062 = vsel %vm776, %v1060, %v1061
        %v1063 = vrot.slane %v1049, 1
        %v1064 = vrot.slane %v1052, 1
        %v1065 = vsel %vm776, %v1063, %v1064
        %v1066 = vrot.slane %v1050, 1
        %v1067 = vrot.slane %v1053, 1
        %v1068 = vsel %vm776, %v1066, %v1067
        %1069 = vrot.lane.b32.xlu0 %v1062, 111
        %v1070 = vpop.permute.xlu0 %1069
        %1071 = vrot.lane.b32.xlu0 %v1065, 111
        %v1072 = vpop.permute.xlu0 %1071
        %1073 = vrot.lane.b32.xlu0 %v1068, 111
        %v1074 = vpop.permute.xlu0 %1073
        %v1075 = vsel %vm983, %v1070, %v1072
        %v1076 = vsel %vm983, %v1072, %v1074
        %v1079 = vadd.f32 %v1044, %v1075
        %v1080 = vadd.f32 %v1045, %v1076
        %s1081 = sld [smem:[#allocation4 + $0x10]]
        %v1082 = vstv %s1081
        %v1083 = vmul.f32 %v1082, %v684
        %v1084 = vmul.f32 %v1082, %v685
        %v1085 = vmul.f32 %v1082, %v686
        %v1086 = vmul.f32 %v1082, %v687
        %v1087 = vmul.f32 %v1082, %v688
        %v1088 = vmul.f32 %v1082, %v689
        %v1095 = vrot.slane %v1083, 1
        %v1096 = vrot.slane %v1086, 1
        %v1097 = vsel %vm776, %v1095, %v1096
        %v1098 = vrot.slane %v1084, 1
        %v1099 = vrot.slane %v1087, 1
        %v1100 = vsel %vm776, %v1098, %v1099
        %v1101 = vrot.slane %v1085, 1
        %v1102 = vrot.slane %v1088, 1
        %v1103 = vsel %vm776, %v1101, %v1102
        %1104 = vrot.lane.b32.xlu0 %v1097, 95
        %v1105 = vpop.permute.xlu0 %1104
        %1106 = vrot.lane.b32.xlu0 %v1100, 95
        %v1107 = vpop.permute.xlu0 %1106
        %1108 = vrot.lane.b32.xlu0 %v1103, 95
        %v1109 = vpop.permute.xlu0 %1108
        %v1110 = vsel %vm1004, %v1105, %v1107
        %v1111 = vsel %vm1004, %v1107, %v1109
        %v1114 = vadd.f32 %v1079, %v1110
        %v1115 = vadd.f32 %v1080, %v1111
        %s1116 = sld [smem:[#allocation4 + $0x13]]
        %v1117 = vstv %s1116
        %v1118 = vmul.f32 %v1117, %v684
        %v1119 = vmul.f32 %v1117, %v685
        %v1120 = vmul.f32 %v1117, %v686
        %v1121 = vmul.f32 %v1117, %v687
        %v1122 = vmul.f32 %v1117, %v688
        %v1123 = vmul.f32 %v1117, %v689
        %v1130 = vrot.slane %v1118, 2
        %v1131 = vrot.slane %v1121, 2
        %v1132 = vsel %vm867, %v1130, %v1131
        %v1133 = vrot.slane %v1119, 2
        %v1134 = vrot.slane %v1122, 2
        %v1135 = vsel %vm867, %v1133, %v1134
        %v1136 = vrot.slane %v1120, 2
        %v1137 = vrot.slane %v1123, 2
        %v1138 = vsel %vm867, %v1136, %v1137
        %1139 = vrot.lane.b32.xlu0 %v1132, 127
        %v1140 = vpop.permute.xlu0 %1139
        %1141 = vrot.lane.b32.xlu0 %v1135, 127
        %v1142 = vpop.permute.xlu0 %1141
        %1143 = vrot.lane.b32.xlu0 %v1138, 127
        %v1144 = vpop.permute.xlu0 %1143
        %v1145 = vsel %vm962, %v1140, %v1142
        %v1146 = vsel %vm962, %v1142, %v1144
        %v1149 = vadd.f32 %v1114, %v1145
        %v1150 = vadd.f32 %v1115, %v1146
        %s1151 = sld [smem:[#allocation4 + $0x16]]
        %v1152 = vstv %s1151
        %v1153 = vmul.f32 %v1152, %v684
        %v1154 = vmul.f32 %v1152, %v685
        %v1155 = vmul.f32 %v1152, %v686
        %v1156 = vmul.f32 %v1152, %v687
        %v1157 = vmul.f32 %v1152, %v688
        %v1158 = vmul.f32 %v1152, %v689
        %v1165 = vrot.slane %v1153, 2
        %v1166 = vrot.slane %v1156, 2
        %v1167 = vsel %vm867, %v1165, %v1166
        %v1168 = vrot.slane %v1154, 2
        %v1169 = vrot.slane %v1157, 2
        %v1170 = vsel %vm867, %v1168, %v1169
        %v1171 = vrot.slane %v1155, 2
        %v1172 = vrot.slane %v1158, 2
        %v1173 = vsel %vm867, %v1171, %v1172
        %1174 = vrot.lane.b32.xlu0 %v1167, 111
        %v1175 = vpop.permute.xlu0 %1174
        %1176 = vrot.lane.b32.xlu0 %v1170, 111
        %v1177 = vpop.permute.xlu0 %1176
        %1178 = vrot.lane.b32.xlu0 %v1173, 111
        %v1179 = vpop.permute.xlu0 %1178
        %v1180 = vsel %vm983, %v1175, %v1177
        %v1181 = vsel %vm983, %v1177, %v1179
        %v1184 = vadd.f32 %v1149, %v1180
        %v1185 = vadd.f32 %v1150, %v1181
        %s1186 = sld [smem:[#allocation4 + $0x19]]
        %v1187 = vstv %s1186
        %v1188 = vmul.f32 %v1187, %v684
        %v1189 = vmul.f32 %v1187, %v685
        %v1190 = vmul.f32 %v1187, %v686
        %v1191 = vmul.f32 %v1187, %v687
        %v1192 = vmul.f32 %v1187, %v688
        %v1193 = vmul.f32 %v1187, %v689
        %v1200 = vrot.slane %v1188, 2
        %v1201 = vrot.slane %v1191, 2
        %v1202 = vsel %vm867, %v1200, %v1201
        %v1203 = vrot.slane %v1189, 2
        %v1204 = vrot.slane %v1192, 2
        %v1205 = vsel %vm867, %v1203, %v1204
        %v1206 = vrot.slane %v1190, 2
        %v1207 = vrot.slane %v1193, 2
        %v1208 = vsel %vm867, %v1206, %v1207
        %1209 = vrot.lane.b32.xlu0 %v1202, 95
        %v1210 = vpop.permute.xlu0 %1209
        %1211 = vrot.lane.b32.xlu0 %v1205, 95
        %v1212 = vpop.permute.xlu0 %1211
        %1213 = vrot.lane.b32.xlu0 %v1208, 95
        %v1214 = vpop.permute.xlu0 %1213
        %v1215 = vsel %vm1004, %v1210, %v1212
        %v1216 = vsel %vm1004, %v1212, %v1214
        %v1219 = vadd.f32 %v1184, %v1215
        %v1220 = vadd.f32 %v1185, %v1216
        %s1221 = sld [smem:[#allocation4 + $0x2]]
        %v1222 = vstv %s1221
        %v1223 = vmul.f32 %v1222, %v709
        %v1224 = vmul.f32 %v1222, %v710
        %v1225 = vmul.f32 %v1222, %v711
        %1229 = vrot.lane.b32.xlu0 %v1223, 126
        %v1230 = vpop.permute.xlu0 %1229
        %1231 = vrot.lane.b32.xlu0 %v1224, 126
        %v1232 = vpop.permute.xlu0 %1231
        %1233 = vrot.lane.b32.xlu0 %v1225, 126
        %v1234 = vpop.permute.xlu0 %1233
        %vm1235 = vcmask 1031168
        %v1236 = vsel %vm1235, %v1230, %v1232
        %v1237 = vsel %vm1235, %v1232, %v1234
        %v1240 = vadd.f32 %v1219, %v1236
        %v1241 = vadd.f32 %v1220, %v1237
        %s1242 = sld [smem:[#allocation4 + $0x5]]
        %v1243 = vstv %s1242
        %v1244 = vmul.f32 %v1243, %v709
        %v1245 = vmul.f32 %v1243, %v710
        %v1246 = vmul.f32 %v1243, %v711
        %1250 = vrot.lane.b32.xlu0 %v1244, 110
        %v1251 = vpop.permute.xlu0 %1250
        %1252 = vrot.lane.b32.xlu0 %v1245, 110
        %v1253 = vpop.permute.xlu0 %1252
        %1254 = vrot.lane.b32.xlu0 %v1246, 110
        %v1255 = vpop.permute.xlu0 %1254
        %vm1256 = vcmask 900096
        %v1257 = vsel %vm1256, %v1251, %v1253
        %v1258 = vsel %vm1256, %v1253, %v1255
        %v1261 = vadd.f32 %v1240, %v1257
        %v1262 = vadd.f32 %v1241, %v1258
        %s1263 = sld [smem:[#allocation4 + $0x8]]
        %v1264 = vstv %s1263
        %v1265 = vmul.f32 %v1264, %v709
        %v1266 = vmul.f32 %v1264, %v710
        %v1267 = vmul.f32 %v1264, %v711
        %1271 = vrot.lane.b32.xlu0 %v1265, 94
        %v1272 = vpop.permute.xlu0 %1271
        %1273 = vrot.lane.b32.xlu0 %v1266, 94
        %v1274 = vpop.permute.xlu0 %1273
        %1275 = vrot.lane.b32.xlu0 %v1267, 94
        %v1276 = vpop.permute.xlu0 %1275
        %vm1277 = vcmask 769024
        %v1278 = vsel %vm1277, %v1272, %v1274
        %v1279 = vsel %vm1277, %v1274, %v1276
        %v1282 = vadd.f32 %v1261, %v1278
        %v1283 = vadd.f32 %v1262, %v1279
        %s1284 = sld [smem:[#allocation4 + $0xb]]
        %v1285 = vstv %s1284
        %v1286 = vmul.f32 %v1285, %v709
        %v1287 = vmul.f32 %v1285, %v710
        %v1288 = vmul.f32 %v1285, %v711
        %v1289 = vmul.f32 %v1285, %v712
        %v1290 = vmul.f32 %v1285, %v713
        %v1291 = vmul.f32 %v1285, %v714
        %v1298 = vrot.slane %v1286, 1
        %v1299 = vrot.slane %v1289, 1
        %v1300 = vsel %vm776, %v1298, %v1299
        %v1301 = vrot.slane %v1287, 1
        %v1302 = vrot.slane %v1290, 1
        %v1303 = vsel %vm776, %v1301, %v1302
        %v1304 = vrot.slane %v1288, 1
        %v1305 = vrot.slane %v1291, 1
        %v1306 = vsel %vm776, %v1304, %v1305
        %1307 = vrot.lane.b32.xlu0 %v1300, 126
        %v1308 = vpop.permute.xlu0 %1307
        %1309 = vrot.lane.b32.xlu0 %v1303, 126
        %v1310 = vpop.permute.xlu0 %1309
        %1311 = vrot.lane.b32.xlu0 %v1306, 126
        %v1312 = vpop.permute.xlu0 %1311
        %v1313 = vsel %vm1235, %v1308, %v1310
        %v1314 = vsel %vm1235, %v1310, %v1312
        %v1317 = vadd.f32 %v1282, %v1313
        %v1318 = vadd.f32 %v1283, %v1314
        %s1319 = sld [smem:[#allocation4 + $0xe]]
        %v1320 = vstv %s1319
        %v1321 = vmul.f32 %v1320, %v709
        %v1322 = vmul.f32 %v1320, %v710
        %v1323 = vmul.f32 %v1320, %v711
        %v1324 = vmul.f32 %v1320, %v712
        %v1325 = vmul.f32 %v1320, %v713
        %v1326 = vmul.f32 %v1320, %v714
        %v1333 = vrot.slane %v1321, 1
        %v1334 = vrot.slane %v1324, 1
        %v1335 = vsel %vm776, %v1333, %v1334
        %v1336 = vrot.slane %v1322, 1
        %v1337 = vrot.slane %v1325, 1
        %v1338 = vsel %vm776, %v1336, %v1337
        %v1339 = vrot.slane %v1323, 1
        %v1340 = vrot.slane %v1326, 1
        %v1341 = vsel %vm776, %v1339, %v1340
        %1342 = vrot.lane.b32.xlu0 %v1335, 110
        %v1343 = vpop.permute.xlu0 %1342
        %1344 = vrot.lane.b32.xlu0 %v1338, 110
        %v1345 = vpop.permute.xlu0 %1344
        %1346 = vrot.lane.b32.xlu0 %v1341, 110
        %v1347 = vpop.permute.xlu0 %1346
        %v1348 = vsel %vm1256, %v1343, %v1345
        %v1349 = vsel %vm1256, %v1345, %v1347
        %v1352 = vadd.f32 %v1317, %v1348
        %v1353 = vadd.f32 %v1318, %v1349
        %s1354 = sld [smem:[#allocation4 + $0x11]]
        %v1355 = vstv %s1354
        %v1356 = vmul.f32 %v1355, %v709
        %v1357 = vmul.f32 %v1355, %v710
        %v1358 = vmul.f32 %v1355, %v711
        %v1359 = vmul.f32 %v1355, %v712
        %v1360 = vmul.f32 %v1355, %v713
        %v1361 = vmul.f32 %v1355, %v714
        %v1368 = vrot.slane %v1356, 1
        %v1369 = vrot.slane %v1359, 1
        %v1370 = vsel %vm776, %v1368, %v1369
        %v1371 = vrot.slane %v1357, 1
        %v1372 = vrot.slane %v1360, 1
        %v1373 = vsel %vm776, %v1371, %v1372
        %v1374 = vrot.slane %v1358, 1
        %v1375 = vrot.slane %v1361, 1
        %v1376 = vsel %vm776, %v1374, %v1375
        %1377 = vrot.lane.b32.xlu0 %v1370, 94
        %v1378 = vpop.permute.xlu0 %1377
        %1379 = vrot.lane.b32.xlu0 %v1373, 94
        %v1380 = vpop.permute.xlu0 %1379
        %1381 = vrot.lane.b32.xlu0 %v1376, 94
        %v1382 = vpop.permute.xlu0 %1381
        %v1383 = vsel %vm1277, %v1378, %v1380
        %v1384 = vsel %vm1277, %v1380, %v1382
        %v1387 = vadd.f32 %v1352, %v1383
        %v1388 = vadd.f32 %v1353, %v1384
        %s1389 = sld [smem:[#allocation4 + $0x14]]
        %v1390 = vstv %s1389
        %v1391 = vmul.f32 %v1390, %v709
        %v1392 = vmul.f32 %v1390, %v710
        %v1393 = vmul.f32 %v1390, %v711
        %v1394 = vmul.f32 %v1390, %v712
        %v1395 = vmul.f32 %v1390, %v713
        %v1396 = vmul.f32 %v1390, %v714
        %v1403 = vrot.slane %v1391, 2
        %v1404 = vrot.slane %v1394, 2
        %v1405 = vsel %vm867, %v1403, %v1404
        %v1406 = vrot.slane %v1392, 2
        %v1407 = vrot.slane %v1395, 2
        %v1408 = vsel %vm867, %v1406, %v1407
        %v1409 = vrot.slane %v1393, 2
        %v1410 = vrot.slane %v1396, 2
        %v1411 = vsel %vm867, %v1409, %v1410
        %1412 = vrot.lane.b32.xlu0 %v1405, 126
        %v1413 = vpop.permute.xlu0 %1412
        %1414 = vrot.lane.b32.xlu0 %v1408, 126
        %v1415 = vpop.permute.xlu0 %1414
        %1416 = vrot.lane.b32.xlu0 %v1411, 126
        %v1417 = vpop.permute.xlu0 %1416
        %v1418 = vsel %vm1235, %v1413, %v1415
        %v1419 = vsel %vm1235, %v1415, %v1417
        %v1422 = vadd.f32 %v1387, %v1418
        %v1423 = vadd.f32 %v1388, %v1419
        %s1424 = sld [smem:[#allocation4 + $0x17]]
        %v1425 = vstv %s1424
        %v1426 = vmul.f32 %v1425, %v709
        %v1427 = vmul.f32 %v1425, %v710
        %v1428 = vmul.f32 %v1425, %v711
        %v1429 = vmul.f32 %v1425, %v712
        %v1430 = vmul.f32 %v1425, %v713
        %v1431 = vmul.f32 %v1425, %v714
        %v1438 = vrot.slane %v1426, 2
        %v1439 = vrot.slane %v1429, 2
        %v1440 = vsel %vm867, %v1438, %v1439
        %v1441 = vrot.slane %v1427, 2
        %v1442 = vrot.slane %v1430, 2
        %v1443 = vsel %vm867, %v1441, %v1442
        %v1444 = vrot.slane %v1428, 2
        %v1445 = vrot.slane %v1431, 2
        %v1446 = vsel %vm867, %v1444, %v1445
        %1447 = vrot.lane.b32.xlu0 %v1440, 110
        %v1448 = vpop.permute.xlu0 %1447
        %1449 = vrot.lane.b32.xlu0 %v1443, 110
        %v1450 = vpop.permute.xlu0 %1449
        %1451 = vrot.lane.b32.xlu0 %v1446, 110
        %v1452 = vpop.permute.xlu0 %1451
        %v1453 = vsel %vm1256, %v1448, %v1450
        %v1454 = vsel %vm1256, %v1450, %v1452
        %v1457 = vadd.f32 %v1422, %v1453
        %v1458 = vadd.f32 %v1423, %v1454
        %s1459 = sld [smem:[#allocation4 + $0x1a]]
        %v1460 = vstv %s1459
        %v1461 = vmul.f32 %v1460, %v709
        %v1462 = vmul.f32 %v1460, %v710
        %v1463 = vmul.f32 %v1460, %v711
        %v1464 = vmul.f32 %v1460, %v712
        %v1465 = vmul.f32 %v1460, %v713
        %v1466 = vmul.f32 %v1460, %v714
        %v1473 = vrot.slane %v1461, 2
        %v1474 = vrot.slane %v1464, 2
        %v1475 = vsel %vm867, %v1473, %v1474
        %v1476 = vrot.slane %v1462, 2
        %v1477 = vrot.slane %v1465, 2
        %v1478 = vsel %vm867, %v1476, %v1477
        %v1479 = vrot.slane %v1463, 2
        %v1480 = vrot.slane %v1466, 2
        %v1481 = vsel %vm867, %v1479, %v1480
        %1482 = vrot.lane.b32.xlu0 %v1475, 94
        %v1483 = vpop.permute.xlu0 %1482
        %1484 = vrot.lane.b32.xlu0 %v1478, 94
        %v1485 = vpop.permute.xlu0 %1484
        %1486 = vrot.lane.b32.xlu0 %v1481, 94
        %v1487 = vpop.permute.xlu0 %1486
        %v1488 = vsel %vm1277, %v1483, %v1485
        %v1489 = vsel %vm1277, %v1485, %v1487
        %v1492 = vadd.f32 %v1457, %v1488
        %v1493 = vadd.f32 %v1458, %v1489
        %v1494 = vxor.u32 %v1492, 2147483648
        %v1495 = vxor.u32 %v1493, 2147483648
        %v1496 = vmul.f32 %v1494, 1.442695
        %v1497 = vpow.pop %v1496
        %v1498 = vmul.f32 %v1495, 1.442695
        %v1499 = vpow.pop %v1498
        %v1500 = vadd.f32 %v1497, 1.0
        %v1501 = vadd.f32 %v1499, 1.0
        %v1502 = vrcp.pop %v1500
        %v1503 = vmul.f32 %v1500, %v1502
        %v1504 = vsub.f32 1.0, %v1503
        %v1505 = vmul.f32 %v1502, %v1504
        %v1506 = vadd.f32 %v1502, %v1505
        %vm1507 = vweird.f32 %v1500
        %vm1508 = vweird.f32 %v1502
        %vm1509 = vmor %vm1507, %vm1508
        %v1510 = vsel %vm1509, %v1502, %v1506
        %v1511 = vand.u32 2147483647, %v1500
        %vm1512 = vcmp.eq.f32.partialorder %v1511, 8.507059e+37
        %v1513 = vand.u32 %v1500, 2147483648
        %v1514 = vor.u32 1.1754944e-38, %v1513
        %v1515 = vsel %vm1512, %v1514, %v1510
        %v1516 = vmul.f32 1.0, %v1515
        %v1517 = vrcp.pop %v1501
        %v1518 = vmul.f32 %v1501, %v1517
        %v1519 = vsub.f32 1.0, %v1518
        %v1520 = vmul.f32 %v1517, %v1519
        %v1521 = vadd.f32 %v1517, %v1520
        %vm1522 = vweird.f32 %v1501
        %vm1523 = vweird.f32 %v1517
        %vm1524 = vmor %vm1522, %vm1523
        %v1525 = vsel %vm1524, %v1517, %v1521
        %v1526 = vand.u32 2147483647, %v1501
        %vm1527 = vcmp.eq.f32.partialorder %v1526, 8.507059e+37
        %v1528 = vand.u32 %v1501, 2147483648
        %v1529 = vor.u32 1.1754944e-38, %v1528
        %v1530 = vsel %vm1527, %v1529, %v1525
        %v1531 = vmul.f32 1.0, %v1530
        %v1532 = vld [vmem:[%s3] sm:$0xff]
        %v1533 = vld [vmem:[%s3 + $0x8] sm:$0xff]
        %v1534 = vld [vmem:[%s3 + $0x10] sm:$0xff]
        %v1535 = vld [vmem:[%s3 + $0x18] sm:$0xff]
        %v1536 = vld [vmem:[%s3 + $0x20] sm:$0xff]
        %v1537 = vld [vmem:[%s3 + $0x28] sm:$0xff]
        %v1538 = vld [vmem:[%s3 + $0x30] sm:$0xff]
        %v1539 = vld [vmem:[%s3 + $0x38] sm:$0xff]
        %v1540 = vld [vmem:[%s3 + $0x40] sm:$0xff]
        %v1541 = vld [vmem:[%s3 + $0x48] sm:$0xff]
        %v1542 = vld [vmem:[%s3 + $0x50] sm:$0xff]
        %v1543 = vld [vmem:[%s3 + $0x58] sm:$0xff]
        %v1544 = vld [vmem:[%s3 + $0x60] sm:$0xff]
        %v1545 = vld [vmem:[%s3 + $0x68] sm:$0xff]
        %v1546 = vld [vmem:[%s3 + $0x70] sm:$0xff]
        %v1547 = vld [vmem:[%s3 + $0x78] sm:$0xff]
        %v1548 = vld [vmem:[%s3 + $0x80] sm:$0xff]
        %v1549 = vld [vmem:[%s3 + $0x88] sm:$0xff]
        %v1550 = vld [vmem:[%s3 + $0x90] sm:$0xff]
        %v1551 = vld [vmem:[%s3 + $0x98] sm:$0xff]
        %v1552 = vld [vmem:[%s3 + $0xa0] sm:$0xff]
        %v1553 = vld [vmem:[%s3 + $0xa8] sm:$0xff]
        %v1554 = vld [vmem:[%s3 + $0xb0] sm:$0xff]
        %v1555 = vld [vmem:[%s3 + $0xb8] sm:$0xff]
        %v1556 = vld [vmem:[%s3 + $0xc0] sm:$0xff]
        %v1557 = vld [vmem:[%s3 + $0xc8] sm:$0xff]
        %v1558 = vld [vmem:[%s3 + $0xd0] sm:$0xff]
        %v1559 = vld [vmem:[%s3 + $0xd8] sm:$0xff]
        %v1560 = vld [vmem:[%s3 + $0xe0] sm:$0xff]
        %v1561 = vld [vmem:[%s3 + $0xe8] sm:$0xff]
        %v1562 = vld [vmem:[%s3 + $0xf0] sm:$0xff]
        %v1563 = vld [vmem:[%s3 + $0xf8] sm:$0xff]
        %1564 = vmatpush.msra.mxu0 %v1547
        %1565 = vmatpush.msra.mxu0 %v1546
        %1566 = vmatpush.msra.mxu0 %v1545
        %1567 = vmatpush.msra.mxu0 %v1544
        %1568 = vmatpush.msra.mxu0 %v1543
        %1569 = vmatpush.msra.mxu0 %v1542
        %1570 = vmatpush.msra.mxu0 %v1541
        %1571 = vmatpush.msra.mxu0 %v1540
        %1572 = vmatpush.msra.mxu0 %v1539
        %1573 = vmatpush.msra.mxu0 %v1538
        %1574 = vmatpush.msra.mxu0 %v1537
        %1575 = vmatpush.msra.mxu0 %v1536
        %1576 = vmatpush.msra.mxu0 %v1535
        %1577 = vmatpush.msra.mxu0 %v1534
        %1578 = vmatpush.msra.mxu0 %v1533
        %1579 = vmatpush.msra.mxu0 %v1532
        %1580 = vmatmul.f32.gmra.mxu0 %v593
        %v1581 = vpop.f32.mrf.mxu0
        %v1582 = vadd.f32 0.0, %v1581
        %1583 = vdwg.mxu0
        %1584 = vmatpush.msra.mxu0 %v1563
        %1585 = vmatpush.msra.mxu0 %v1562
        %1586 = vmatpush.msra.mxu0 %v1561
        %1587 = vmatpush.msra.mxu0 %v1560
        %1588 = vmatpush.msra.mxu0 %v1559
        %1589 = vmatpush.msra.mxu0 %v1558
        %1590 = vmatpush.msra.mxu0 %v1557
        %1591 = vmatpush.msra.mxu0 %v1556
        %1592 = vmatpush.msra.mxu0 %v1555
        %1593 = vmatpush.msra.mxu0 %v1554
        %1594 = vmatpush.msra.mxu0 %v1553
        %1595 = vmatpush.msra.mxu0 %v1552
        %1596 = vmatpush.msra.mxu0 %v1551
        %1597 = vmatpush.msra.mxu0 %v1550
        %1598 = vmatpush.msra.mxu0 %v1549
        %1599 = vmatpush.msra.mxu0 %v1548
        %1600 = vmatmul.f32.gmra.mxu0 %v616
        %v1601 = vpop.f32.mrf.mxu0
        %v1602 = vadd.f32 %v1582, %v1601
        %1603 = vdwg.mxu0
        %v1604 = vld [vmem:[%s4] sm:$0xff]
        %v1605 = vld [vmem:[%s4 + $0x8] sm:$0xff]
        %v1606 = vld [vmem:[%s4 + $0x10] sm:$0xff]
        %v1607 = vld [vmem:[%s4 + $0x18] sm:$0xff]
        %v1608 = vld [vmem:[%s4 + $0x20] sm:$0xff]
        %v1609 = vld [vmem:[%s4 + $0x28] sm:$0xff]
        %v1610 = vld [vmem:[%s4 + $0x30] sm:$0xff]
        %v1611 = vld [vmem:[%s4 + $0x38] sm:$0xff]
        %v1612 = vld [vmem:[%s4 + $0x40] sm:$0xff]
        %v1613 = vld [vmem:[%s4 + $0x48] sm:$0xff]
        %v1614 = vld [vmem:[%s4 + $0x50] sm:$0xff]
        %v1615 = vld [vmem:[%s4 + $0x58] sm:$0xff]
        %v1616 = vld [vmem:[%s4 + $0x60] sm:$0xff]
        %v1617 = vld [vmem:[%s4 + $0x68] sm:$0xff]
        %v1618 = vld [vmem:[%s4 + $0x70] sm:$0xff]
        %v1619 = vld [vmem:[%s4 + $0x78] sm:$0xff]
        %v1620 = vld [vmem:[%s4 + $0x80] sm:$0xff]
        %v1621 = vld [vmem:[%s4 + $0x88] sm:$0xff]
        %v1622 = vld [vmem:[%s4 + $0x90] sm:$0xff]
        %v1623 = vld [vmem:[%s4 + $0x98] sm:$0xff]
        %v1624 = vld [vmem:[%s4 + $0xa0] sm:$0xff]
        %v1625 = vld [vmem:[%s4 + $0xa8] sm:$0xff]
        %v1626 = vld [vmem:[%s4 + $0xb0] sm:$0xff]
        %v1627 = vld [vmem:[%s4 + $0xb8] sm:$0xff]
        %v1628 = vld [vmem:[%s4 + $0xc0] sm:$0xff]
        %v1629 = vld [vmem:[%s4 + $0xc8] sm:$0xff]
        %v1630 = vld [vmem:[%s4 + $0xd0] sm:$0xff]
        %v1631 = vld [vmem:[%s4 + $0xd8] sm:$0xff]
        %v1632 = vld [vmem:[%s4 + $0xe0] sm:$0xff]
        %v1633 = vld [vmem:[%s4 + $0xe8] sm:$0xff]
        %v1634 = vld [vmem:[%s4 + $0xf0] sm:$0xff]
        %v1635 = vld [vmem:[%s4 + $0xf8] sm:$0xff]
        %1636 = vmatpush.msra.mxu0 %v1619
        %1637 = vmatpush.msra.mxu0 %v1618
        %1638 = vmatpush.msra.mxu0 %v1617
        %1639 = vmatpush.msra.mxu0 %v1616
        %1640 = vmatpush.msra.mxu0 %v1615
        %1641 = vmatpush.msra.mxu0 %v1614
        %1642 = vmatpush.msra.mxu0 %v1613
        %1643 = vmatpush.msra.mxu0 %v1612
        %1644 = vmatpush.msra.mxu0 %v1611
        %1645 = vmatpush.msra.mxu0 %v1610
        %1646 = vmatpush.msra.mxu0 %v1609
        %1647 = vmatpush.msra.mxu0 %v1608
        %1648 = vmatpush.msra.mxu0 %v1607
        %1649 = vmatpush.msra.mxu0 %v1606
        %1650 = vmatpush.msra.mxu0 %v1605
        %1651 = vmatpush.msra.mxu0 %v1604
        %1652 = vmatmul.f32.gmra.mxu0 %v593
        %v1653 = vpop.f32.mrf.mxu0
        %v1654 = vadd.f32 0.0, %v1653
        %1655 = vdwg.mxu0
        %1656 = vmatpush.msra.mxu0 %v1635
        %1657 = vmatpush.msra.mxu0 %v1634
        %1658 = vmatpush.msra.mxu0 %v1633
        %1659 = vmatpush.msra.mxu0 %v1632
        %1660 = vmatpush.msra.mxu0 %v1631
        %1661 = vmatpush.msra.mxu0 %v1630
        %1662 = vmatpush.msra.mxu0 %v1629
        %1663 = vmatpush.msra.mxu0 %v1628
        %1664 = vmatpush.msra.mxu0 %v1627
        %1665 = vmatpush.msra.mxu0 %v1626
        %1666 = vmatpush.msra.mxu0 %v1625
        %1667 = vmatpush.msra.mxu0 %v1624
        %1668 = vmatpush.msra.mxu0 %v1623
        %1669 = vmatpush.msra.mxu0 %v1622
        %1670 = vmatpush.msra.mxu0 %v1621
        %1671 = vmatpush.msra.mxu0 %v1620
        %1672 = vmatmul.f32.gmra.mxu0 %v616
        %v1673 = vpop.f32.mrf.mxu0
        %v1674 = vadd.f32 %v1654, %v1673
        %1675 = vdwg.mxu0
        %v1676 = vld [vmem:[%s5] sm:$0xff]
        %v1677 = vld [vmem:[%s5 + $0x8] sm:$0xff]
        %1679 = vset.pattern.permute.xlu0 0
        %1680 = vperm.xlu0 %1679, %v1676
        %v1681 = vpop.permute.xlu0 %1680
        %1684 = vset.pattern.permute.xlu0 0
        %1685 = vperm.xlu0 %1684, %v1677
        %v1686 = vpop.permute.xlu0 %1685
        %v1688 = vmul.f32 %v1681, %v1602
        %v1689 = vmul.f32 %v1686, %v1602
        %v1690 = vld [vmem:[%s6] sm:$0xff]
        %v1691 = vld [vmem:[%s6 + $0x8] sm:$0xff]
        %1693 = vset.pattern.permute.xlu0 0
        %1694 = vperm.xlu0 %1693, %v1690
        %v1695 = vpop.permute.xlu0 %1694
        %1698 = vset.pattern.permute.xlu0 0
        %1699 = vperm.xlu0 %1698, %v1691
        %v1700 = vpop.permute.xlu0 %1699
        %v1702 = vadd.f32 %v1688, %v1695
        %v1703 = vadd.f32 %v1689, %v1700
        %v1704 = vmax.f32 %v1702, 0.0
        %v1705 = vmax.f32 %v1703, 0.0
        %v1706 = vmul.f32 %v1681, %v1674
        %v1707 = vmul.f32 %v1686, %v1674
        %v1708 = vadd.f32 %v1706, %v1695
        %v1709 = vadd.f32 %v1707, %v1700
        %v1710 = vmax.f32 %v1708, 0.0
        %v1711 = vmax.f32 %v1709, 0.0
        %v1712 = vld [vmem:[%s7] sm:$0xff]
        %v1713 = vld [vmem:[%s7 + $0x8] sm:$0xff]
        %v1714 = vld [vmem:[%s7 + $0x10] sm:$0xff]
        %v1715 = vld [vmem:[%s7 + $0x18] sm:$0xff]
        %v1716 = vld [vmem:[%s7 + $0x20] sm:$0xff]
        %v1717 = vld [vmem:[%s7 + $0x28] sm:$0xff]
        %v1718 = vld [vmem:[%s7 + $0x30] sm:$0xff]
        %v1719 = vld [vmem:[%s7 + $0x38] sm:$0xff]
        %v1720 = vld [vmem:[%s7 + $0x40] sm:$0xff]
        %v1721 = vld [vmem:[%s7 + $0x48] sm:$0xff]
        %v1722 = vld [vmem:[%s7 + $0x50] sm:$0xff]
        %v1723 = vld [vmem:[%s7 + $0x58] sm:$0xff]
        %v1724 = vld [vmem:[%s7 + $0x60] sm:$0xff]
        %v1725 = vld [vmem:[%s7 + $0x68] sm:$0xff]
        %v1726 = vld [vmem:[%s7 + $0x70] sm:$0xff]
        %v1727 = vld [vmem:[%s7 + $0x78] sm:$0xff]
        %v1728 = vld [vmem:[%s8] sm:$0xff]
        %v1729 = vld [vmem:[%s8 + $0x8] sm:$0xff]
        %v1730 = vld [vmem:[%s8 + $0x10] sm:$0xff]
        %v1731 = vld [vmem:[%s8 + $0x18] sm:$0xff]
        %v1732 = vld [vmem:[%s8 + $0x20] sm:$0xff]
        %v1733 = vld [vmem:[%s8 + $0x28] sm:$0xff]
        %v1734 = vld [vmem:[%s8 + $0x30] sm:$0xff]
        %v1735 = vld [vmem:[%s8 + $0x38] sm:$0xff]
        %v1736 = vld [vmem:[%s8 + $0x40] sm:$0xff]
        %v1737 = vld [vmem:[%s8 + $0x48] sm:$0xff]
        %v1738 = vld [vmem:[%s8 + $0x50] sm:$0xff]
        %v1739 = vld [vmem:[%s8 + $0x58] sm:$0xff]
        %v1740 = vld [vmem:[%s8 + $0x60] sm:$0xff]
        %v1741 = vld [vmem:[%s8 + $0x68] sm:$0xff]
        %v1742 = vld [vmem:[%s8 + $0x70] sm:$0xff]
        %v1743 = vld [vmem:[%s8 + $0x78] sm:$0xff]
        %1745 = vset.pattern.permute.xlu0 0
        %1746 = vperm.xlu0 %1745, %v1728
        %v1747 = vpop.permute.xlu0 %1746
        %1750 = vset.pattern.permute.xlu0 0
        %1751 = vperm.xlu0 %1750, %v1729
        %v1752 = vpop.permute.xlu0 %1751
        %1755 = vset.pattern.permute.xlu0 0
        %1756 = vperm.xlu0 %1755, %v1730
        %v1757 = vpop.permute.xlu0 %1756
        %1760 = vset.pattern.permute.xlu0 0
        %1761 = vperm.xlu0 %1760, %v1731
        %v1762 = vpop.permute.xlu0 %1761
        %1765 = vset.pattern.permute.xlu0 0
        %1766 = vperm.xlu0 %1765, %v1732
        %v1767 = vpop.permute.xlu0 %1766
        %1770 = vset.pattern.permute.xlu0 0
        %1771 = vperm.xlu0 %1770, %v1733
        %v1772 = vpop.permute.xlu0 %1771
        %1775 = vset.pattern.permute.xlu0 0
        %1776 = vperm.xlu0 %1775, %v1734
        %v1777 = vpop.permute.xlu0 %1776
        %1780 = vset.pattern.permute.xlu0 0
        %1781 = vperm.xlu0 %1780, %v1735
        %v1782 = vpop.permute.xlu0 %1781
        %1785 = vset.pattern.permute.xlu0 0
        %1786 = vperm.xlu0 %1785, %v1736
        %v1787 = vpop.permute.xlu0 %1786
        %1790 = vset.pattern.permute.xlu0 0
        %1791 = vperm.xlu0 %1790, %v1737
        %v1792 = vpop.permute.xlu0 %1791
        %1795 = vset.pattern.permute.xlu0 0
        %1796 = vperm.xlu0 %1795, %v1738
        %v1797 = vpop.permute.xlu0 %1796
        %1800 = vset.pattern.permute.xlu0 0
        %1801 = vperm.xlu0 %1800, %v1739
        %v1802 = vpop.permute.xlu0 %1801
        %1805 = vset.pattern.permute.xlu0 0
        %1806 = vperm.xlu0 %1805, %v1740
        %v1807 = vpop.permute.xlu0 %1806
        %1810 = vset.pattern.permute.xlu0 0
        %1811 = vperm.xlu0 %1810, %v1741
        %v1812 = vpop.permute.xlu0 %1811
        %1815 = vset.pattern.permute.xlu0 0
        %1816 = vperm.xlu0 %1815, %v1742
        %v1817 = vpop.permute.xlu0 %1816
        %1820 = vset.pattern.permute.xlu0 0
        %1821 = vperm.xlu0 %1820, %v1743
        %v1822 = vpop.permute.xlu0 %1821
        %vm1824 = vcmask 130048
        %v1826 = vsel %vm1824, %v1712, 0
        %v1829 = vsel %vm1824, %v1713, 0
        %v1832 = vsel %vm1824, %v1714, 0
        %v1835 = vsel %vm1824, %v1715, 0
        %v1838 = vsel %vm1824, %v1716, 0
        %v1841 = vsel %vm1824, %v1717, 0
        %v1844 = vsel %vm1824, %v1718, 0
        %v1847 = vsel %vm1824, %v1719, 0
        %v1850 = vsel %vm1824, %v1720, 0
        %v1853 = vsel %vm1824, %v1721, 0
        %v1856 = vsel %vm1824, %v1722, 0
        %v1859 = vsel %vm1824, %v1723, 0
        %v1862 = vsel %vm1824, %v1724, 0
        %v1865 = vsel %vm1824, %v1725, 0
        %v1868 = vsel %vm1824, %v1726, 0
        %v1871 = vsel %vm1824, %v1727, 0
        %1873 = vmatpush.msra.mxu0 0.0
        %1874 = vmatpush.msra.mxu0 0.0
        %1875 = vmatpush.msra.mxu0 0.0
        %1876 = vmatpush.msra.mxu0 0.0
        %1877 = vmatpush.msra.mxu0 0.0
        %1878 = vmatpush.msra.mxu0 0.0
        %1879 = vmatpush.msra.mxu0 0.0
        %1880 = vmatpush.msra.mxu0 0.0
        %1881 = vmatpush.msra.mxu0 0.0
        %1882 = vmatpush.msra.mxu0 0.0
        %1883 = vmatpush.msra.mxu0 0.0
        %1884 = vmatpush.msra.mxu0 0.0
        %1885 = vmatpush.msra.mxu0 0.0
        %1886 = vmatpush.msra.mxu0 0.0
        %1887 = vmatpush.msra.mxu0 %v1705
        %1888 = vmatpush.msra.mxu0 %v1704
        %1889 = vmatmul.f32.gmra.mxu0 %v1826
        %v1890 = vpop.f32.mrf.mxu0
        %v1891 = vadd.f32 %v1747, %v1890
        %1892 = vmatmul.f32.gmra.mxu0 %v1829
        %v1893 = vpop.f32.mrf.mxu0
        %v1894 = vadd.f32 %v1752, %v1893
        %1895 = vmatmul.f32.gmra.mxu0 %v1832
        %v1896 = vpop.f32.mrf.mxu0
        %v1897 = vadd.f32 %v1757, %v1896
        %1898 = vmatmul.f32.gmra.mxu0 %v1835
        %v1899 = vpop.f32.mrf.mxu0
        %v1900 = vadd.f32 %v1762, %v1899
        %1901 = vmatmul.f32.gmra.mxu0 %v1838
        %v1902 = vpop.f32.mrf.mxu0
        %v1903 = vadd.f32 %v1767, %v1902
        %1904 = vmatmul.f32.gmra.mxu0 %v1841
        %v1905 = vpop.f32.mrf.mxu0
        %v1906 = vadd.f32 %v1772, %v1905
        %1907 = vmatmul.f32.gmra.mxu0 %v1844
        %v1908 = vpop.f32.mrf.mxu0
        %v1909 = vadd.f32 %v1777, %v1908
        %1910 = vmatmul.f32.gmra.mxu0 %v1847
        %v1911 = vpop.f32.mrf.mxu0
        %v1912 = vadd.f32 %v1782, %v1911
        %1913 = vmatmul.f32.gmra.mxu0 %v1850
        %v1914 = vpop.f32.mrf.mxu0
        %v1915 = vadd.f32 %v1787, %v1914
        %1916 = vmatmul.f32.gmra.mxu0 %v1853
        %v1917 = vpop.f32.mrf.mxu0
        %v1918 = vadd.f32 %v1792, %v1917
        %1919 = vmatmul.f32.gmra.mxu0 %v1856
        %v1920 = vpop.f32.mrf.mxu0
        %v1921 = vadd.f32 %v1797, %v1920
        %1922 = vmatmul.f32.gmra.mxu0 %v1859
        %v1923 = vpop.f32.mrf.mxu0
        %v1924 = vadd.f32 %v1802, %v1923
        %1925 = vmatmul.f32.gmra.mxu0 %v1862
        %v1926 = vpop.f32.mrf.mxu0
        %v1927 = vadd.f32 %v1807, %v1926
        %1928 = vmatmul.f32.gmra.mxu0 %v1865
        %v1929 = vpop.f32.mrf.mxu0
        %v1930 = vadd.f32 %v1812, %v1929
        %1931 = vmatmul.f32.gmra.mxu0 %v1868
        %v1932 = vpop.f32.mrf.mxu0
        %v1933 = vadd.f32 %v1817, %v1932
        %1934 = vmatmul.f32.gmra.mxu0 %v1871
        %v1935 = vpop.f32.mrf.mxu0
        %v1936 = vadd.f32 %v1822, %v1935
        %1937 = vdwg.mxu0
        %v1938 = vxor.u32 %v1891, 2147483648
        %v1939 = vxor.u32 %v1894, 2147483648
        %v1940 = vxor.u32 %v1897, 2147483648
        %v1941 = vxor.u32 %v1900, 2147483648
        %v1942 = vxor.u32 %v1903, 2147483648
        %v1943 = vxor.u32 %v1906, 2147483648
        %v1944 = vxor.u32 %v1909, 2147483648
        %v1945 = vxor.u32 %v1912, 2147483648
        %v1946 = vxor.u32 %v1915, 2147483648
        %v1947 = vxor.u32 %v1918, 2147483648
        %v1948 = vxor.u32 %v1921, 2147483648
        %v1949 = vxor.u32 %v1924, 2147483648
        %v1950 = vxor.u32 %v1927, 2147483648
        %v1951 = vxor.u32 %v1930, 2147483648
        %v1952 = vxor.u32 %v1933, 2147483648
        %v1953 = vxor.u32 %v1936, 2147483648
        %v1954 = vmul.f32 %v1938, 1.442695
        %v1955 = vpow.pop %v1954
        %v1956 = vmul.f32 %v1939, 1.442695
        %v1957 = vpow.pop %v1956
        %v1958 = vmul.f32 %v1940, 1.442695
        %v1959 = vpow.pop %v1958
        %v1960 = vmul.f32 %v1941, 1.442695
        %v1961 = vpow.pop %v1960
        %v1962 = vmul.f32 %v1942, 1.442695
        %v1963 = vpow.pop %v1962
        %v1964 = vmul.f32 %v1943, 1.442695
        %v1965 = vpow.pop %v1964
        %v1966 = vmul.f32 %v1944, 1.442695
        %v1967 = vpow.pop %v1966
        %v1968 = vmul.f32 %v1945, 1.442695
        %v1969 = vpow.pop %v1968
        %v1970 = vmul.f32 %v1946, 1.442695
        %v1971 = vpow.pop %v1970
        %v1972 = vmul.f32 %v1947, 1.442695
        %v1973 = vpow.pop %v1972
        %v1974 = vmul.f32 %v1948, 1.442695
        %v1975 = vpow.pop %v1974
        %v1976 = vmul.f32 %v1949, 1.442695
        %v1977 = vpow.pop %v1976
        %v1978 = vmul.f32 %v1950, 1.442695
        %v1979 = vpow.pop %v1978
        %v1980 = vmul.f32 %v1951, 1.442695
        %v1981 = vpow.pop %v1980
        %v1982 = vmul.f32 %v1952, 1.442695
        %v1983 = vpow.pop %v1982
        %v1984 = vmul.f32 %v1953, 1.442695
        %v1985 = vpow.pop %v1984
        %v1986 = vadd.f32 %v1955, 1.0
        %v1987 = vadd.f32 %v1957, 1.0
        %v1988 = vadd.f32 %v1959, 1.0
        %v1989 = vadd.f32 %v1961, 1.0
        %v1990 = vadd.f32 %v1963, 1.0
        %v1991 = vadd.f32 %v1965, 1.0
        %v1992 = vadd.f32 %v1967, 1.0
        %v1993 = vadd.f32 %v1969, 1.0
        %v1994 = vadd.f32 %v1971, 1.0
        %v1995 = vadd.f32 %v1973, 1.0
        %v1996 = vadd.f32 %v1975, 1.0
        %v1997 = vadd.f32 %v1977, 1.0
        %v1998 = vadd.f32 %v1979, 1.0
        %v1999 = vadd.f32 %v1981, 1.0
        %v2000 = vadd.f32 %v1983, 1.0
        %v2001 = vadd.f32 %v1985, 1.0
        %v2002 = vrcp.pop %v1986
        %v2003 = vmul.f32 %v1986, %v2002
        %v2004 = vsub.f32 1.0, %v2003
        %v2005 = vmul.f32 %v2002, %v2004
        %v2006 = vadd.f32 %v2002, %v2005
        %vm2007 = vweird.f32 %v1986
        %vm2008 = vweird.f32 %v2002
        %vm2009 = vmor %vm2007, %vm2008
        %v2010 = vsel %vm2009, %v2002, %v2006
        %v2011 = vand.u32 2147483647, %v1986
        %vm2012 = vcmp.eq.f32.partialorder %v2011, 8.507059e+37
        %v2013 = vand.u32 %v1986, 2147483648
        %v2014 = vor.u32 1.1754944e-38, %v2013
        %v2015 = vsel %vm2012, %v2014, %v2010
        %v2016 = vmul.f32 1.0, %v2015
        %v2017 = vrcp.pop %v1987
        %v2018 = vmul.f32 %v1987, %v2017
        %v2019 = vsub.f32 1.0, %v2018
        %v2020 = vmul.f32 %v2017, %v2019
        %v2021 = vadd.f32 %v2017, %v2020
        %vm2022 = vweird.f32 %v1987
        %vm2023 = vweird.f32 %v2017
        %vm2024 = vmor %vm2022, %vm2023
        %v2025 = vsel %vm2024, %v2017, %v2021
        %v2026 = vand.u32 2147483647, %v1987
        %vm2027 = vcmp.eq.f32.partialorder %v2026, 8.507059e+37
        %v2028 = vand.u32 %v1987, 2147483648
        %v2029 = vor.u32 1.1754944e-38, %v2028
        %v2030 = vsel %vm2027, %v2029, %v2025
        %v2031 = vmul.f32 1.0, %v2030
        %v2032 = vrcp.pop %v1988
        %v2033 = vmul.f32 %v1988, %v2032
        %v2034 = vsub.f32 1.0, %v2033
        %v2035 = vmul.f32 %v2032, %v2034
        %v2036 = vadd.f32 %v2032, %v2035
        %vm2037 = vweird.f32 %v1988
        %vm2038 = vweird.f32 %v2032
        %vm2039 = vmor %vm2037, %vm2038
        %v2040 = vsel %vm2039, %v2032, %v2036
        %v2041 = vand.u32 2147483647, %v1988
        %vm2042 = vcmp.eq.f32.partialorder %v2041, 8.507059e+37
        %v2043 = vand.u32 %v1988, 2147483648
        %v2044 = vor.u32 1.1754944e-38, %v2043
        %v2045 = vsel %vm2042, %v2044, %v2040
        %v2046 = vmul.f32 1.0, %v2045
        %v2047 = vrcp.pop %v1989
        %v2048 = vmul.f32 %v1989, %v2047
        %v2049 = vsub.f32 1.0, %v2048
        %v2050 = vmul.f32 %v2047, %v2049
        %v2051 = vadd.f32 %v2047, %v2050
        %vm2052 = vweird.f32 %v1989
        %vm2053 = vweird.f32 %v2047
        %vm2054 = vmor %vm2052, %vm2053
        %v2055 = vsel %vm2054, %v2047, %v2051
        %v2056 = vand.u32 2147483647, %v1989
        %vm2057 = vcmp.eq.f32.partialorder %v2056, 8.507059e+37
        %v2058 = vand.u32 %v1989, 2147483648
        %v2059 = vor.u32 1.1754944e-38, %v2058
        %v2060 = vsel %vm2057, %v2059, %v2055
        %v2061 = vmul.f32 1.0, %v2060
        %v2062 = vrcp.pop %v1990
        %v2063 = vmul.f32 %v1990, %v2062
        %v2064 = vsub.f32 1.0, %v2063
        %v2065 = vmul.f32 %v2062, %v2064
        %v2066 = vadd.f32 %v2062, %v2065
        %vm2067 = vweird.f32 %v1990
        %vm2068 = vweird.f32 %v2062
        %vm2069 = vmor %vm2067, %vm2068
        %v2070 = vsel %vm2069, %v2062, %v2066
        %v2071 = vand.u32 2147483647, %v1990
        %vm2072 = vcmp.eq.f32.partialorder %v2071, 8.507059e+37
        %v2073 = vand.u32 %v1990, 2147483648
        %v2074 = vor.u32 1.1754944e-38, %v2073
        %v2075 = vsel %vm2072, %v2074, %v2070
        %v2076 = vmul.f32 1.0, %v2075
        %v2077 = vrcp.pop %v1991
        %v2078 = vmul.f32 %v1991, %v2077
        %v2079 = vsub.f32 1.0, %v2078
        %v2080 = vmul.f32 %v2077, %v2079
        %v2081 = vadd.f32 %v2077, %v2080
        %vm2082 = vweird.f32 %v1991
        %vm2083 = vweird.f32 %v2077
        %vm2084 = vmor %vm2082, %vm2083
        %v2085 = vsel %vm2084, %v2077, %v2081
        %v2086 = vand.u32 2147483647, %v1991
        %vm2087 = vcmp.eq.f32.partialorder %v2086, 8.507059e+37
        %v2088 = vand.u32 %v1991, 2147483648
        %v2089 = vor.u32 1.1754944e-38, %v2088
        %v2090 = vsel %vm2087, %v2089, %v2085
        %v2091 = vmul.f32 1.0, %v2090
        %v2092 = vrcp.pop %v1992
        %v2093 = vmul.f32 %v1992, %v2092
        %v2094 = vsub.f32 1.0, %v2093
        %v2095 = vmul.f32 %v2092, %v2094
        %v2096 = vadd.f32 %v2092, %v2095
        %vm2097 = vweird.f32 %v1992
        %vm2098 = vweird.f32 %v2092
        %vm2099 = vmor %vm2097, %vm2098
        %v2100 = vsel %vm2099, %v2092, %v2096
        %v2101 = vand.u32 2147483647, %v1992
        %vm2102 = vcmp.eq.f32.partialorder %v2101, 8.507059e+37
        %v2103 = vand.u32 %v1992, 2147483648
        %v2104 = vor.u32 1.1754944e-38, %v2103
        %v2105 = vsel %vm2102, %v2104, %v2100
        %v2106 = vmul.f32 1.0, %v2105
        %v2107 = vrcp.pop %v1993
        %v2108 = vmul.f32 %v1993, %v2107
        %v2109 = vsub.f32 1.0, %v2108
        %v2110 = vmul.f32 %v2107, %v2109
        %v2111 = vadd.f32 %v2107, %v2110
        %vm2112 = vweird.f32 %v1993
        %vm2113 = vweird.f32 %v2107
        %vm2114 = vmor %vm2112, %vm2113
        %v2115 = vsel %vm2114, %v2107, %v2111
        %v2116 = vand.u32 2147483647, %v1993
        %vm2117 = vcmp.eq.f32.partialorder %v2116, 8.507059e+37
        %v2118 = vand.u32 %v1993, 2147483648
        %v2119 = vor.u32 1.1754944e-38, %v2118
        %v2120 = vsel %vm2117, %v2119, %v2115
        %v2121 = vmul.f32 1.0, %v2120
        %v2122 = vrcp.pop %v1994
        %v2123 = vmul.f32 %v1994, %v2122
        %v2124 = vsub.f32 1.0, %v2123
        %v2125 = vmul.f32 %v2122, %v2124
        %v2126 = vadd.f32 %v2122, %v2125
        %vm2127 = vweird.f32 %v1994
        %vm2128 = vweird.f32 %v2122
        %vm2129 = vmor %vm2127, %vm2128
        %v2130 = vsel %vm2129, %v2122, %v2126
        %v2131 = vand.u32 2147483647, %v1994
        %vm2132 = vcmp.eq.f32.partialorder %v2131, 8.507059e+37
        %v2133 = vand.u32 %v1994, 2147483648
        %v2134 = vor.u32 1.1754944e-38, %v2133
        %v2135 = vsel %vm2132, %v2134, %v2130
        %v2136 = vmul.f32 1.0, %v2135
        %v2137 = vrcp.pop %v1995
        %v2138 = vmul.f32 %v1995, %v2137
        %v2139 = vsub.f32 1.0, %v2138
        %v2140 = vmul.f32 %v2137, %v2139
        %v2141 = vadd.f32 %v2137, %v2140
        %vm2142 = vweird.f32 %v1995
        %vm2143 = vweird.f32 %v2137
        %vm2144 = vmor %vm2142, %vm2143
        %v2145 = vsel %vm2144, %v2137, %v2141
        %v2146 = vand.u32 2147483647, %v1995
        %vm2147 = vcmp.eq.f32.partialorder %v2146, 8.507059e+37
        %v2148 = vand.u32 %v1995, 2147483648
        %v2149 = vor.u32 1.1754944e-38, %v2148
        %v2150 = vsel %vm2147, %v2149, %v2145
        %v2151 = vmul.f32 1.0, %v2150
        %v2152 = vrcp.pop %v1996
        %v2153 = vmul.f32 %v1996, %v2152
        %v2154 = vsub.f32 1.0, %v2153
        %v2155 = vmul.f32 %v2152, %v2154
        %v2156 = vadd.f32 %v2152, %v2155
        %vm2157 = vweird.f32 %v1996
        %vm2158 = vweird.f32 %v2152
        %vm2159 = vmor %vm2157, %vm2158
        %v2160 = vsel %vm2159, %v2152, %v2156
        %v2161 = vand.u32 2147483647, %v1996
        %vm2162 = vcmp.eq.f32.partialorder %v2161, 8.507059e+37
        %v2163 = vand.u32 %v1996, 2147483648
        %v2164 = vor.u32 1.1754944e-38, %v2163
        %v2165 = vsel %vm2162, %v2164, %v2160
        %v2166 = vmul.f32 1.0, %v2165
        %v2167 = vrcp.pop %v1997
        %v2168 = vmul.f32 %v1997, %v2167
        %v2169 = vsub.f32 1.0, %v2168
        %v2170 = vmul.f32 %v2167, %v2169
        %v2171 = vadd.f32 %v2167, %v2170
        %vm2172 = vweird.f32 %v1997
        %vm2173 = vweird.f32 %v2167
        %vm2174 = vmor %vm2172, %vm2173
        %v2175 = vsel %vm2174, %v2167, %v2171
        %v2176 = vand.u32 2147483647, %v1997
        %vm2177 = vcmp.eq.f32.partialorder %v2176, 8.507059e+37
        %v2178 = vand.u32 %v1997, 2147483648
        %v2179 = vor.u32 1.1754944e-38, %v2178
        %v2180 = vsel %vm2177, %v2179, %v2175
        %v2181 = vmul.f32 1.0, %v2180
        %v2182 = vrcp.pop %v1998
        %v2183 = vmul.f32 %v1998, %v2182
        %v2184 = vsub.f32 1.0, %v2183
        %v2185 = vmul.f32 %v2182, %v2184
        %v2186 = vadd.f32 %v2182, %v2185
        %vm2187 = vweird.f32 %v1998
        %vm2188 = vweird.f32 %v2182
        %vm2189 = vmor %vm2187, %vm2188
        %v2190 = vsel %vm2189, %v2182, %v2186
        %v2191 = vand.u32 2147483647, %v1998
        %vm2192 = vcmp.eq.f32.partialorder %v2191, 8.507059e+37
        %v2193 = vand.u32 %v1998, 2147483648
        %v2194 = vor.u32 1.1754944e-38, %v2193
        %v2195 = vsel %vm2192, %v2194, %v2190
        %v2196 = vmul.f32 1.0, %v2195
        %v2197 = vrcp.pop %v1999
        %v2198 = vmul.f32 %v1999, %v2197
        %v2199 = vsub.f32 1.0, %v2198
        %v2200 = vmul.f32 %v2197, %v2199
        %v2201 = vadd.f32 %v2197, %v2200
        %vm2202 = vweird.f32 %v1999
        %vm2203 = vweird.f32 %v2197
        %vm2204 = vmor %vm2202, %vm2203
        %v2205 = vsel %vm2204, %v2197, %v2201
        %v2206 = vand.u32 2147483647, %v1999
        %vm2207 = vcmp.eq.f32.partialorder %v2206, 8.507059e+37
        %v2208 = vand.u32 %v1999, 2147483648
        %v2209 = vor.u32 1.1754944e-38, %v2208
        %v2210 = vsel %vm2207, %v2209, %v2205
        %v2211 = vmul.f32 1.0, %v2210
        %v2212 = vrcp.pop %v2000
        %v2213 = vmul.f32 %v2000, %v2212
        %v2214 = vsub.f32 1.0, %v2213
        %v2215 = vmul.f32 %v2212, %v2214
        %v2216 = vadd.f32 %v2212, %v2215
        %vm2217 = vweird.f32 %v2000
        %vm2218 = vweird.f32 %v2212
        %vm2219 = vmor %vm2217, %vm2218
        %v2220 = vsel %vm2219, %v2212, %v2216
        %v2221 = vand.u32 2147483647, %v2000
        %vm2222 = vcmp.eq.f32.partialorder %v2221, 8.507059e+37
        %v2223 = vand.u32 %v2000, 2147483648
        %v2224 = vor.u32 1.1754944e-38, %v2223
        %v2225 = vsel %vm2222, %v2224, %v2220
        %v2226 = vmul.f32 1.0, %v2225
        %v2227 = vrcp.pop %v2001
        %v2228 = vmul.f32 %v2001, %v2227
        %v2229 = vsub.f32 1.0, %v2228
        %v2230 = vmul.f32 %v2227, %v2229
        %v2231 = vadd.f32 %v2227, %v2230
        %vm2232 = vweird.f32 %v2001
        %vm2233 = vweird.f32 %v2227
        %vm2234 = vmor %vm2232, %vm2233
        %v2235 = vsel %vm2234, %v2227, %v2231
        %v2236 = vand.u32 2147483647, %v2001
        %vm2237 = vcmp.eq.f32.partialorder %v2236, 8.507059e+37
        %v2238 = vand.u32 %v2001, 2147483648
        %v2239 = vor.u32 1.1754944e-38, %v2238
        %v2240 = vsel %vm2237, %v2239, %v2235
        %v2241 = vmul.f32 1.0, %v2240
        %v2242 = vld [vmem:[%s9] sm:$0xff]
        %v2243 = vld [vmem:[%s9 + $0x8] sm:$0xff]
        %v2244 = vld [vmem:[%s9 + $0x10] sm:$0xff]
        %v2245 = vld [vmem:[%s9 + $0x18] sm:$0xff]
        %v2246 = vld [vmem:[%s9 + $0x20] sm:$0xff]
        %v2247 = vld [vmem:[%s9 + $0x28] sm:$0xff]
        %v2248 = vld [vmem:[%s9 + $0x30] sm:$0xff]
        %v2249 = vld [vmem:[%s9 + $0x38] sm:$0xff]
        %v2250 = vld [vmem:[%s9 + $0x40] sm:$0xff]
        %v2251 = vld [vmem:[%s9 + $0x48] sm:$0xff]
        %v2252 = vld [vmem:[%s9 + $0x50] sm:$0xff]
        %v2253 = vld [vmem:[%s9 + $0x58] sm:$0xff]
        %v2254 = vld [vmem:[%s9 + $0x60] sm:$0xff]
        %v2255 = vld [vmem:[%s9 + $0x68] sm:$0xff]
        %v2256 = vld [vmem:[%s9 + $0x70] sm:$0xff]
        %v2257 = vld [vmem:[%s9 + $0x78] sm:$0xff]
        %v2258 = vld [vmem:[%s10] sm:$0xff]
        %v2259 = vld [vmem:[%s10 + $0x8] sm:$0xff]
        %v2260 = vld [vmem:[%s10 + $0x10] sm:$0xff]
        %v2261 = vld [vmem:[%s10 + $0x18] sm:$0xff]
        %v2262 = vld [vmem:[%s10 + $0x20] sm:$0xff]
        %v2263 = vld [vmem:[%s10 + $0x28] sm:$0xff]
        %v2264 = vld [vmem:[%s10 + $0x30] sm:$0xff]
        %v2265 = vld [vmem:[%s10 + $0x38] sm:$0xff]
        %v2266 = vld [vmem:[%s10 + $0x40] sm:$0xff]
        %v2267 = vld [vmem:[%s10 + $0x48] sm:$0xff]
        %v2268 = vld [vmem:[%s10 + $0x50] sm:$0xff]
        %v2269 = vld [vmem:[%s10 + $0x58] sm:$0xff]
        %v2270 = vld [vmem:[%s10 + $0x60] sm:$0xff]
        %v2271 = vld [vmem:[%s10 + $0x68] sm:$0xff]
        %v2272 = vld [vmem:[%s10 + $0x70] sm:$0xff]
        %v2273 = vld [vmem:[%s10 + $0x78] sm:$0xff]
        %2275 = vset.pattern.permute.xlu0 0
        %2276 = vperm.xlu0 %2275, %v2258
        %v2277 = vpop.permute.xlu0 %2276
        %2280 = vset.pattern.permute.xlu0 0
        %2281 = vperm.xlu0 %2280, %v2259
        %v2282 = vpop.permute.xlu0 %2281
        %2285 = vset.pattern.permute.xlu0 0
        %2286 = vperm.xlu0 %2285, %v2260
        %v2287 = vpop.permute.xlu0 %2286
        %2290 = vset.pattern.permute.xlu0 0
        %2291 = vperm.xlu0 %2290, %v2261
        %v2292 = vpop.permute.xlu0 %2291
        %2295 = vset.pattern.permute.xlu0 0
        %2296 = vperm.xlu0 %2295, %v2262
        %v2297 = vpop.permute.xlu0 %2296
        %2300 = vset.pattern.permute.xlu0 0
        %2301 = vperm.xlu0 %2300, %v2263
        %v2302 = vpop.permute.xlu0 %2301
        %2305 = vset.pattern.permute.xlu0 0
        %2306 = vperm.xlu0 %2305, %v2264
        %v2307 = vpop.permute.xlu0 %2306
        %2310 = vset.pattern.permute.xlu0 0
        %2311 = vperm.xlu0 %2310, %v2265
        %v2312 = vpop.permute.xlu0 %2311
        %2315 = vset.pattern.permute.xlu0 0
        %2316 = vperm.xlu0 %2315, %v2266
        %v2317 = vpop.permute.xlu0 %2316
        %2320 = vset.pattern.permute.xlu0 0
        %2321 = vperm.xlu0 %2320, %v2267
        %v2322 = vpop.permute.xlu0 %2321
        %2325 = vset.pattern.permute.xlu0 0
        %2326 = vperm.xlu0 %2325, %v2268
        %v2327 = vpop.permute.xlu0 %2326
        %2330 = vset.pattern.permute.xlu0 0
        %2331 = vperm.xlu0 %2330, %v2269
        %v2332 = vpop.permute.xlu0 %2331
        %2335 = vset.pattern.permute.xlu0 0
        %2336 = vperm.xlu0 %2335, %v2270
        %v2337 = vpop.permute.xlu0 %2336
        %2340 = vset.pattern.permute.xlu0 0
        %2341 = vperm.xlu0 %2340, %v2271
        %v2342 = vpop.permute.xlu0 %2341
        %2345 = vset.pattern.permute.xlu0 0
        %2346 = vperm.xlu0 %2345, %v2272
        %v2347 = vpop.permute.xlu0 %2346
        %2350 = vset.pattern.permute.xlu0 0
        %2351 = vperm.xlu0 %2350, %v2273
        %v2352 = vpop.permute.xlu0 %2351
        %v2355 = vsel %vm1824, %v2242, 0
        %v2358 = vsel %vm1824, %v2243, 0
        %v2361 = vsel %vm1824, %v2244, 0
        %v2364 = vsel %vm1824, %v2245, 0
        %v2367 = vsel %vm1824, %v2246, 0
        %v2370 = vsel %vm1824, %v2247, 0
        %v2373 = vsel %vm1824, %v2248, 0
        %v2376 = vsel %vm1824, %v2249, 0
        %v2379 = vsel %vm1824, %v2250, 0
        %v2382 = vsel %vm1824, %v2251, 0
        %v2385 = vsel %vm1824, %v2252, 0
        %v2388 = vsel %vm1824, %v2253, 0
        %v2391 = vsel %vm1824, %v2254, 0
        %v2394 = vsel %vm1824, %v2255, 0
        %v2397 = vsel %vm1824, %v2256, 0
        %v2400 = vsel %vm1824, %v2257, 0
        %2402 = vmatpush.msra.mxu0 0.0
        %2403 = vmatpush.msra.mxu0 0.0
        %2404 = vmatpush.msra.mxu0 0.0
        %2405 = vmatpush.msra.mxu0 0.0
        %2406 = vmatpush.msra.mxu0 0.0
        %2407 = vmatpush.msra.mxu0 0.0
        %2408 = vmatpush.msra.mxu0 0.0
        %2409 = vmatpush.msra.mxu0 0.0
        %2410 = vmatpush.msra.mxu0 0.0
        %2411 = vmatpush.msra.mxu0 0.0
        %2412 = vmatpush.msra.mxu0 0.0
        %2413 = vmatpush.msra.mxu0 0.0
        %2414 = vmatpush.msra.mxu0 0.0
        %2415 = vmatpush.msra.mxu0 0.0
        %2416 = vmatpush.msra.mxu0 %v1711
        %2417 = vmatpush.msra.mxu0 %v1710
        %2418 = vmatmul.f32.gmra.mxu0 %v2355
        %v2419 = vpop.f32.mrf.mxu0
        %v2420 = vadd.f32 %v2277, %v2419
        %2421 = vmatmul.f32.gmra.mxu0 %v2358
        %v2422 = vpop.f32.mrf.mxu0
        %v2423 = vadd.f32 %v2282, %v2422
        %2424 = vmatmul.f32.gmra.mxu0 %v2361
        %v2425 = vpop.f32.mrf.mxu0
        %v2426 = vadd.f32 %v2287, %v2425
        %2427 = vmatmul.f32.gmra.mxu0 %v2364
        %v2428 = vpop.f32.mrf.mxu0
        %v2429 = vadd.f32 %v2292, %v2428
        %2430 = vmatmul.f32.gmra.mxu0 %v2367
        %v2431 = vpop.f32.mrf.mxu0
        %v2432 = vadd.f32 %v2297, %v2431
        %2433 = vmatmul.f32.gmra.mxu0 %v2370
        %v2434 = vpop.f32.mrf.mxu0
        %v2435 = vadd.f32 %v2302, %v2434
        %2436 = vmatmul.f32.gmra.mxu0 %v2373
        %v2437 = vpop.f32.mrf.mxu0
        %v2438 = vadd.f32 %v2307, %v2437
        %2439 = vmatmul.f32.gmra.mxu0 %v2376
        %v2440 = vpop.f32.mrf.mxu0
        %v2441 = vadd.f32 %v2312, %v2440
        %2442 = vmatmul.f32.gmra.mxu0 %v2379
        %v2443 = vpop.f32.mrf.mxu0
        %v2444 = vadd.f32 %v2317, %v2443
        %2445 = vmatmul.f32.gmra.mxu0 %v2382
        %v2446 = vpop.f32.mrf.mxu0
        %v2447 = vadd.f32 %v2322, %v2446
        %2448 = vmatmul.f32.gmra.mxu0 %v2385
        %v2449 = vpop.f32.mrf.mxu0
        %v2450 = vadd.f32 %v2327, %v2449
        %2451 = vmatmul.f32.gmra.mxu0 %v2388
        %v2452 = vpop.f32.mrf.mxu0
        %v2453 = vadd.f32 %v2332, %v2452
        %2454 = vmatmul.f32.gmra.mxu0 %v2391
        %v2455 = vpop.f32.mrf.mxu0
        %v2456 = vadd.f32 %v2337, %v2455
        %2457 = vmatmul.f32.gmra.mxu0 %v2394
        %v2458 = vpop.f32.mrf.mxu0
        %v2459 = vadd.f32 %v2342, %v2458
        %2460 = vmatmul.f32.gmra.mxu0 %v2397
        %v2461 = vpop.f32.mrf.mxu0
        %v2462 = vadd.f32 %v2347, %v2461
        %2463 = vmatmul.f32.gmra.mxu0 %v2400
        %v2464 = vpop.f32.mrf.mxu0
        %v2465 = vadd.f32 %v2352, %v2464
        %2466 = vdwg.mxu0
        %v2467 = vxor.u32 %v2420, 2147483648
        %v2468 = vxor.u32 %v2423, 2147483648
        %v2469 = vxor.u32 %v2426, 2147483648
        %v2470 = vxor.u32 %v2429, 2147483648
        %v2471 = vxor.u32 %v2432, 2147483648
        %v2472 = vxor.u32 %v2435, 2147483648
        %v2473 = vxor.u32 %v2438, 2147483648
        %v2474 = vxor.u32 %v2441, 2147483648
        %v2475 = vxor.u32 %v2444, 2147483648
        %v2476 = vxor.u32 %v2447, 2147483648
        %v2477 = vxor.u32 %v2450, 2147483648
        %v2478 = vxor.u32 %v2453, 2147483648
        %v2479 = vxor.u32 %v2456, 2147483648
        %v2480 = vxor.u32 %v2459, 2147483648
        %v2481 = vxor.u32 %v2462, 2147483648
        %v2482 = vxor.u32 %v2465, 2147483648
        %v2483 = vmul.f32 %v2467, 1.442695
        %v2484 = vpow.pop %v2483
        %v2485 = vmul.f32 %v2468, 1.442695
        %v2486 = vpow.pop %v2485
        %v2487 = vmul.f32 %v2469, 1.442695
        %v2488 = vpow.pop %v2487
        %v2489 = vmul.f32 %v2470, 1.442695
        %v2490 = vpow.pop %v2489
        %v2491 = vmul.f32 %v2471, 1.442695
        %v2492 = vpow.pop %v2491
        %v2493 = vmul.f32 %v2472, 1.442695
        %v2494 = vpow.pop %v2493
        %v2495 = vmul.f32 %v2473, 1.442695
        %v2496 = vpow.pop %v2495
        %v2497 = vmul.f32 %v2474, 1.442695
        %v2498 = vpow.pop %v2497
        %v2499 = vmul.f32 %v2475, 1.442695
        %v2500 = vpow.pop %v2499
        %v2501 = vmul.f32 %v2476, 1.442695
        %v2502 = vpow.pop %v2501
        %v2503 = vmul.f32 %v2477, 1.442695
        %v2504 = vpow.pop %v2503
        %v2505 = vmul.f32 %v2478, 1.442695
        %v2506 = vpow.pop %v2505
        %v2507 = vmul.f32 %v2479, 1.442695
        %v2508 = vpow.pop %v2507
        %v2509 = vmul.f32 %v2480, 1.442695
        %v2510 = vpow.pop %v2509
        %v2511 = vmul.f32 %v2481, 1.442695
        %v2512 = vpow.pop %v2511
        %v2513 = vmul.f32 %v2482, 1.442695
        %v2514 = vpow.pop %v2513
        %v2515 = vadd.f32 %v2484, 1.0
        %v2516 = vadd.f32 %v2486, 1.0
        %v2517 = vadd.f32 %v2488, 1.0
        %v2518 = vadd.f32 %v2490, 1.0
        %v2519 = vadd.f32 %v2492, 1.0
        %v2520 = vadd.f32 %v2494, 1.0
        %v2521 = vadd.f32 %v2496, 1.0
        %v2522 = vadd.f32 %v2498, 1.0
        %v2523 = vadd.f32 %v2500, 1.0
        %v2524 = vadd.f32 %v2502, 1.0
        %v2525 = vadd.f32 %v2504, 1.0
        %v2526 = vadd.f32 %v2506, 1.0
        %v2527 = vadd.f32 %v2508, 1.0
        %v2528 = vadd.f32 %v2510, 1.0
        %v2529 = vadd.f32 %v2512, 1.0
        %v2530 = vadd.f32 %v2514, 1.0
        %v2531 = vrcp.pop %v2515
        %v2532 = vmul.f32 %v2515, %v2531
        %v2533 = vsub.f32 1.0, %v2532
        %v2534 = vmul.f32 %v2531, %v2533
        %v2535 = vadd.f32 %v2531, %v2534
        %vm2536 = vweird.f32 %v2515
        %vm2537 = vweird.f32 %v2531
        %vm2538 = vmor %vm2536, %vm2537
        %v2539 = vsel %vm2538, %v2531, %v2535
        %v2540 = vand.u32 2147483647, %v2515
        %vm2541 = vcmp.eq.f32.partialorder %v2540, 8.507059e+37
        %v2542 = vand.u32 %v2515, 2147483648
        %v2543 = vor.u32 1.1754944e-38, %v2542
        %v2544 = vsel %vm2541, %v2543, %v2539
        %v2545 = vmul.f32 1.0, %v2544
        %v2546 = vrcp.pop %v2516
        %v2547 = vmul.f32 %v2516, %v2546
        %v2548 = vsub.f32 1.0, %v2547
        %v2549 = vmul.f32 %v2546, %v2548
        %v2550 = vadd.f32 %v2546, %v2549
        %vm2551 = vweird.f32 %v2516
        %vm2552 = vweird.f32 %v2546
        %vm2553 = vmor %vm2551, %vm2552
        %v2554 = vsel %vm2553, %v2546, %v2550
        %v2555 = vand.u32 2147483647, %v2516
        %vm2556 = vcmp.eq.f32.partialorder %v2555, 8.507059e+37
        %v2557 = vand.u32 %v2516, 2147483648
        %v2558 = vor.u32 1.1754944e-38, %v2557
        %v2559 = vsel %vm2556, %v2558, %v2554
        %v2560 = vmul.f32 1.0, %v2559
        %v2561 = vrcp.pop %v2517
        %v2562 = vmul.f32 %v2517, %v2561
        %v2563 = vsub.f32 1.0, %v2562
        %v2564 = vmul.f32 %v2561, %v2563
        %v2565 = vadd.f32 %v2561, %v2564
        %vm2566 = vweird.f32 %v2517
        %vm2567 = vweird.f32 %v2561
        %vm2568 = vmor %vm2566, %vm2567
        %v2569 = vsel %vm2568, %v2561, %v2565
        %v2570 = vand.u32 2147483647, %v2517
        %vm2571 = vcmp.eq.f32.partialorder %v2570, 8.507059e+37
        %v2572 = vand.u32 %v2517, 2147483648
        %v2573 = vor.u32 1.1754944e-38, %v2572
        %v2574 = vsel %vm2571, %v2573, %v2569
        %v2575 = vmul.f32 1.0, %v2574
        %v2576 = vrcp.pop %v2518
        %v2577 = vmul.f32 %v2518, %v2576
        %v2578 = vsub.f32 1.0, %v2577
        %v2579 = vmul.f32 %v2576, %v2578
        %v2580 = vadd.f32 %v2576, %v2579
        %vm2581 = vweird.f32 %v2518
        %vm2582 = vweird.f32 %v2576
        %vm2583 = vmor %vm2581, %vm2582
        %v2584 = vsel %vm2583, %v2576, %v2580
        %v2585 = vand.u32 2147483647, %v2518
        %vm2586 = vcmp.eq.f32.partialorder %v2585, 8.507059e+37
        %v2587 = vand.u32 %v2518, 2147483648
        %v2588 = vor.u32 1.1754944e-38, %v2587
        %v2589 = vsel %vm2586, %v2588, %v2584
        %v2590 = vmul.f32 1.0, %v2589
        %v2591 = vrcp.pop %v2519
        %v2592 = vmul.f32 %v2519, %v2591
        %v2593 = vsub.f32 1.0, %v2592
        %v2594 = vmul.f32 %v2591, %v2593
        %v2595 = vadd.f32 %v2591, %v2594
        %vm2596 = vweird.f32 %v2519
        %vm2597 = vweird.f32 %v2591
        %vm2598 = vmor %vm2596, %vm2597
        %v2599 = vsel %vm2598, %v2591, %v2595
        %v2600 = vand.u32 2147483647, %v2519
        %vm2601 = vcmp.eq.f32.partialorder %v2600, 8.507059e+37
        %v2602 = vand.u32 %v2519, 2147483648
        %v2603 = vor.u32 1.1754944e-38, %v2602
        %v2604 = vsel %vm2601, %v2603, %v2599
        %v2605 = vmul.f32 1.0, %v2604
        %v2606 = vrcp.pop %v2520
        %v2607 = vmul.f32 %v2520, %v2606
        %v2608 = vsub.f32 1.0, %v2607
        %v2609 = vmul.f32 %v2606, %v2608
        %v2610 = vadd.f32 %v2606, %v2609
        %vm2611 = vweird.f32 %v2520
        %vm2612 = vweird.f32 %v2606
        %vm2613 = vmor %vm2611, %vm2612
        %v2614 = vsel %vm2613, %v2606, %v2610
        %v2615 = vand.u32 2147483647, %v2520
        %vm2616 = vcmp.eq.f32.partialorder %v2615, 8.507059e+37
        %v2617 = vand.u32 %v2520, 2147483648
        %v2618 = vor.u32 1.1754944e-38, %v2617
        %v2619 = vsel %vm2616, %v2618, %v2614
        %v2620 = vmul.f32 1.0, %v2619
        %v2621 = vrcp.pop %v2521
        %v2622 = vmul.f32 %v2521, %v2621
        %v2623 = vsub.f32 1.0, %v2622
        %v2624 = vmul.f32 %v2621, %v2623
        %v2625 = vadd.f32 %v2621, %v2624
        %vm2626 = vweird.f32 %v2521
        %vm2627 = vweird.f32 %v2621
        %vm2628 = vmor %vm2626, %vm2627
        %v2629 = vsel %vm2628, %v2621, %v2625
        %v2630 = vand.u32 2147483647, %v2521
        %vm2631 = vcmp.eq.f32.partialorder %v2630, 8.507059e+37
        %v2632 = vand.u32 %v2521, 2147483648
        %v2633 = vor.u32 1.1754944e-38, %v2632
        %v2634 = vsel %vm2631, %v2633, %v2629
        %v2635 = vmul.f32 1.0, %v2634
        %v2636 = vrcp.pop %v2522
        %v2637 = vmul.f32 %v2522, %v2636
        %v2638 = vsub.f32 1.0, %v2637
        %v2639 = vmul.f32 %v2636, %v2638
        %v2640 = vadd.f32 %v2636, %v2639
        %vm2641 = vweird.f32 %v2522
        %vm2642 = vweird.f32 %v2636
        %vm2643 = vmor %vm2641, %vm2642
        %v2644 = vsel %vm2643, %v2636, %v2640
        %v2645 = vand.u32 2147483647, %v2522
        %vm2646 = vcmp.eq.f32.partialorder %v2645, 8.507059e+37
        %v2647 = vand.u32 %v2522, 2147483648
        %v2648 = vor.u32 1.1754944e-38, %v2647
        %v2649 = vsel %vm2646, %v2648, %v2644
        %v2650 = vmul.f32 1.0, %v2649
        %v2651 = vrcp.pop %v2523
        %v2652 = vmul.f32 %v2523, %v2651
        %v2653 = vsub.f32 1.0, %v2652
        %v2654 = vmul.f32 %v2651, %v2653
        %v2655 = vadd.f32 %v2651, %v2654
        %vm2656 = vweird.f32 %v2523
        %vm2657 = vweird.f32 %v2651
        %vm2658 = vmor %vm2656, %vm2657
        %v2659 = vsel %vm2658, %v2651, %v2655
        %v2660 = vand.u32 2147483647, %v2523
        %vm2661 = vcmp.eq.f32.partialorder %v2660, 8.507059e+37
        %v2662 = vand.u32 %v2523, 2147483648
        %v2663 = vor.u32 1.1754944e-38, %v2662
        %v2664 = vsel %vm2661, %v2663, %v2659
        %v2665 = vmul.f32 1.0, %v2664
        %v2666 = vrcp.pop %v2524
        %v2667 = vmul.f32 %v2524, %v2666
        %v2668 = vsub.f32 1.0, %v2667
        %v2669 = vmul.f32 %v2666, %v2668
        %v2670 = vadd.f32 %v2666, %v2669
        %vm2671 = vweird.f32 %v2524
        %vm2672 = vweird.f32 %v2666
        %vm2673 = vmor %vm2671, %vm2672
        %v2674 = vsel %vm2673, %v2666, %v2670
        %v2675 = vand.u32 2147483647, %v2524
        %vm2676 = vcmp.eq.f32.partialorder %v2675, 8.507059e+37
        %v2677 = vand.u32 %v2524, 2147483648
        %v2678 = vor.u32 1.1754944e-38, %v2677
        %v2679 = vsel %vm2676, %v2678, %v2674
        %v2680 = vmul.f32 1.0, %v2679
        %v2681 = vrcp.pop %v2525
        %v2682 = vmul.f32 %v2525, %v2681
        %v2683 = vsub.f32 1.0, %v2682
        %v2684 = vmul.f32 %v2681, %v2683
        %v2685 = vadd.f32 %v2681, %v2684
        %vm2686 = vweird.f32 %v2525
        %vm2687 = vweird.f32 %v2681
        %vm2688 = vmor %vm2686, %vm2687
        %v2689 = vsel %vm2688, %v2681, %v2685
        %v2690 = vand.u32 2147483647, %v2525
        %vm2691 = vcmp.eq.f32.partialorder %v2690, 8.507059e+37
        %v2692 = vand.u32 %v2525, 2147483648
        %v2693 = vor.u32 1.1754944e-38, %v2692
        %v2694 = vsel %vm2691, %v2693, %v2689
        %v2695 = vmul.f32 1.0, %v2694
        %v2696 = vrcp.pop %v2526
        %v2697 = vmul.f32 %v2526, %v2696
        %v2698 = vsub.f32 1.0, %v2697
        %v2699 = vmul.f32 %v2696, %v2698
        %v2700 = vadd.f32 %v2696, %v2699
        %vm2701 = vweird.f32 %v2526
        %vm2702 = vweird.f32 %v2696
        %vm2703 = vmor %vm2701, %vm2702
        %v2704 = vsel %vm2703, %v2696, %v2700
        %v2705 = vand.u32 2147483647, %v2526
        %vm2706 = vcmp.eq.f32.partialorder %v2705, 8.507059e+37
        %v2707 = vand.u32 %v2526, 2147483648
        %v2708 = vor.u32 1.1754944e-38, %v2707
        %v2709 = vsel %vm2706, %v2708, %v2704
        %v2710 = vmul.f32 1.0, %v2709
        %v2711 = vrcp.pop %v2527
        %v2712 = vmul.f32 %v2527, %v2711
        %v2713 = vsub.f32 1.0, %v2712
        %v2714 = vmul.f32 %v2711, %v2713
        %v2715 = vadd.f32 %v2711, %v2714
        %vm2716 = vweird.f32 %v2527
        %vm2717 = vweird.f32 %v2711
        %vm2718 = vmor %vm2716, %vm2717
        %v2719 = vsel %vm2718, %v2711, %v2715
        %v2720 = vand.u32 2147483647, %v2527
        %vm2721 = vcmp.eq.f32.partialorder %v2720, 8.507059e+37
        %v2722 = vand.u32 %v2527, 2147483648
        %v2723 = vor.u32 1.1754944e-38, %v2722
        %v2724 = vsel %vm2721, %v2723, %v2719
        %v2725 = vmul.f32 1.0, %v2724
        %v2726 = vrcp.pop %v2528
        %v2727 = vmul.f32 %v2528, %v2726
        %v2728 = vsub.f32 1.0, %v2727
        %v2729 = vmul.f32 %v2726, %v2728
        %v2730 = vadd.f32 %v2726, %v2729
        %vm2731 = vweird.f32 %v2528
        %vm2732 = vweird.f32 %v2726
        %vm2733 = vmor %vm2731, %vm2732
        %v2734 = vsel %vm2733, %v2726, %v2730
        %v2735 = vand.u32 2147483647, %v2528
        %vm2736 = vcmp.eq.f32.partialorder %v2735, 8.507059e+37
        %v2737 = vand.u32 %v2528, 2147483648
        %v2738 = vor.u32 1.1754944e-38, %v2737
        %v2739 = vsel %vm2736, %v2738, %v2734
        %v2740 = vmul.f32 1.0, %v2739
        %v2741 = vrcp.pop %v2529
        %v2742 = vmul.f32 %v2529, %v2741
        %v2743 = vsub.f32 1.0, %v2742
        %v2744 = vmul.f32 %v2741, %v2743
        %v2745 = vadd.f32 %v2741, %v2744
        %vm2746 = vweird.f32 %v2529
        %vm2747 = vweird.f32 %v2741
        %vm2748 = vmor %vm2746, %vm2747
        %v2749 = vsel %vm2748, %v2741, %v2745
        %v2750 = vand.u32 2147483647, %v2529
        %vm2751 = vcmp.eq.f32.partialorder %v2750, 8.507059e+37
        %v2752 = vand.u32 %v2529, 2147483648
        %v2753 = vor.u32 1.1754944e-38, %v2752
        %v2754 = vsel %vm2751, %v2753, %v2749
        %v2755 = vmul.f32 1.0, %v2754
        %v2756 = vrcp.pop %v2530
        %v2757 = vmul.f32 %v2530, %v2756
        %v2758 = vsub.f32 1.0, %v2757
        %v2759 = vmul.f32 %v2756, %v2758
        %v2760 = vadd.f32 %v2756, %v2759
        %vm2761 = vweird.f32 %v2530
        %vm2762 = vweird.f32 %v2756
        %vm2763 = vmor %vm2761, %vm2762
        %v2764 = vsel %vm2763, %v2756, %v2760
        %v2765 = vand.u32 2147483647, %v2530
        %vm2766 = vcmp.eq.f32.partialorder %v2765, 8.507059e+37
        %v2767 = vand.u32 %v2530, 2147483648
        %v2768 = vor.u32 1.1754944e-38, %v2767
        %v2769 = vsel %vm2766, %v2768, %v2764
        %v2770 = vmul.f32 1.0, %v2769
        %v2771 = vld [vmem:[%s11] sm:$0xff]
        %v2772 = vld [vmem:[%s11 + $0x8] sm:$0xff]
        %v2773 = vld [vmem:[%s11 + $0x10] sm:$0xff]
        %v2774 = vld [vmem:[%s11 + $0x18] sm:$0xff]
        %v2776 = vsel %vm1824, %v2016, 0
        %v2779 = vsel %vm1824, %v2031, 0
        %v2782 = vsel %vm1824, %v2046, 0
        %v2785 = vsel %vm1824, %v2061, 0
        %v2788 = vsel %vm1824, %v2076, 0
        %v2791 = vsel %vm1824, %v2091, 0
        %v2794 = vsel %vm1824, %v2106, 0
        %v2797 = vsel %vm1824, %v2121, 0
        %v2800 = vsel %vm1824, %v2136, 0
        %v2803 = vsel %vm1824, %v2151, 0
        %v2806 = vsel %vm1824, %v2166, 0
        %v2809 = vsel %vm1824, %v2181, 0
        %v2812 = vsel %vm1824, %v2196, 0
        %v2815 = vsel %vm1824, %v2211, 0
        %v2818 = vsel %vm1824, %v2226, 0
        %v2821 = vsel %vm1824, %v2241, 0
        %2823 = vmatpush.msra.mxu0 0.0
        %2824 = vmatpush.msra.mxu0 0.0
        %2825 = vmatpush.msra.mxu0 0.0
        %2826 = vmatpush.msra.mxu0 0.0
        %2827 = vmatpush.msra.mxu0 0.0
        %2828 = vmatpush.msra.mxu0 0.0
        %2829 = vmatpush.msra.mxu0 0.0
        %2830 = vmatpush.msra.mxu0 0.0
        %2831 = vmatpush.msra.mxu0 0.0
        %2832 = vmatpush.msra.mxu0 0.0
        %2833 = vmatpush.msra.mxu0 0.0
        %2834 = vmatpush.msra.mxu0 0.0
        %2835 = vmatpush.msra.mxu0 0.0
        %2836 = vmatpush.msra.mxu0 0.0
        %2837 = vmatpush.msra.mxu0 %v2773
        %2838 = vmatpush.msra.mxu0 %v2771
        %2839 = vmatmul.f32.gmra.mxu0 %v2776
        %v2840 = vpop.f32.mrf.mxu0
        %v2841 = vadd.f32 0.0, %v2840
        %2842 = vmatmul.f32.gmra.mxu0 %v2779
        %v2843 = vpop.f32.mrf.mxu0
        %v2844 = vadd.f32 0.0, %v2843
        %2845 = vmatmul.f32.gmra.mxu0 %v2782
        %v2846 = vpop.f32.mrf.mxu0
        %v2847 = vadd.f32 0.0, %v2846
        %2848 = vmatmul.f32.gmra.mxu0 %v2785
        %v2849 = vpop.f32.mrf.mxu0
        %v2850 = vadd.f32 0.0, %v2849
        %2851 = vmatmul.f32.gmra.mxu0 %v2788
        %v2852 = vpop.f32.mrf.mxu0
        %v2853 = vadd.f32 0.0, %v2852
        %2854 = vmatmul.f32.gmra.mxu0 %v2791
        %v2855 = vpop.f32.mrf.mxu0
        %v2856 = vadd.f32 0.0, %v2855
        %2857 = vmatmul.f32.gmra.mxu0 %v2794
        %v2858 = vpop.f32.mrf.mxu0
        %v2859 = vadd.f32 0.0, %v2858
        %2860 = vmatmul.f32.gmra.mxu0 %v2797
        %v2861 = vpop.f32.mrf.mxu0
        %v2862 = vadd.f32 0.0, %v2861
        %2863 = vmatmul.f32.gmra.mxu0 %v2800
        %v2864 = vpop.f32.mrf.mxu0
        %v2865 = vadd.f32 0.0, %v2864
        %2866 = vmatmul.f32.gmra.mxu0 %v2803
        %v2867 = vpop.f32.mrf.mxu0
        %v2868 = vadd.f32 0.0, %v2867
        %2869 = vmatmul.f32.gmra.mxu0 %v2806
        %v2870 = vpop.f32.mrf.mxu0
        %v2871 = vadd.f32 0.0, %v2870
        %2872 = vmatmul.f32.gmra.mxu0 %v2809
        %v2873 = vpop.f32.mrf.mxu0
        %v2874 = vadd.f32 0.0, %v2873
        %2875 = vmatmul.f32.gmra.mxu0 %v2812
        %v2876 = vpop.f32.mrf.mxu0
        %v2877 = vadd.f32 0.0, %v2876
        %2878 = vmatmul.f32.gmra.mxu0 %v2815
        %v2879 = vpop.f32.mrf.mxu0
        %v2880 = vadd.f32 0.0, %v2879
        %2881 = vmatmul.f32.gmra.mxu0 %v2818
        %v2882 = vpop.f32.mrf.mxu0
        %v2883 = vadd.f32 0.0, %v2882
        %2884 = vmatmul.f32.gmra.mxu0 %v2821
        %v2885 = vpop.f32.mrf.mxu0
        %v2886 = vadd.f32 0.0, %v2885
        %2887 = vdwg.mxu0
        %2888 = vmatpush.msra.mxu0 0.0
        %2889 = vmatpush.msra.mxu0 0.0
        %2890 = vmatpush.msra.mxu0 0.0
        %2891 = vmatpush.msra.mxu0 0.0
        %2892 = vmatpush.msra.mxu0 0.0
        %2893 = vmatpush.msra.mxu0 0.0
        %2894 = vmatpush.msra.mxu0 0.0
        %2895 = vmatpush.msra.mxu0 0.0
        %2896 = vmatpush.msra.mxu0 0.0
        %2897 = vmatpush.msra.mxu0 0.0
        %2898 = vmatpush.msra.mxu0 0.0
        %2899 = vmatpush.msra.mxu0 0.0
        %2900 = vmatpush.msra.mxu0 0.0
        %2901 = vmatpush.msra.mxu0 0.0
        %2902 = vmatpush.msra.mxu0 %v2774
        %2903 = vmatpush.msra.mxu0 %v2772
        %2904 = vmatmul.f32.gmra.mxu0 %v2776
        %v2905 = vpop.f32.mrf.mxu0
        %v2906 = vadd.f32 0.0, %v2905
        %2907 = vmatmul.f32.gmra.mxu0 %v2779
        %v2908 = vpop.f32.mrf.mxu0
        %v2909 = vadd.f32 0.0, %v2908
        %2910 = vmatmul.f32.gmra.mxu0 %v2782
        %v2911 = vpop.f32.mrf.mxu0
        %v2912 = vadd.f32 0.0, %v2911
        %2913 = vmatmul.f32.gmra.mxu0 %v2785
        %v2914 = vpop.f32.mrf.mxu0
        %v2915 = vadd.f32 0.0, %v2914
        %2916 = vmatmul.f32.gmra.mxu0 %v2788
        %v2917 = vpop.f32.mrf.mxu0
        %v2918 = vadd.f32 0.0, %v2917
        %2919 = vmatmul.f32.gmra.mxu0 %v2791
        %v2920 = vpop.f32.mrf.mxu0
        %v2921 = vadd.f32 0.0, %v2920
        %2922 = vmatmul.f32.gmra.mxu0 %v2794
        %v2923 = vpop.f32.mrf.mxu0
        %v2924 = vadd.f32 0.0, %v2923
        %2925 = vmatmul.f32.gmra.mxu0 %v2797
        %v2926 = vpop.f32.mrf.mxu0
        %v2927 = vadd.f32 0.0, %v2926
        %2928 = vmatmul.f32.gmra.mxu0 %v2800
        %v2929 = vpop.f32.mrf.mxu0
        %v2930 = vadd.f32 0.0, %v2929
        %2931 = vmatmul.f32.gmra.mxu0 %v2803
        %v2932 = vpop.f32.mrf.mxu0
        %v2933 = vadd.f32 0.0, %v2932
        %2934 = vmatmul.f32.gmra.mxu0 %v2806
        %v2935 = vpop.f32.mrf.mxu0
        %v2936 = vadd.f32 0.0, %v2935
        %2937 = vmatmul.f32.gmra.mxu0 %v2809
        %v2938 = vpop.f32.mrf.mxu0
        %v2939 = vadd.f32 0.0, %v2938
        %2940 = vmatmul.f32.gmra.mxu0 %v2812
        %v2941 = vpop.f32.mrf.mxu0
        %v2942 = vadd.f32 0.0, %v2941
        %2943 = vmatmul.f32.gmra.mxu0 %v2815
        %v2944 = vpop.f32.mrf.mxu0
        %v2945 = vadd.f32 0.0, %v2944
        %2946 = vmatmul.f32.gmra.mxu0 %v2818
        %v2947 = vpop.f32.mrf.mxu0
        %v2948 = vadd.f32 0.0, %v2947
        %2949 = vmatmul.f32.gmra.mxu0 %v2821
        %v2950 = vpop.f32.mrf.mxu0
        %v2951 = vadd.f32 0.0, %v2950
        %2952 = vdwg.mxu0
        %v2953 = vld [vmem:[%s12] sm:$0xff]
        %v2954 = vld [vmem:[%s12 + $0x8] sm:$0xff]
        %v2955 = vld [vmem:[%s12 + $0x10] sm:$0xff]
        %v2956 = vld [vmem:[%s12 + $0x18] sm:$0xff]
        %v2958 = vsel %vm1824, %v2545, 0
        %v2961 = vsel %vm1824, %v2560, 0
        %v2964 = vsel %vm1824, %v2575, 0
        %v2967 = vsel %vm1824, %v2590, 0
        %v2970 = vsel %vm1824, %v2605, 0
        %v2973 = vsel %vm1824, %v2620, 0
        %v2976 = vsel %vm1824, %v2635, 0
        %v2979 = vsel %vm1824, %v2650, 0
        %v2982 = vsel %vm1824, %v2665, 0
        %v2985 = vsel %vm1824, %v2680, 0
        %v2988 = vsel %vm1824, %v2695, 0
        %v2991 = vsel %vm1824, %v2710, 0
        %v2994 = vsel %vm1824, %v2725, 0
        %v2997 = vsel %vm1824, %v2740, 0
        %v3000 = vsel %vm1824, %v2755, 0
        %v3003 = vsel %vm1824, %v2770, 0
        %3005 = vmatpush.msra.mxu0 0.0
        %3006 = vmatpush.msra.mxu0 0.0
        %3007 = vmatpush.msra.mxu0 0.0
        %3008 = vmatpush.msra.mxu0 0.0
        %3009 = vmatpush.msra.mxu0 0.0
        %3010 = vmatpush.msra.mxu0 0.0
        %3011 = vmatpush.msra.mxu0 0.0
        %3012 = vmatpush.msra.mxu0 0.0
        %3013 = vmatpush.msra.mxu0 0.0
        %3014 = vmatpush.msra.mxu0 0.0
        %3015 = vmatpush.msra.mxu0 0.0
        %3016 = vmatpush.msra.mxu0 0.0
        %3017 = vmatpush.msra.mxu0 0.0
        %3018 = vmatpush.msra.mxu0 0.0
        %3019 = vmatpush.msra.mxu0 %v2955
        %3020 = vmatpush.msra.mxu0 %v2953
        %3021 = vmatmul.f32.gmra.mxu0 %v2958
        %v3022 = vpop.f32.mrf.mxu0
        %v3023 = vadd.f32 0.0, %v3022
        %3024 = vmatmul.f32.gmra.mxu0 %v2961
        %v3025 = vpop.f32.mrf.mxu0
        %v3026 = vadd.f32 0.0, %v3025
        %3027 = vmatmul.f32.gmra.mxu0 %v2964
        %v3028 = vpop.f32.mrf.mxu0
        %v3029 = vadd.f32 0.0, %v3028
        %3030 = vmatmul.f32.gmra.mxu0 %v2967
        %v3031 = vpop.f32.mrf.mxu0
        %v3032 = vadd.f32 0.0, %v3031
        %3033 = vmatmul.f32.gmra.mxu0 %v2970
        %v3034 = vpop.f32.mrf.mxu0
        %v3035 = vadd.f32 0.0, %v3034
        %3036 = vmatmul.f32.gmra.mxu0 %v2973
        %v3037 = vpop.f32.mrf.mxu0
        %v3038 = vadd.f32 0.0, %v3037
        %3039 = vmatmul.f32.gmra.mxu0 %v2976
        %v3040 = vpop.f32.mrf.mxu0
        %v3041 = vadd.f32 0.0, %v3040
        %3042 = vmatmul.f32.gmra.mxu0 %v2979
        %v3043 = vpop.f32.mrf.mxu0
        %v3044 = vadd.f32 0.0, %v3043
        %3045 = vmatmul.f32.gmra.mxu0 %v2982
        %v3046 = vpop.f32.mrf.mxu0
        %v3047 = vadd.f32 0.0, %v3046
        %3048 = vmatmul.f32.gmra.mxu0 %v2985
        %v3049 = vpop.f32.mrf.mxu0
        %v3050 = vadd.f32 0.0, %v3049
        %3051 = vmatmul.f32.gmra.mxu0 %v2988
        %v3052 = vpop.f32.mrf.mxu0
        %v3053 = vadd.f32 0.0, %v3052
        %3054 = vmatmul.f32.gmra.mxu0 %v2991
        %v3055 = vpop.f32.mrf.mxu0
        %v3056 = vadd.f32 0.0, %v3055
        %3057 = vmatmul.f32.gmra.mxu0 %v2994
        %v3058 = vpop.f32.mrf.mxu0
        %v3059 = vadd.f32 0.0, %v3058
        %3060 = vmatmul.f32.gmra.mxu0 %v2997
        %v3061 = vpop.f32.mrf.mxu0
        %v3062 = vadd.f32 0.0, %v3061
        %3063 = vmatmul.f32.gmra.mxu0 %v3000
        %v3064 = vpop.f32.mrf.mxu0
        %v3065 = vadd.f32 0.0, %v3064
        %3066 = vmatmul.f32.gmra.mxu0 %v3003
        %v3067 = vpop.f32.mrf.mxu0
        %v3068 = vadd.f32 0.0, %v3067
        %3069 = vdwg.mxu0
        %3070 = vmatpush.msra.mxu0 0.0
        %3071 = vmatpush.msra.mxu0 0.0
        %3072 = vmatpush.msra.mxu0 0.0
        %3073 = vmatpush.msra.mxu0 0.0
        %3074 = vmatpush.msra.mxu0 0.0
        %3075 = vmatpush.msra.mxu0 0.0
        %3076 = vmatpush.msra.mxu0 0.0
        %3077 = vmatpush.msra.mxu0 0.0
        %3078 = vmatpush.msra.mxu0 0.0
        %3079 = vmatpush.msra.mxu0 0.0
        %3080 = vmatpush.msra.mxu0 0.0
        %3081 = vmatpush.msra.mxu0 0.0
        %3082 = vmatpush.msra.mxu0 0.0
        %3083 = vmatpush.msra.mxu0 0.0
        %3084 = vmatpush.msra.mxu0 %v2956
        %3085 = vmatpush.msra.mxu0 %v2954
        %3086 = vmatmul.f32.gmra.mxu0 %v2958
        %v3087 = vpop.f32.mrf.mxu0
        %v3088 = vadd.f32 0.0, %v3087
        %3089 = vmatmul.f32.gmra.mxu0 %v2961
        %v3090 = vpop.f32.mrf.mxu0
        %v3091 = vadd.f32 0.0, %v3090
        %3092 = vmatmul.f32.gmra.mxu0 %v2964
        %v3093 = vpop.f32.mrf.mxu0
        %v3094 = vadd.f32 0.0, %v3093
        %3095 = vmatmul.f32.gmra.mxu0 %v2967
        %v3096 = vpop.f32.mrf.mxu0
        %v3097 = vadd.f32 0.0, %v3096
        %3098 = vmatmul.f32.gmra.mxu0 %v2970
        %v3099 = vpop.f32.mrf.mxu0
        %v3100 = vadd.f32 0.0, %v3099
        %3101 = vmatmul.f32.gmra.mxu0 %v2973
        %v3102 = vpop.f32.mrf.mxu0
        %v3103 = vadd.f32 0.0, %v3102
        %3104 = vmatmul.f32.gmra.mxu0 %v2976
        %v3105 = vpop.f32.mrf.mxu0
        %v3106 = vadd.f32 0.0, %v3105
        %3107 = vmatmul.f32.gmra.mxu0 %v2979
        %v3108 = vpop.f32.mrf.mxu0
        %v3109 = vadd.f32 0.0, %v3108
        %3110 = vmatmul.f32.gmra.mxu0 %v2982
        %v3111 = vpop.f32.mrf.mxu0
        %v3112 = vadd.f32 0.0, %v3111
        %3113 = vmatmul.f32.gmra.mxu0 %v2985
        %v3114 = vpop.f32.mrf.mxu0
        %v3115 = vadd.f32 0.0, %v3114
        %3116 = vmatmul.f32.gmra.mxu0 %v2988
        %v3117 = vpop.f32.mrf.mxu0
        %v3118 = vadd.f32 0.0, %v3117
        %3119 = vmatmul.f32.gmra.mxu0 %v2991
        %v3120 = vpop.f32.mrf.mxu0
        %v3121 = vadd.f32 0.0, %v3120
        %3122 = vmatmul.f32.gmra.mxu0 %v2994
        %v3123 = vpop.f32.mrf.mxu0
        %v3124 = vadd.f32 0.0, %v3123
        %3125 = vmatmul.f32.gmra.mxu0 %v2997
        %v3126 = vpop.f32.mrf.mxu0
        %v3127 = vadd.f32 0.0, %v3126
        %3128 = vmatmul.f32.gmra.mxu0 %v3000
        %v3129 = vpop.f32.mrf.mxu0
        %v3130 = vadd.f32 0.0, %v3129
        %3131 = vmatmul.f32.gmra.mxu0 %v3003
        %v3132 = vpop.f32.mrf.mxu0
        %v3133 = vadd.f32 0.0, %v3132
        %3134 = vdwg.mxu0
        %v3135 = vld [vmem:[%s532] sm:$0xff]
        %v3136 = vld [vmem:[%s532 + $0x8] sm:$0xff]
        %v3137 = vmul.f32 %v3135, %v1516
        %v3138 = vmul.f32 %v3136, %v1531
        %v3139 = vmul.f32 %v3137, %v2841
        %v3140 = vmul.f32 %v3138, %v2906
        %v3141 = vmul.f32 %v3139, %v3023
        %v3142 = vmul.f32 %v3140, %v3088
        %3143 = vst [vmem:[%s537] sm:$0xff] %v3141
        %3144 = vst [vmem:[%s537 + $0x8] sm:$0xff] %v3142
        %v3145 = vld [vmem:[%s532 + $0x10] sm:$0xff]
        %v3146 = vld [vmem:[%s532 + $0x18] sm:$0xff]
        %v3147 = vmul.f32 %v3145, %v1516
        %v3148 = vmul.f32 %v3146, %v1531
        %v3149 = vmul.f32 %v3147, %v2844
        %v3150 = vmul.f32 %v3148, %v2909
        %v3151 = vmul.f32 %v3149, %v3026
        %v3152 = vmul.f32 %v3150, %v3091
        %3153 = vst [vmem:[%s537 + $0x10] sm:$0xff] %v3151
        %3154 = vst [vmem:[%s537 + $0x18] sm:$0xff] %v3152
        %v3155 = vld [vmem:[%s532 + $0x20] sm:$0xff]
        %v3156 = vld [vmem:[%s532 + $0x28] sm:$0xff]
        %v3157 = vmul.f32 %v3155, %v1516
        %v3158 = vmul.f32 %v3156, %v1531
        %v3159 = vmul.f32 %v3157, %v2847
        %v3160 = vmul.f32 %v3158, %v2912
        %v3161 = vmul.f32 %v3159, %v3029
        %v3162 = vmul.f32 %v3160, %v3094
        %3163 = vst [vmem:[%s537 + $0x20] sm:$0xff] %v3161
        %3164 = vst [vmem:[%s537 + $0x28] sm:$0xff] %v3162
        %v3165 = vld [vmem:[%s532 + $0x30] sm:$0xff]
        %v3166 = vld [vmem:[%s532 + $0x38] sm:$0xff]
        %v3167 = vmul.f32 %v3165, %v1516
        %v3168 = vmul.f32 %v3166, %v1531
        %v3169 = vmul.f32 %v3167, %v2850
        %v3170 = vmul.f32 %v3168, %v2915
        %v3171 = vmul.f32 %v3169, %v3032
        %v3172 = vmul.f32 %v3170, %v3097
        %3173 = vst [vmem:[%s537 + $0x30] sm:$0xff] %v3171
        %3174 = vst [vmem:[%s537 + $0x38] sm:$0xff] %v3172
        %v3175 = vld [vmem:[%s532 + $0x40] sm:$0xff]
        %v3176 = vld [vmem:[%s532 + $0x48] sm:$0xff]
        %v3177 = vmul.f32 %v3175, %v1516
        %v3178 = vmul.f32 %v3176, %v1531
        %v3179 = vmul.f32 %v3177, %v2853
        %v3180 = vmul.f32 %v3178, %v2918
        %v3181 = vmul.f32 %v3179, %v3035
        %v3182 = vmul.f32 %v3180, %v3100
        %3183 = vst [vmem:[%s537 + $0x40] sm:$0xff] %v3181
        %3184 = vst [vmem:[%s537 + $0x48] sm:$0xff] %v3182
        %v3185 = vld [vmem:[%s532 + $0x50] sm:$0xff]
        %v3186 = vld [vmem:[%s532 + $0x58] sm:$0xff]
        %v3187 = vmul.f32 %v3185, %v1516
        %v3188 = vmul.f32 %v3186, %v1531
        %v3189 = vmul.f32 %v3187, %v2856
        %v3190 = vmul.f32 %v3188, %v2921
        %v3191 = vmul.f32 %v3189, %v3038
        %v3192 = vmul.f32 %v3190, %v3103
        %3193 = vst [vmem:[%s537 + $0x50] sm:$0xff] %v3191
        %3194 = vst [vmem:[%s537 + $0x58] sm:$0xff] %v3192
        %v3195 = vld [vmem:[%s532 + $0x60] sm:$0xff]
        %v3196 = vld [vmem:[%s532 + $0x68] sm:$0xff]
        %v3197 = vmul.f32 %v3195, %v1516
        %v3198 = vmul.f32 %v3196, %v1531
        %v3199 = vmul.f32 %v3197, %v2859
        %v3200 = vmul.f32 %v3198, %v2924
        %v3201 = vmul.f32 %v3199, %v3041
        %v3202 = vmul.f32 %v3200, %v3106
        %3203 = vst [vmem:[%s537 + $0x60] sm:$0xff] %v3201
        %3204 = vst [vmem:[%s537 + $0x68] sm:$0xff] %v3202
        %v3205 = vld [vmem:[%s532 + $0x70] sm:$0xff]
        %v3206 = vld [vmem:[%s532 + $0x78] sm:$0xff]
        %v3207 = vmul.f32 %v3205, %v1516
        %v3208 = vmul.f32 %v3206, %v1531
        %v3209 = vmul.f32 %v3207, %v2862
        %v3210 = vmul.f32 %v3208, %v2927
        %v3211 = vmul.f32 %v3209, %v3044
        %v3212 = vmul.f32 %v3210, %v3109
        %3213 = vst [vmem:[%s537 + $0x70] sm:$0xff] %v3211
        %3214 = vst [vmem:[%s537 + $0x78] sm:$0xff] %v3212
        %v3215 = vld [vmem:[%s532 + $0x80] sm:$0xff]
        %v3216 = vld [vmem:[%s532 + $0x88] sm:$0xff]
        %v3217 = vmul.f32 %v3215, %v1516
        %v3218 = vmul.f32 %v3216, %v1531
        %v3219 = vmul.f32 %v3217, %v2865
        %v3220 = vmul.f32 %v3218, %v2930
        %v3221 = vmul.f32 %v3219, %v3047
        %v3222 = vmul.f32 %v3220, %v3112
        %3223 = vst [vmem:[%s537 + $0x80] sm:$0xff] %v3221
        %3224 = vst [vmem:[%s537 + $0x88] sm:$0xff] %v3222
        %v3225 = vld [vmem:[%s532 + $0x90] sm:$0xff]
        %v3226 = vld [vmem:[%s532 + $0x98] sm:$0xff]
        %v3227 = vmul.f32 %v3225, %v1516
        %v3228 = vmul.f32 %v3226, %v1531
        %v3229 = vmul.f32 %v3227, %v2868
        %v3230 = vmul.f32 %v3228, %v2933
        %v3231 = vmul.f32 %v3229, %v3050
        %v3232 = vmul.f32 %v3230, %v3115
        %3233 = vst [vmem:[%s537 + $0x90] sm:$0xff] %v3231
        %3234 = vst [vmem:[%s537 + $0x98] sm:$0xff] %v3232
        %v3235 = vld [vmem:[%s532 + $0xa0] sm:$0xff]
        %v3236 = vld [vmem:[%s532 + $0xa8] sm:$0xff]
        %v3237 = vmul.f32 %v3235, %v1516
        %v3238 = vmul.f32 %v3236, %v1531
        %v3239 = vmul.f32 %v3237, %v2871
        %v3240 = vmul.f32 %v3238, %v2936
        %v3241 = vmul.f32 %v3239, %v3053
        %v3242 = vmul.f32 %v3240, %v3118
        %3243 = vst [vmem:[%s537 + $0xa0] sm:$0xff] %v3241
        %3244 = vst [vmem:[%s537 + $0xa8] sm:$0xff] %v3242
        %v3245 = vld [vmem:[%s532 + $0xb0] sm:$0xff]
        %v3246 = vld [vmem:[%s532 + $0xb8] sm:$0xff]
        %v3247 = vmul.f32 %v3245, %v1516
        %v3248 = vmul.f32 %v3246, %v1531
        %v3249 = vmul.f32 %v3247, %v2874
        %v3250 = vmul.f32 %v3248, %v2939
        %v3251 = vmul.f32 %v3249, %v3056
        %v3252 = vmul.f32 %v3250, %v3121
        %3253 = vst [vmem:[%s537 + $0xb0] sm:$0xff] %v3251
        %3254 = vst [vmem:[%s537 + $0xb8] sm:$0xff] %v3252
        %v3255 = vld [vmem:[%s532 + $0xc0] sm:$0xff]
        %v3256 = vld [vmem:[%s532 + $0xc8] sm:$0xff]
        %v3257 = vmul.f32 %v3255, %v1516
        %v3258 = vmul.f32 %v3256, %v1531
        %v3259 = vmul.f32 %v3257, %v2877
        %v3260 = vmul.f32 %v3258, %v2942
        %v3261 = vmul.f32 %v3259, %v3059
        %v3262 = vmul.f32 %v3260, %v3124
        %3263 = vst [vmem:[%s537 + $0xc0] sm:$0xff] %v3261
        %3264 = vst [vmem:[%s537 + $0xc8] sm:$0xff] %v3262
        %v3265 = vld [vmem:[%s532 + $0xd0] sm:$0xff]
        %v3266 = vld [vmem:[%s532 + $0xd8] sm:$0xff]
        %v3267 = vmul.f32 %v3265, %v1516
        %v3268 = vmul.f32 %v3266, %v1531
        %v3269 = vmul.f32 %v3267, %v2880
        %v3270 = vmul.f32 %v3268, %v2945
        %v3271 = vmul.f32 %v3269, %v3062
        %v3272 = vmul.f32 %v3270, %v3127
        %3273 = vst [vmem:[%s537 + $0xd0] sm:$0xff] %v3271
        %3274 = vst [vmem:[%s537 + $0xd8] sm:$0xff] %v3272
        %v3275 = vld [vmem:[%s532 + $0xe0] sm:$0xff]
        %v3276 = vld [vmem:[%s532 + $0xe8] sm:$0xff]
        %v3277 = vmul.f32 %v3275, %v1516
        %v3278 = vmul.f32 %v3276, %v1531
        %v3279 = vmul.f32 %v3277, %v2883
        %v3280 = vmul.f32 %v3278, %v2948
        %v3281 = vmul.f32 %v3279, %v3065
        %v3282 = vmul.f32 %v3280, %v3130
        %3283 = vst [vmem:[%s537 + $0xe0] sm:$0xff] %v3281
        %3284 = vst [vmem:[%s537 + $0xe8] sm:$0xff] %v3282
        %v3285 = vld [vmem:[%s532 + $0xf0] sm:$0xff]
        %v3286 = vld [vmem:[%s532 + $0xf8] sm:$0xff]
        %v3287 = vmul.f32 %v3285, %v1516
        %v3288 = vmul.f32 %v3286, %v1531
        %v3289 = vmul.f32 %v3287, %v2886
        %v3290 = vmul.f32 %v3288, %v2951
        %v3291 = vmul.f32 %v3289, %v3068
        %v3292 = vmul.f32 %v3290, %v3133
        %3293 = vst [vmem:[%s537 + $0xf0] sm:$0xff] %v3291
        %3294 = vst [vmem:[%s537 + $0xf8] sm:$0xff] %v3292
        %p3295 = scmp.lt.s32.totalorder %s30, 1
        %s3296 = scalar_select %p3295, %s30, 1
        %s3297 = smul.addr %s3296, 32
        %s3298 = smul.addr %s3297, 8
        %s3299 = scalar_lea.vmem %s16, %s3298
        // Predicated region
        $region89: #{sts_attention.1} parent=83 // pred_check
          %p3300 = pneg %p389
        $region90: #{sts_attention.1} parent=83 // pred_check_branch
          %3302 = sbr.rel (%p3300) target = $region92
        $region91: #{sts_attention.1} parent=83 // pred_region
          _
        $region92: #{sts_attention.1} parent=83 // pred_fallthru
          _
      $region84: #{sts_attention.1} parent=5 // pred_fallthru
        _
      %p3303 = scmp.le.s32.totalorder 2, %s25
      // Predicated region
      $region93: #{sts_attention.1} parent=5 // pred_check
        %p3304 = pneg %p3303
      $region94: #{sts_attention.1} parent=5 // pred_check_branch
        %3306 = sbr.rel (%p3304) target = $region96
      $region95: #{sts_attention.1} parent=5 // pred_region
        %s3307 = ssub.s32 %s25, 2
        // Predicated region
        $region97: #{sts_attention.1} parent=95 // pred_check
          %p3308 = pneg %p395
        $region98: #{sts_attention.1} parent=95 // pred_check_branch
          %3310 = sbr.rel (%p3308) target = $region100
        $region99: #{sts_attention.1} parent=95 // pred_region
          %p3311 = scmp.lt.s32.totalorder %s31, 1
          %s3312 = scalar_select %p3311, %s31, 1
          %s3313 = smul.addr %s3312, 32
          %s3314 = smul.addr %s3313, 8
          %s3315 = scalar_lea.vmem %s16, %s3314
        $region100: #{sts_attention.1} parent=95 // pred_fallthru
          _
      $region96: #{sts_attention.1} parent=5 // pred_fallthru
        _
    $region6: #{sts_attention.1} parent=1 // loop_footer
      %s29 = sadd.s32 1, %s25
    $region7: #{sts_attention.1} parent=1 // loop_footer_branch
      %24 = sbr.rel target = $region3
    $region8: #{sts_attention.1} parent=1 // loop_exit
      _
    %3316 = vsyncpa [#allocation5], 1
    %s3317 = scalar_lea.sflag [#allocation5], 1
    %3318 = vsyncpa %s3317, 1

</llo_original>
